<compile_context>
chip_gen: v7x
topology: tpu7x:2x2x1
jax: 0.10.0
libtpu: 0.0.40
codegen_flags: <defaults>
</compile_context>

<pallas_src>
import warnings

import jax
import jax.numpy as jnp
from jax.experimental import pallas as pl
from jax.experimental.pallas import tpu as pltpu


# ----------------------------------------------------------------------------
# Kernel
# ----------------------------------------------------------------------------
def _make_importance_kernel(nh: int, bf16_elementwise: bool):
    """sigmoid((x + LN(W2·gelu(W1·x+b1)+b2)·g+beta) @ W3^T + b3) for a row tile."""

    def kernel(x_ref, w1_ref, b1_ref, w2_ref, b2_ref,
               g_ref, beta_ref, w3_ref, b3_ref, out_ref):
        # --- importance_score MLP: Linear -> GELU -> Linear ------------------
        # bf16 operands on the MXU, f32 accumulation.  x is consumed here and
        # re-read from VMEM at the residual below (short live range).
        h = jnp.dot(x_ref[...].astype(jnp.bfloat16), w1_ref[...],
                    preferred_element_type=jnp.float32) + b1_ref[...]
        # tanh GELU -> EUP slot instead of a long VALU erf polynomial.
        if bf16_elementwise:
            # v6e/v7x: bf16 VPU/EUP.  h is rounded to bf16 for the second
            # matmul anyway, so bias/GELU in bf16 is accuracy-neutral.
            h = jax.nn.gelu(h.astype(jnp.bfloat16), approximate=True)
        else:
            # v5e: no bf16 VALU/EUP -> keep elementwise work in f32.
            h = jax.nn.gelu(h, approximate=True).astype(jnp.bfloat16)
        s = jnp.dot(h, w2_ref[...],
                    preferred_element_type=jnp.float32) + b2_ref[...]

        # --- LayerNorm (biased variance, eps=1e-5) + residual, in f32 ---------
        mu = jnp.mean(s, axis=-1, keepdims=True)
        var = jnp.mean((s - mu) * (s - mu), axis=-1, keepdims=True)
        s_norm = (s - mu) * jax.lax.rsqrt(var + 1e-5)
        y = x_ref[...] + s_norm * g_ref[...] + beta_ref[...]       # re-read x

        # --- transf: Linear(C -> NH) + Sigmoid --------------------------------
        w3t = w3_ref[...].astype(jnp.float32)                      # (NH, C)
        if nh == 1:
            # VPU multiply + lane reduce (avoids a lane-sparse MXU pass).
            logits = jnp.sum(y * w3t, axis=-1, keepdims=True)
        else:
            # Single lane-sparse MXU pass (MXU has slack here); no per-head
            # loop + concat (which forced XLU relayout work per head).
            logits = jnp.dot(y, w3t.T, preferred_element_type=jnp.float32)
        out_ref[...] = jax.nn.sigmoid(logits + b3_ref[...])

    return kernel


# ----------------------------------------------------------------------------
# Hardware knobs / one-time feature detection
# ----------------------------------------------------------------------------
def _hw_config():
    """Generation-aware knobs (device_kind string is robust across builds)."""
    kind = jax.devices()[0].device_kind.lower()
    is_v7 = "v7" in kind
    bf16_elementwise = is_v7 or ("v6" in kind)   # bf16 VPU/EUP exists on v6e+
    if is_v7:
        vmem_budget = 40 << 20      # 64 MiB physical -> leave real headroom
        vmem_cap = 56 << 20         # never request all of physical VMEM
    else:
        vmem_budget = 96 << 20      # v5e/v6e: 128 MiB physical
        vmem_cap = 100 << 20
    num_tc = 2 if is_v7 else 1      # 2 TensorCores per chip on v7x
    return bf16_elementwise, vmem_budget, vmem_cap, num_tc


_RESIDENT_PARAMS_OK = None


def _resident_params_supported():
    """One-time probe: whole-array VMEM-resident (non-pipelined) inputs."""
    global _RESIDENT_PARAMS_OK
    if _RESIDENT_PARAMS_OK is None:
        def probe(x_ref, p_ref, o_ref):
            o_ref[...] = x_ref[...] + p_ref[...]
        try:
            x = jnp.zeros((8, 128), jnp.float32)
            jax.block_until_ready(pl.pallas_call(
                probe,
                out_shape=jax.ShapeDtypeStruct((8, 128), jnp.float32),
                grid=(1,),
                in_specs=[pl.BlockSpec((8, 128), lambda i: (0, 0)),
                          pl.BlockSpec(memory_space=pltpu.MemorySpace.VMEM)],
                out_specs=pl.BlockSpec((8, 128), lambda i: (0, 0)),
            )(x, x))
            _RESIDENT_PARAMS_OK = True
        except Exception:
            # Feature detection only -- the real kernel is NOT wrapped, so any
            # genuine compile/lowering error there surfaces loudly.
            warnings.warn("Pallas: whole-array VMEM-resident inputs unsupported;"
                          " falling back to constant-index blocked params.")
            _RESIDENT_PARAMS_OK = False
    return _RESIDENT_PARAMS_OK


# ----------------------------------------------------------------------------
# Wrapper
# ----------------------------------------------------------------------------
def _vmem_estimate(row_tile, c, nh):
    params_b = 2 * (2 * c * c * 2 + 4 * c * 4 + nh * c * 4 + nh * 4)  # <=2x buffered
    io_b = 2 * row_tile * c * 4 + 2 * row_tile * nh * 4               # x / out (2-buf)
    interm_b = 6 * row_tile * c * 4                                   # temporaries
    return params_b + io_b + interm_b


def importance_scores_pallas(x_flat, params, *, row_tile=1024):
    """x_flat: (R, C) float32 -> (R, NH) float32 importance scores."""
    R, C = x_flat.shape
    NH = params["w3t"].shape[0]
    bf16_ew, vmem_budget, vmem_cap, num_tc = _hw_config()

    # Row tile: large (512-1024), a multiple of 128 (full unmasked MXU passes,
    # lane/sublane-dense layouts), capped at the rounded-up problem size.
    # Shrink only if the VMEM working set would not fit; on 2-TC v7x only,
    # also shrink until there are >= 2 grid steps so both cores get work.
    rt = max(128, (int(row_tile) // 128) * 128)
    rt = min(rt, max(128, pl.cdiv(R, 128) * 128))
    while rt > 128 and _vmem_estimate(rt, C, NH) > vmem_budget:
        rt = max(128, ((rt // 2) // 128) * 128)
    while rt > 128 and pl.cdiv(R, rt) < num_tc:
        rt = max(128, ((rt // 2) // 128) * 128)

    # Pad rows up to a multiple of the tile (padded rows sliced off after).
    R_pad = pl.cdiv(R, rt) * rt
    x_pad = x_flat if R_pad == R else jnp.pad(x_flat, ((0, R_pad - R), (0, 0)))

    flops = 2 * R_pad * C * (2 * C + NH) + 10 * R_pad * C
    transcendentals = R_pad * (C + NH + 1)
    bytes_accessed = (R_pad * C * 4 + R_pad * NH * 4
                      + 2 * C * C * 2 + 4 * C * 4 + NH * C * 4 + NH * 4)
    cost = pl.CostEstimate(flops=flops, transcendentals=transcendentals,
                           bytes_accessed=bytes_accessed)
    cparams = pltpu.CompilerParams(
        dimension_semantics=("parallel",),
        vmem_limit_bytes=int(min(max(2 * _vmem_estimate(rt, C, NH), 32 << 20),
                                 vmem_cap)),
    )

    if _resident_params_supported():
        # Grid-constant operands: whole array resident in VMEM for the entire
        # kernel -- no per-step pipelining / double buffering.
        def const(_shape):
            return pl.BlockSpec(memory_space=pltpu.MemorySpace.VMEM)
    else:
        # Fallback: one full-size block with a constant index map (Pallas skips
        # re-copies when the block index does not change between steps).
        def const(shape):
            return pl.BlockSpec(shape, lambda i: (0, 0))

    grid_spec = pltpu.PrefetchScalarGridSpec(
        num_scalar_prefetch=0,
        grid=(R_pad // rt,),
        in_specs=[
            pl.BlockSpec((rt, C), lambda i: (i, 0)),   # x rows (pipelined)
            const((C, C)), const((1, C)),              # W1 (bf16), b1
            const((C, C)), const((1, C)),              # W2 (bf16), b2
            const((1, C)), const((1, C)),              # LN gamma, beta
            const((NH, C)), const((1, NH)),            # W3^T, b3
        ],
        # NH is tiny -> lane-sparse store, but with big row tiles the masked
        # store happens once per tile (negligible at this output size).
        out_specs=pl.BlockSpec((rt, NH), lambda i: (i, 0)),
    )

    scores = pl.pallas_call(
        _make_importance_kernel(NH, bf16_ew),
        out_shape=jax.ShapeDtypeStruct((R_pad, NH), jnp.float32),
        grid_spec=grid_spec,
        compiler_params=cparams,
        cost_estimate=cost,
    )(x_pad, params["w1"], params["b1"], params["w2"], params["b2"],
      params["gamma"], params["beta"], params["w3t"], params["b3"])

    return scores[:R] if R_pad != R else scores


# ----------------------------------------------------------------------------
# Params / module-level forward
# ----------------------------------------------------------------------------
def init_params(key, c, nhead):
    """Init mimicking torch.nn.Linear defaults; W1/W2 stored in bf16 (MXU)."""
    ks = jax.random.split(key, 6)
    lim_c = 1.0 / jnp.sqrt(c)
    u = lambda k, shape, lim: jax.random.uniform(k, shape, jnp.float32, -lim, lim)
    return {
        "w1": u(ks[0], (c, c), lim_c).astype(jnp.bfloat16),
        "b1": u(ks[1], (1, c), lim_c),
        "w2": u(ks[2], (c, c), lim_c).astype(jnp.bfloat16),
        "b2": u(ks[3], (1, c), lim_c),
        "gamma": jnp.ones((1, c), jnp.float32),
        "beta": jnp.zeros((1, c), jnp.float32),
        "w3t": u(ks[4], (nhead, c), lim_c),      # stored transposed: (NH, C)
        "b3": u(ks[5], (1, nhead), lim_c),
    }


def sample_net_forward(x, params, *, n_sampled_token, nhead=1, adv=False,
                       row_tile=1024):
    """Eval-mode SampleNet forward.

    x: (b, n, c) float32
    returns: q_top (b, k, nhead*c), indices_top (b, nhead, k, 1)
    """
    b, n, c = x.shape
    x_flat = x.reshape(b * n, c)

    scores = importance_scores_pallas(x_flat, params, row_tile=row_tile)
    scores = scores.reshape(b, n, nhead)
    if adv:
        scores = scores * -1.0

    # top-k over the token dim (per head); torch uses sorted=False so any
    # ordering of the same index set is equivalent.
    scores_t = jnp.transpose(scores, (0, 2, 1))                  # (b, nhead, n)
    _, idx = jax.lax.top_k(scores_t, n_sampled_token)            # (b, nhead, k)
    indices_top = idx[..., None]                                 # (b, nhead, k, 1)

    # gather tokens: q = x[:, None] is (b, 1, n, c); take along dim=2.
    q = x[:, None, :, :]
    q_top = jnp.take_along_axis(q, indices_top, axis=2)          # (b, nhead, k, c)

    # rearrange 'b nhead k c -> b k (nhead c)'
    q_top = jnp.transpose(q_top, (0, 2, 1, 3)).reshape(b, n_sampled_token, nhead * c)
    return q_top, indices_top


def _reference_scores(x_flat, p):
    """Plain-JAX f32 reference (torch semantics: exact GELU, f32) — sanity only."""
    w1 = p["w1"].astype(jnp.float32)
    w2 = p["w2"].astype(jnp.float32)
    h = jax.nn.gelu(x_flat @ w1 + p["b1"], approximate=False)
    s = h @ w2 + p["b2"]
    mu = jnp.mean(s, axis=-1, keepdims=True)
    var = jnp.mean((s - mu) ** 2, axis=-1, keepdims=True)
    y = x_flat + (s - mu) * jax.lax.rsqrt(var + 1e-5) * p["gamma"] + p["beta"]
    return jax.nn.sigmoid(y @ p["w3t"].T + p["b3"])


if __name__ == "__main__":
    B, N, C = 2, 200, 128        # R = 400 -> padded to 512 (1-2 row tiles)
    NHEAD = 1
    K = 16                       # n_sampled_token

    key = jax.random.PRNGKey(0)
    kx, kp = jax.random.split(key)
    x = jax.random.normal(kx, (B, N, C), jnp.float32)
    params = init_params(kp, C, NHEAD)

    q_top, indices_top = sample_net_forward(
        x, params, n_sampled_token=K, nhead=NHEAD, adv=False)
    q_top = jax.block_until_ready(q_top)
    indices_top = jax.block_until_ready(indices_top)

    assert q_top.shape == (B, K, NHEAD * C)
    assert indices_top.shape == (B, NHEAD, K, 1)

    # sanity: Pallas kernel matches the plain-JAX f32 reference (tolerance
    # loosened because the kernel uses bf16 matmul operands + tanh GELU).
    got = importance_scores_pallas(x.reshape(B * N, C), params)
    got = jax.block_until_ready(got)
    want = _reference_scores(x.reshape(B * N, C), params)
    assert jnp.allclose(got, want, rtol=3e-2, atol=4e-2)

    print("KERNEL_OK")
</pallas_src>

<mosaic_0001>
module attributes {stable_mosaic.version = 11 : i64} {
  func.func @probe(%arg0: i32, %arg1: memref<8x128xf32, #tpu.memory_space<vmem>>, %arg2: memref<8x128xf32, #tpu.memory_space<vmem>>, %arg3: memref<8x128xf32, #tpu.memory_space<vmem>>) attributes {dimension_semantics = [#tpu.dimension_semantics<arbitrary>], iteration_bounds = array<i64: 1>, scalar_prefetch = 0 : i64, scratch_operands = 0 : i64, tpu.core_type = #tpu.core_type<tc>, window_params = [{pipeline_mode = #tpu.pipeline_mode<synchronous>, transform_indices = @transform_0, window_bounds = array<i64: 8, 128>}, {pipeline_mode = #tpu.pipeline_mode<synchronous>, transform_indices = @transform_1, window_bounds = array<i64: 8, 128>}, {pipeline_mode = #tpu.pipeline_mode<synchronous>, transform_indices = @transform_2, window_bounds = array<i64: 8, 128>}]} {
    %c0 = arith.constant 0 : index
    %c0_0 = arith.constant 0 : index
    %0 = vector.load %arg1[%c0, %c0_0] : memref<8x128xf32, #tpu.memory_space<vmem>>, vector<8x128xf32>
    %c0_1 = arith.constant 0 : index
    %c0_2 = arith.constant 0 : index
    %1 = vector.load %arg2[%c0_1, %c0_2] : memref<8x128xf32, #tpu.memory_space<vmem>>, vector<8x128xf32>
    %2 = arith.addf %0, %1 : vector<8x128xf32>
    %c0_3 = arith.constant 0 : index
    %c0_4 = arith.constant 0 : index
    %3 = vector.load %arg3[%c0_3, %c0_4] : memref<8x128xf32, #tpu.memory_space<vmem>>, vector<8x128xf32>
    tpu.vector_store %arg3[%c0_3, %c0_4], %2 {strides = array<i32>} : memref<8x128xf32, #tpu.memory_space<vmem>>, vector<8x128xf32>,
    return
  }
  func.func @transform_0(%arg0: i32) -> (i32, i32) {
    %c0_i32 = arith.constant 0 : i32
    %c0_i32_0 = arith.constant 0 : i32
    %c0_i32_1 = arith.constant 0 : i32
    return %c0_i32, %c0_i32_0 : i32, i32
  }
  func.func @transform_1(%arg0: i32) -> (i32, i32) {
    %c0_i32 = arith.constant 0 : i32
    %c0_i32_0 = arith.constant 0 : i32
    %c0_i32_1 = arith.constant 0 : i32
    return %c0_i32, %c0_i32_0 : i32, i32
  }
  func.func @transform_2(%arg0: i32) -> (i32, i32) {
    %c0_i32 = arith.constant 0 : i32
    %c0_i32_0 = arith.constant 0 : i32
    %c0_i32_1 = arith.constant 0 : i32
    return %c0_i32, %c0_i32_0 : i32, i32
  }
}

module attributes {stable_mosaic.version = 11 : i64} {
  func.func @kernel(%arg0: i32, %arg1: memref<512x128xf32, #tpu.memory_space<vmem>>, %arg2: memref<128x128xbf16, #tpu.memory_space<vmem>>, %arg3: memref<1x128xf32, #tpu.memory_space<vmem>>, %arg4: memref<128x128xbf16, #tpu.memory_space<vmem>>, %arg5: memref<1x128xf32, #tpu.memory_space<vmem>>, %arg6: memref<1x128xf32, #tpu.memory_space<vmem>>, %arg7: memref<1x128xf32, #tpu.memory_space<vmem>>, %arg8: memref<1x128xf32, #tpu.memory_space<vmem>>, %arg9: memref<1x1xf32, #tpu.memory_space<vmem>>, %arg10: memref<512x1xf32, #tpu.memory_space<vmem>>) attributes {dimension_semantics = [#tpu.dimension_semantics<parallel>], iteration_bounds = array<i64: 1>, scalar_prefetch = 0 : i64, scratch_operands = 0 : i64, tpu.core_type = #tpu.core_type<tc>, window_params = [{transform_indices = @transform_0, window_bounds = array<i64: 512, 128>}, {pipeline_mode = #tpu.pipeline_mode<synchronous>, transform_indices = @transform_1, window_bounds = array<i64: 128, 128>}, {pipeline_mode = #tpu.pipeline_mode<synchronous>, transform_indices = @transform_2, window_bounds = array<i64: 1, 128>}, {pipeline_mode = #tpu.pipeline_mode<synchronous>, transform_indices = @transform_3, window_bounds = array<i64: 128, 128>}, {pipeline_mode = #tpu.pipeline_mode<synchronous>, transform_indices = @transform_4, window_bounds = array<i64: 1, 128>}, {pipeline_mode = #tpu.pipeline_mode<synchronous>, transform_indices = @transform_5, window_bounds = array<i64: 1, 128>}, {pipeline_mode = #tpu.pipeline_mode<synchronous>, transform_indices = @transform_6, window_bounds = array<i64: 1, 128>}, {pipeline_mode = #tpu.pipeline_mode<synchronous>, transform_indices = @transform_7, window_bounds = array<i64: 1, 128>}, {pipeline_mode = #tpu.pipeline_mode<synchronous>, transform_indices = @transform_8, window_bounds = array<i64: 1, 1>}, {transform_indices = @transform_9, window_bounds = array<i64: 512, 1>}]} {
    %c0 = arith.constant 0 : index
    %c0_0 = arith.constant 0 : index
    %0 = vector.load %arg1[%c0, %c0_0] : memref<512x128xf32, #tpu.memory_space<vmem>>, vector<512x128xf32>
    %1 = arith.truncf %0 : vector<512x128xf32> to vector<512x128xbf16>
    %c0_1 = arith.constant 0 : index
    %c0_2 = arith.constant 0 : index
    %2 = vector.load %arg2[%c0_1, %c0_2] : memref<128x128xbf16, #tpu.memory_space<vmem>>, vector<128x128xbf16>
    %cst = arith.constant dense<0.000000e+00> : vector<512x128xf32>
    %3 = tpu.matmul %1, %2, %cst {dimension_numbers = #tpu.dot_dimension_numbers<[1], [0], [0], [1], [0, 0, 1, 1], [], []>} : vector<512x128xbf16>, vector<128x128xbf16>, vector<512x128xf32> -> vector<512x128xf32>
    %c0_3 = arith.constant 0 : index
    %c0_4 = arith.constant 0 : index
    %4 = vector.load %arg3[%c0_3, %c0_4] : memref<1x128xf32, #tpu.memory_space<vmem>>, vector<1x128xf32>
    %5 = vector.broadcast %4 : vector<1x128xf32> to vector<512x128xf32>
    %6 = arith.addf %3, %5 : vector<512x128xf32>
    %7 = arith.mulf %6, %6 : vector<512x128xf32>
    %8 = arith.mulf %6, %7 : vector<512x128xf32>
    %cst_5 = arith.constant 4.471500e-02 : f32
    %9 = vector.broadcast %cst_5 : f32 to vector<512x128xf32>
    %10 = arith.mulf %9, %8 : vector<512x128xf32>
    %11 = arith.addf %6, %10 : vector<512x128xf32>
    %cst_6 = arith.constant 0.797884583 : f32
    %12 = vector.broadcast %cst_6 : f32 to vector<512x128xf32>
    %13 = arith.mulf %12, %11 : vector<512x128xf32>
    %14 = math.tanh %13 : vector<512x128xf32>
    %cst_7 = arith.constant 1.000000e+00 : f32
    %15 = vector.broadcast %cst_7 : f32 to vector<512x128xf32>
    %16 = arith.addf %15, %14 : vector<512x128xf32>
    %cst_8 = arith.constant 5.000000e-01 : f32
    %17 = vector.broadcast %cst_8 : f32 to vector<512x128xf32>
    %18 = arith.mulf %17, %16 : vector<512x128xf32>
    %19 = arith.mulf %6, %18 : vector<512x128xf32>
    %20 = arith.truncf %19 : vector<512x128xf32> to vector<512x128xbf16>
    %c0_9 = arith.constant 0 : index
    %c0_10 = arith.constant 0 : index
    %21 = vector.load %arg4[%c0_9, %c0_10] : memref<128x128xbf16, #tpu.memory_space<vmem>>, vector<128x128xbf16>
    %cst_11 = arith.constant dense<0.000000e+00> : vector<512x128xf32>
    %22 = tpu.matmul %20, %21, %cst_11 {dimension_numbers = #tpu.dot_dimension_numbers<[1], [0], [0], [1], [0, 0, 1, 1], [], []>} : vector<512x128xbf16>, vector<128x128xbf16>, vector<512x128xf32> -> vector<512x128xf32>
    %c0_12 = arith.constant 0 : index
    %c0_13 = arith.constant 0 : index
    %23 = vector.load %arg5[%c0_12, %c0_13] : memref<1x128xf32, #tpu.memory_space<vmem>>, vector<1x128xf32>
    %24 = vector.broadcast %23 : vector<1x128xf32> to vector<512x128xf32>
    %25 = arith.addf %22, %24 : vector<512x128xf32>
    %cst_14 = arith.constant dense<0.000000e+00> : vector<512xf32>
    %26 = vector.multi_reduction <add>, %25, %cst_14 [1] : vector<512x128xf32> to vector<512xf32>
    %27 = vector.shape_cast %26 : vector<512xf32> to vector<512x1xf32>
    %cst_15 = arith.constant 1.280000e+02 : f32
    %28 = vector.broadcast %cst_15 : f32 to vector<512x1xf32>
    %29 = arith.divf %27, %28 : vector<512x1xf32>
    %30 = vector.broadcast %29 : vector<512x1xf32> to vector<512x128xf32>
    %31 = arith.subf %25, %30 : vector<512x128xf32>
    %32 = vector.broadcast %29 : vector<512x1xf32> to vector<512x128xf32>
    %33 = arith.subf %25, %32 : vector<512x128xf32>
    %34 = arith.mulf %31, %33 : vector<512x128xf32>
    %cst_16 = arith.constant dense<0.000000e+00> : vector<512xf32>
    %35 = vector.multi_reduction <add>, %34, %cst_16 [1] : vector<512x128xf32> to vector<512xf32>
    %36 = vector.shape_cast %35 : vector<512xf32> to vector<512x1xf32>
    %cst_17 = arith.constant 1.280000e+02 : f32
    %37 = vector.broadcast %cst_17 : f32 to vector<512x1xf32>
    %38 = arith.divf %36, %37 : vector<512x1xf32>
    %39 = vector.broadcast %29 : vector<512x1xf32> to vector<512x128xf32>
    %40 = arith.subf %25, %39 : vector<512x128xf32>
    %cst_18 = arith.constant 9.99999974E-6 : f32
    %41 = vector.broadcast %cst_18 : f32 to vector<512x1xf32>
    %42 = arith.addf %38, %41 : vector<512x1xf32>
    %43 = math.rsqrt %42 : vector<512x1xf32>
    %44 = vector.broadcast %43 : vector<512x1xf32> to vector<512x128xf32>
    %45 = arith.mulf %40, %44 : vector<512x128xf32>
    %c0_19 = arith.constant 0 : index
    %c0_20 = arith.constant 0 : index
    %46 = vector.load %arg1[%c0_19, %c0_20] : memref<512x128xf32, #tpu.memory_space<vmem>>, vector<512x128xf32>
    %c0_21 = arith.constant 0 : index
    %c0_22 = arith.constant 0 : index
    %47 = vector.load %arg6[%c0_21, %c0_22] : memref<1x128xf32, #tpu.memory_space<vmem>>, vector<1x128xf32>
    %48 = vector.broadcast %47 : vector<1x128xf32> to vector<512x128xf32>
    %49 = arith.mulf %45, %48 : vector<512x128xf32>
    %50 = arith.addf %46, %49 : vector<512x128xf32>
    %c0_23 = arith.constant 0 : index
    %c0_24 = arith.constant 0 : index
    %51 = vector.load %arg7[%c0_23, %c0_24] : memref<1x128xf32, #tpu.memory_space<vmem>>, vector<1x128xf32>
    %52 = vector.broadcast %51 : vector<1x128xf32> to vector<512x128xf32>
    %53 = arith.addf %50, %52 : vector<512x128xf32>
    %c0_25 = arith.constant 0 : index
    %c0_26 = arith.constant 0 : index
    %54 = vector.load %arg8[%c0_25, %c0_26] : memref<1x128xf32, #tpu.memory_space<vmem>>, vector<1x128xf32>
    %55 = vector.broadcast %54 : vector<1x128xf32> to vector<512x128xf32>
    %56 = arith.mulf %53, %55 : vector<512x128xf32>
    %cst_27 = arith.constant dense<0.000000e+00> : vector<512xf32>
    %57 = vector.multi_reduction <add>, %56, %cst_27 [1] : vector<512x128xf32> to vector<512xf32>
    %58 = vector.shape_cast %57 : vector<512xf32> to vector<512x1xf32>
    %c0_28 = arith.constant 0 : index
    %c0_29 = arith.constant 0 : index
    %59 = vector.load %arg9[%c0_28, %c0_29] : memref<1x1xf32, #tpu.memory_space<vmem>>, vector<1x1xf32>
    %60 = vector.broadcast %59 : vector<1x1xf32> to vector<512x1xf32>
    %61 = arith.addf %58, %60 : vector<512x1xf32>
    %62 = arith.negf %61 : vector<512x1xf32>
    %63 = math.exp %62 : vector<512x1xf32>
    %cst_30 = arith.constant 1.000000e+00 : f32
    %64 = vector.broadcast %cst_30 : f32 to vector<512x1xf32>
    %65 = arith.addf %64, %63 : vector<512x1xf32>
    %66 = arith.divf %64, %65 : vector<512x1xf32>
    %c0_31 = arith.constant 0 : index
    %c0_32 = arith.constant 0 : index
    %67 = vector.load %arg10[%c0_31, %c0_32] : memref<512x1xf32, #tpu.memory_space<vmem>>, vector<512x1xf32>
    tpu.vector_store %arg10[%c0_31, %c0_32], %66 {strides = array<i32>} : memref<512x1xf32, #tpu.memory_space<vmem>>, vector<512x1xf32>,
    return
  }
  func.func @transform_0(%arg0: i32) -> (i32, i32) {
    %c0_i32 = arith.constant 0 : i32
    %c0_i32_0 = arith.constant 0 : i32
    return %arg0, %c0_i32 : i32, i32
  }
  func.func @transform_1(%arg0: i32) -> (i32, i32) {
    %c0_i32 = arith.constant 0 : i32
    %c0_i32_0 = arith.constant 0 : i32
    %c0_i32_1 = arith.constant 0 : i32
    return %c0_i32, %c0_i32_0 : i32, i32
  }
  func.func @transform_2(%arg0: i32) -> (i32, i32) {
    %c0_i32 = arith.constant 0 : i32
    %c0_i32_0 = arith.constant 0 : i32
    %c0_i32_1 = arith.constant 0 : i32
    return %c0_i32, %c0_i32_0 : i32, i32
  }
  func.func @transform_3(%arg0: i32) -> (i32, i32) {
    %c0_i32 = arith.constant 0 : i32
    %c0_i32_0 = arith.constant 0 : i32
    %c0_i32_1 = arith.constant 0 : i32
    return %c0_i32, %c0_i32_0 : i32, i32
  }
  func.func @transform_4(%arg0: i32) -> (i32, i32) {
    %c0_i32 = arith.constant 0 : i32
    %c0_i32_0 = arith.constant 0 : i32
    %c0_i32_1 = arith.constant 0 : i32
    return %c0_i32, %c0_i32_0 : i32, i32
  }
  func.func @transform_5(%arg0: i32) -> (i32, i32) {
    %c0_i32 = arith.constant 0 : i32
    %c0_i32_0 = arith.constant 0 : i32
    %c0_i32_1 = arith.constant 0 : i32
    return %c0_i32, %c0_i32_0 : i32, i32
  }
  func.func @transform_6(%arg0: i32) -> (i32, i32) {
    %c0_i32 = arith.constant 0 : i32
    %c0_i32_0 = arith.constant 0 : i32
    %c0_i32_1 = arith.constant 0 : i32
    return %c0_i32, %c0_i32_0 : i32, i32
  }
  func.func @transform_7(%arg0: i32) -> (i32, i32) {
    %c0_i32 = arith.constant 0 : i32
    %c0_i32_0 = arith.constant 0 : i32
    %c0_i32_1 = arith.constant 0 : i32
    return %c0_i32, %c0_i32_0 : i32, i32
  }
  func.func @transform_8(%arg0: i32) -> (i32, i32) {
    %c0_i32 = arith.constant 0 : i32
    %c0_i32_0 = arith.constant 0 : i32
    %c0_i32_1 = arith.constant 0 : i32
    return %c0_i32, %c0_i32_0 : i32, i32
  }
  func.func @transform_9(%arg0: i32) -> (i32, i32) {
    %c0_i32 = arith.constant 0 : i32
    %c0_i32_0 = arith.constant 0 : i32
    return %arg0, %c0_i32 : i32, i32
  }
}

</mosaic_0001>

<llo_original>
// kernel: tpu_custom_call.1
$region0: #{tpu_custom_call.1}
  #allocation0 [shape = 'u32[]', space=smem, size = 0x4, offset = 0x4, fixed_abs, tag = 'smem constant byte address 0x4 - core index']
  #allocation1 [shape = 'u32[144,128]{1,0:T(1,128)}', space=vmem, size = 0x12000, scoped, tag = 'internal scratch']
  %s0 = inlined_call_operand.hbm [shape: f32[8,128], index: 0, kind: input, shape index: {}]
  %s1 = inlined_call_operand.hbm [shape: f32[8,128], index: 1, kind: input, shape index: {}]
  %s2 = inlined_call_operand.hbm [shape: f32[8,128], index: 2, kind: output, shape index: {}]
  %s3 = sld [smem:[#allocation0]]
  $region26: #{tpu_custom_call.1} parent=0
    _
  %s5 = ssub.s32 1, %s3
  %s6 = scalar_select 0, %s5, %s3
  $region1: #{tpu_custom_call.1} parent=0
    #allocation2 [shape = 'u8[4096]{0}', space=vmem, size = 0x1000, scoped, tag = 'input window, operand 0, single buffered']
    #allocation3 [shape = 's32[1]{0}', space=sflag, size = 0x4, scoped, tag = 'scoped memory for tpu_custom_call.1']
    #allocation4 [shape = 's32[1]{0}', space=sflag, size = 0x4, scoped, tag = 'scoped memory for tpu_custom_call.1']
    #allocation5 [shape = 'u8[4096]{0}', space=vmem, size = 0x1000, scoped, tag = 'input window, operand 1, single buffered']
    #allocation6 [shape = 's32[1]{0}', space=sflag, size = 0x4, scoped, tag = 'scoped memory for tpu_custom_call.1']
    #allocation7 [shape = 'u8[4096]{0}', space=vmem, size = 0x1000, scoped, tag = 'output window, operand 0, single buffered']
    %7 = vsyncpa [#allocation3], 0
    %8 = vsyncpa [#allocation6], 0
    %9 = vsyncpa [#allocation4], 0
    // Predicated region
    $region2: #{tpu_custom_call.1} parent=1 // pred_check
      _
    $region3: #{tpu_custom_call.1} parent=1 // pred_check_branch
      %11 = sbr.rel (0) target = $region5
    $region4: #{tpu_custom_call.1} parent=1 // pred_region
      %s13 = ssub.s32 128, 128
      %14 = vsyncadd [#allocation3], %s13
      %s16 = sshll.u32 [#allocation2], 4
      %s17 = int_to_ptr.vmem [resolvable:$true] %s16
      %19 = dma.hbm_to_vmem [thread:$0]  %s0, 128, %s17, [#allocation3]
    $region5: #{tpu_custom_call.1} parent=1 // pred_fallthru
      _
    // Predicated region
    $region6: #{tpu_custom_call.1} parent=1 // pred_check
      _
    $region7: #{tpu_custom_call.1} parent=1 // pred_check_branch
      %21 = sbr.rel (0) target = $region9
    $region8: #{tpu_custom_call.1} parent=1 // pred_region
      %s23 = ssub.s32 128, 128
      %24 = vsyncadd [#allocation6], %s23
      %s26 = sshll.u32 [#allocation5], 4
      %s27 = int_to_ptr.vmem [resolvable:$true] %s26
      %29 = dma.hbm_to_vmem [thread:$0]  %s1, 128, %s27, [#allocation6]
    $region9: #{tpu_custom_call.1} parent=1 // pred_fallthru
      _
    // Predicated region
    $region10: #{tpu_custom_call.1} parent=1 // pred_check
      _
    $region11: #{tpu_custom_call.1} parent=1 // pred_check_branch
      %31 = sbr.rel (0) target = $region13
    $region12: #{tpu_custom_call.1} parent=1 // pred_region
      %32 = dma.done [#allocation3], 128
    $region13: #{tpu_custom_call.1} parent=1 // pred_fallthru
      _
    // Predicated region
    $region14: #{tpu_custom_call.1} parent=1 // pred_check
      _
    $region15: #{tpu_custom_call.1} parent=1 // pred_check_branch
      %34 = sbr.rel (0) target = $region17
    $region16: #{tpu_custom_call.1} parent=1 // pred_region
      %35 = dma.done [#allocation6], 128
    $region17: #{tpu_custom_call.1} parent=1 // pred_fallthru
      _
    %v36 = vld [vmem:[#allocation2] sm:$0xff]
    %v37 = vld [vmem:[#allocation5] sm:$0xff]
    %v38 = vadd.f32 %v36, %v37
    %39 = vst [vmem:[#allocation7] sm:$0xff] %v38
    // Predicated region
    $region18: #{tpu_custom_call.1} parent=1 // pred_check
      _
    $region19: #{tpu_custom_call.1} parent=1 // pred_check_branch
      %41 = sbr.rel (0) target = $region21
    $region20: #{tpu_custom_call.1} parent=1 // pred_region
      %s43 = ssub.s32 128, 128
      %44 = vsyncadd [#allocation4], %s43
      %s46 = sshll.u32 [#allocation7], 4
      %s47 = int_to_ptr.vmem [resolvable:$true] %s46
      %49 = dma.vmem_to_hbm [thread:$0]  %s47, 128, %s2, [#allocation4]
    $region21: #{tpu_custom_call.1} parent=1 // pred_fallthru
      _
    // Predicated region
    $region22: #{tpu_custom_call.1} parent=1 // pred_check
      _
    $region23: #{tpu_custom_call.1} parent=1 // pred_check_branch
      %51 = sbr.rel (0) target = $region25
    $region24: #{tpu_custom_call.1} parent=1 // pred_region
      %52 = dma.done [#allocation4], 128
    $region25: #{tpu_custom_call.1} parent=1 // pred_fallthru
      _
    %53 = vsyncpa [#allocation3], 1
    %54 = vsyncpa [#allocation6], 1
    %55 = vsyncpa [#allocation4], 1

// kernel: tpu_custom_call.1
$region0: #{tpu_custom_call.1}
  #allocation0 [shape = 'u32[]', space=smem, size = 0x4, offset = 0x4, fixed_abs, tag = 'smem constant byte address 0x4 - core index']
  #allocation1 [shape = 'u32[144,128]{1,0:T(1,128)}', space=vmem, size = 0x12000, scoped, tag = 'internal scratch']
  #allocation2 [shape = 'f32[1,1]{1,0:T(1,128)S(1)}', space=vmem, size = 0x200, scoped, tag = 'scoped memory for tpu_custom_call.1']
  %s0 = inlined_call_operand.hbm [shape: f32[512,128], index: 0, kind: input, shape index: {}]
  %s1 = inlined_call_operand.hbm [shape: bf16[128,128], index: 1, kind: input, shape index: {}]
  %s2 = inlined_call_operand.vmem [shape: f32[1,128], index: 2, kind: input, shape index: {}]
  %s3 = inlined_call_operand.hbm [shape: bf16[128,128], index: 3, kind: input, shape index: {}]
  %s4 = inlined_call_operand.vmem [shape: f32[1,128], index: 4, kind: input, shape index: {}]
  %s5 = inlined_call_operand.vmem [shape: f32[1,128], index: 5, kind: input, shape index: {}]
  %s6 = inlined_call_operand.vmem [shape: f32[1,128], index: 6, kind: input, shape index: {}]
  %s7 = inlined_call_operand.vmem [shape: f32[1,128], index: 7, kind: input, shape index: {}]
  %s8 = inlined_call_operand.<no memory space> [shape: f32[1,1], index: 8, kind: input, shape index: {}]
  %s9 = inlined_call_operand.vmem [shape: f32[512,1], index: 9, kind: output, shape index: {}]
  %s10 = sld [smem:[#allocation0]]
  $region58: #{tpu_custom_call.1} parent=0
    _
  %s12 = ssub.s32 1, %s10
  %s13 = scalar_select 0, %s12, %s10
  %v14 = vstv %s8
  %15 = vst [vmem:[#allocation2] sm:$0x1] %v14
  $region1: #{tpu_custom_call.1} parent=0
    #allocation3 [shape = 'u8[262144]{0}', space=vmem, size = 0x40000, scoped, tag = 'input window, operand 0, single buffered']
    #allocation4 [shape = 's32[1]{0}', space=sflag, size = 0x4, scoped, tag = 'scoped memory for tpu_custom_call.1']
    #allocation5 [shape = 'u8[32768]{0}', space=vmem, size = 0x8000, scoped, tag = 'input window, operand 1, single buffered']
    #allocation6 [shape = 's32[1]{0}', space=sflag, size = 0x4, scoped, tag = 'scoped memory for tpu_custom_call.1']
    #allocation7 [shape = 'u8[32768]{0}', space=vmem, size = 0x8000, scoped, tag = 'input window, operand 3, single buffered']
    %16 = vsyncpa [#allocation4], 0
    %17 = vsyncpa [#allocation6], 0
    // Predicated region
    $region2: #{tpu_custom_call.1} parent=1 // pred_check
      _
    $region3: #{tpu_custom_call.1} parent=1 // pred_check_branch
      %19 = sbr.rel (0) target = $region5
    $region4: #{tpu_custom_call.1} parent=1 // pred_region
      %s21 = ssub.s32 8192, 8192
      %22 = vsyncadd [#allocation4], %s21
      %s23 = sshll.u32 [#allocation3], 4
      %s24 = int_to_ptr.vmem [resolvable:$true] %s23
      %29 = dma.hbm_to_vmem [thread:$0]  %s0, 8192, %s24, [#allocation4], 128, 128, 8
    $region5: #{tpu_custom_call.1} parent=1 // pred_fallthru
      _
    // Predicated region
    $region6: #{tpu_custom_call.1} parent=1 // pred_check
      _
    $region7: #{tpu_custom_call.1} parent=1 // pred_check_branch
      %31 = sbr.rel (0) target = $region9
    $region8: #{tpu_custom_call.1} parent=1 // pred_region
      %s33 = ssub.s32 1024, 1024
      %34 = vsyncadd [#allocation6], %s33
      %s35 = sshll.u32 [#allocation5], 4
      %s36 = int_to_ptr.vmem [resolvable:$true] %s35
      %41 = dma.hbm_to_vmem [thread:$0]  %s1, 1024, %s36, [#allocation6], 64, 64, 4
    $region9: #{tpu_custom_call.1} parent=1 // pred_fallthru
      _
    // Predicated region
    $region10: #{tpu_custom_call.1} parent=1 // pred_check
      _
    $region11: #{tpu_custom_call.1} parent=1 // pred_check_branch
      %43 = sbr.rel (0) target = $region13
    $region12: #{tpu_custom_call.1} parent=1 // pred_region
      _
    $region13: #{tpu_custom_call.1} parent=1 // pred_fallthru
      _
    // Predicated region
    $region14: #{tpu_custom_call.1} parent=1 // pred_check
      _
    $region15: #{tpu_custom_call.1} parent=1 // pred_check_branch
      %45 = sbr.rel (0) target = $region17
    $region16: #{tpu_custom_call.1} parent=1 // pred_region
      %s47 = ssub.s32 1024, 1024
      %48 = vsyncadd [#allocation6], %s47
      %s49 = sshll.u32 [#allocation7], 4
      %s50 = int_to_ptr.vmem [resolvable:$true] %s49
      %55 = dma.hbm_to_vmem [thread:$0]  %s3, 1024, %s50, [#allocation6], 64, 64, 4
    $region17: #{tpu_custom_call.1} parent=1 // pred_fallthru
      _
    // Predicated region
    $region18: #{tpu_custom_call.1} parent=1 // pred_check
      _
    $region19: #{tpu_custom_call.1} parent=1 // pred_check_branch
      %57 = sbr.rel (0) target = $region21
    $region20: #{tpu_custom_call.1} parent=1 // pred_region
      _
    $region21: #{tpu_custom_call.1} parent=1 // pred_fallthru
      _
    // Predicated region
    $region22: #{tpu_custom_call.1} parent=1 // pred_check
      _
    $region23: #{tpu_custom_call.1} parent=1 // pred_check_branch
      %59 = sbr.rel (0) target = $region25
    $region24: #{tpu_custom_call.1} parent=1 // pred_region
      _
    $region25: #{tpu_custom_call.1} parent=1 // pred_fallthru
      _
    // Predicated region
    $region26: #{tpu_custom_call.1} parent=1 // pred_check
      _
    $region27: #{tpu_custom_call.1} parent=1 // pred_check_branch
      %61 = sbr.rel (0) target = $region29
    $region28: #{tpu_custom_call.1} parent=1 // pred_region
      _
    $region29: #{tpu_custom_call.1} parent=1 // pred_fallthru
      _
    // Predicated region
    $region30: #{tpu_custom_call.1} parent=1 // pred_check
      _
    $region31: #{tpu_custom_call.1} parent=1 // pred_check_branch
      %63 = sbr.rel (0) target = $region33
    $region32: #{tpu_custom_call.1} parent=1 // pred_region
      _
    $region33: #{tpu_custom_call.1} parent=1 // pred_fallthru
      _
    // Predicated region
    $region34: #{tpu_custom_call.1} parent=1 // pred_check
      _
    $region35: #{tpu_custom_call.1} parent=1 // pred_check_branch
      %65 = sbr.rel (0) target = $region37
    $region36: #{tpu_custom_call.1} parent=1 // pred_region
      _
    $region37: #{tpu_custom_call.1} parent=1 // pred_fallthru
      _
    // Predicated region
    $region38: #{tpu_custom_call.1} parent=1 // pred_check
      _
    $region39: #{tpu_custom_call.1} parent=1 // pred_check_branch
      %67 = sbr.rel (0) target = $region41
    $region40: #{tpu_custom_call.1} parent=1 // pred_region
      %68 = dma.done [#allocation4], 8192
    $region41: #{tpu_custom_call.1} parent=1 // pred_fallthru
      _
    // Predicated region
    $region42: #{tpu_custom_call.1} parent=1 // pred_check
      _
    $region43: #{tpu_custom_call.1} parent=1 // pred_check_branch
      %70 = sbr.rel (0) target = $region45
    $region44: #{tpu_custom_call.1} parent=1 // pred_region
      %71 = dma.done [#allocation6], 1024
    $region45: #{tpu_custom_call.1} parent=1 // pred_fallthru
      _
    // Predicated region
    $region46: #{tpu_custom_call.1} parent=1 // pred_check
      _
    $region47: #{tpu_custom_call.1} parent=1 // pred_check_branch
      %73 = sbr.rel (0) target = $region49
    $region48: #{tpu_custom_call.1} parent=1 // pred_region
      %74 = dma.done [#allocation6], 1024
    $region49: #{tpu_custom_call.1} parent=1 // pred_fallthru
      _
    %v76 = vld [vmem:[#allocation3] sm:$0xff]
    %v77 = vld [vmem:[#allocation3 + $0x8] sm:$0xff]
    %v78 = vld [vmem:[#allocation3 + $0x10] sm:$0xff]
    %v79 = vld [vmem:[#allocation3 + $0x18] sm:$0xff]
    %v80 = vld [vmem:[#allocation3 + $0x20] sm:$0xff]
    %v81 = vld [vmem:[#allocation3 + $0x28] sm:$0xff]
    %v82 = vld [vmem:[#allocation3 + $0x30] sm:$0xff]
    %v83 = vld [vmem:[#allocation3 + $0x38] sm:$0xff]
    %v84 = vld [vmem:[#allocation3 + $0x40] sm:$0xff]
    %v85 = vld [vmem:[#allocation3 + $0x48] sm:$0xff]
    %v86 = vld [vmem:[#allocation3 + $0x50] sm:$0xff]
    %v87 = vld [vmem:[#allocation3 + $0x58] sm:$0xff]
    %v88 = vld [vmem:[#allocation3 + $0x60] sm:$0xff]
    %v89 = vld [vmem:[#allocation3 + $0x68] sm:$0xff]
    %v90 = vld [vmem:[#allocation3 + $0x70] sm:$0xff]
    %v91 = vld [vmem:[#allocation3 + $0x78] sm:$0xff]
    %v92 = vld [vmem:[#allocation3 + $0x80] sm:$0xff]
    %v93 = vld [vmem:[#allocation3 + $0x88] sm:$0xff]
    %v94 = vld [vmem:[#allocation3 + $0x90] sm:$0xff]
    %v95 = vld [vmem:[#allocation3 + $0x98] sm:$0xff]
    %v96 = vld [vmem:[#allocation3 + $0xa0] sm:$0xff]
    %v97 = vld [vmem:[#allocation3 + $0xa8] sm:$0xff]
    %v98 = vld [vmem:[#allocation3 + $0xb0] sm:$0xff]
    %v99 = vld [vmem:[#allocation3 + $0xb8] sm:$0xff]
    %v100 = vld [vmem:[#allocation3 + $0xc0] sm:$0xff]
    %v101 = vld [vmem:[#allocation3 + $0xc8] sm:$0xff]
    %v102 = vld [vmem:[#allocation3 + $0xd0] sm:$0xff]
    %v103 = vld [vmem:[#allocation3 + $0xd8] sm:$0xff]
    %v104 = vld [vmem:[#allocation3 + $0xe0] sm:$0xff]
    %v105 = vld [vmem:[#allocation3 + $0xe8] sm:$0xff]
    %v106 = vld [vmem:[#allocation3 + $0xf0] sm:$0xff]
    %v107 = vld [vmem:[#allocation3 + $0xf8] sm:$0xff]
    %v108 = vld [vmem:[#allocation3 + $0x100] sm:$0xff]
    %v109 = vld [vmem:[#allocation3 + $0x108] sm:$0xff]
    %v110 = vld [vmem:[#allocation3 + $0x110] sm:$0xff]
    %v111 = vld [vmem:[#allocation3 + $0x118] sm:$0xff]
    %v112 = vld [vmem:[#allocation3 + $0x120] sm:$0xff]
    %v113 = vld [vmem:[#allocation3 + $0x128] sm:$0xff]
    %v114 = vld [vmem:[#allocation3 + $0x130] sm:$0xff]
    %v115 = vld [vmem:[#allocation3 + $0x138] sm:$0xff]
    %v116 = vld [vmem:[#allocation3 + $0x140] sm:$0xff]
    %v117 = vld [vmem:[#allocation3 + $0x148] sm:$0xff]
    %v118 = vld [vmem:[#allocation3 + $0x150] sm:$0xff]
    %v119 = vld [vmem:[#allocation3 + $0x158] sm:$0xff]
    %v120 = vld [vmem:[#allocation3 + $0x160] sm:$0xff]
    %v121 = vld [vmem:[#allocation3 + $0x168] sm:$0xff]
    %v122 = vld [vmem:[#allocation3 + $0x170] sm:$0xff]
    %v123 = vld [vmem:[#allocation3 + $0x178] sm:$0xff]
    %v124 = vld [vmem:[#allocation3 + $0x180] sm:$0xff]
    %v125 = vld [vmem:[#allocation3 + $0x188] sm:$0xff]
    %v126 = vld [vmem:[#allocation3 + $0x190] sm:$0xff]
    %v127 = vld [vmem:[#allocation3 + $0x198] sm:$0xff]
    %v128 = vld [vmem:[#allocation3 + $0x1a0] sm:$0xff]
    %v129 = vld [vmem:[#allocation3 + $0x1a8] sm:$0xff]
    %v130 = vld [vmem:[#allocation3 + $0x1b0] sm:$0xff]
    %v131 = vld [vmem:[#allocation3 + $0x1b8] sm:$0xff]
    %v132 = vld [vmem:[#allocation3 + $0x1c0] sm:$0xff]
    %v133 = vld [vmem:[#allocation3 + $0x1c8] sm:$0xff]
    %v134 = vld [vmem:[#allocation3 + $0x1d0] sm:$0xff]
    %v135 = vld [vmem:[#allocation3 + $0x1d8] sm:$0xff]
    %v136 = vld [vmem:[#allocation3 + $0x1e0] sm:$0xff]
    %v137 = vld [vmem:[#allocation3 + $0x1e8] sm:$0xff]
    %v138 = vld [vmem:[#allocation3 + $0x1f0] sm:$0xff]
    %v139 = vld [vmem:[#allocation3 + $0x1f8] sm:$0xff]
    %v140 = vpack.c.bf16 %v77, %v76
    %v141 = vpack.c.bf16 %v79, %v78
    %v142 = vpack.c.bf16 %v81, %v80
    %v143 = vpack.c.bf16 %v83, %v82
    %v144 = vpack.c.bf16 %v85, %v84
    %v145 = vpack.c.bf16 %v87, %v86
    %v146 = vpack.c.bf16 %v89, %v88
    %v147 = vpack.c.bf16 %v91, %v90
    %v148 = vpack.c.bf16 %v93, %v92
    %v149 = vpack.c.bf16 %v95, %v94
    %v150 = vpack.c.bf16 %v97, %v96
    %v151 = vpack.c.bf16 %v99, %v98
    %v152 = vpack.c.bf16 %v101, %v100
    %v153 = vpack.c.bf16 %v103, %v102
    %v154 = vpack.c.bf16 %v105, %v104
    %v155 = vpack.c.bf16 %v107, %v106
    %v156 = vpack.c.bf16 %v109, %v108
    %v157 = vpack.c.bf16 %v111, %v110
    %v158 = vpack.c.bf16 %v113, %v112
    %v159 = vpack.c.bf16 %v115, %v114
    %v160 = vpack.c.bf16 %v117, %v116
    %v161 = vpack.c.bf16 %v119, %v118
    %v162 = vpack.c.bf16 %v121, %v120
    %v163 = vpack.c.bf16 %v123, %v122
    %v164 = vpack.c.bf16 %v125, %v124
    %v165 = vpack.c.bf16 %v127, %v126
    %v166 = vpack.c.bf16 %v129, %v128
    %v167 = vpack.c.bf16 %v131, %v130
    %v168 = vpack.c.bf16 %v133, %v132
    %v169 = vpack.c.bf16 %v135, %v134
    %v170 = vpack.c.bf16 %v137, %v136
    %v171 = vpack.c.bf16 %v139, %v138
    %v172 = vld [vmem:[#allocation5] sm:$0xf]
    %v173 = vld [vmem:[#allocation5 + $0x4] sm:$0xf]
    %v174 = vld [vmem:[#allocation5 + $0x8] sm:$0xf]
    %v175 = vld [vmem:[#allocation5 + $0xc] sm:$0xf]
    %v176 = vld [vmem:[#allocation5 + $0x10] sm:$0xf]
    %v177 = vld [vmem:[#allocation5 + $0x14] sm:$0xf]
    %v178 = vld [vmem:[#allocation5 + $0x18] sm:$0xf]
    %v179 = vld [vmem:[#allocation5 + $0x1c] sm:$0xf]
    %v180 = vld [vmem:[#allocation5 + $0x20] sm:$0xf]
    %v181 = vld [vmem:[#allocation5 + $0x24] sm:$0xf]
    %v182 = vld [vmem:[#allocation5 + $0x28] sm:$0xf]
    %v183 = vld [vmem:[#allocation5 + $0x2c] sm:$0xf]
    %v184 = vld [vmem:[#allocation5 + $0x30] sm:$0xf]
    %v185 = vld [vmem:[#allocation5 + $0x34] sm:$0xf]
    %v186 = vld [vmem:[#allocation5 + $0x38] sm:$0xf]
    %v187 = vld [vmem:[#allocation5 + $0x3c] sm:$0xf]
    %v188 = vld [vmem:[%s2] sm:$0x1]
    %v190 = vlaneseq
    %v191 = vshrl.u32 %v190, 7
    %v192 = vsub.s32 0, %v191
    %v193 = vrot.slane %v188, %v192
    %v211 = vunpack.c.l.b16 %v172
    %v212 = vunpack.c.l.b16 %v173
    %v213 = vunpack.c.l.b16 %v174
    %v214 = vunpack.c.l.b16 %v175
    %v215 = vunpack.c.l.b16 %v176
    %v216 = vunpack.c.l.b16 %v177
    %v217 = vunpack.c.l.b16 %v178
    %v218 = vunpack.c.l.b16 %v179
    %v219 = vunpack.c.l.b16 %v180
    %v220 = vunpack.c.l.b16 %v181
    %v221 = vunpack.c.l.b16 %v182
    %v222 = vunpack.c.l.b16 %v183
    %v223 = vunpack.c.l.b16 %v184
    %v224 = vunpack.c.l.b16 %v185
    %v225 = vunpack.c.l.b16 %v186
    %v226 = vunpack.c.l.b16 %v187
    %v227 = vpack.c.b16 %v212, %v211
    %v228 = vpack.c.b16 %v214, %v213
    %v229 = vpack.c.b16 %v216, %v215
    %v230 = vpack.c.b16 %v218, %v217
    %v231 = vpack.c.b16 %v220, %v219
    %v232 = vpack.c.b16 %v222, %v221
    %v233 = vpack.c.b16 %v224, %v223
    %v234 = vpack.c.b16 %v226, %v225
    %243 = vmatprep.subr.bf16.mxu0 0
    %244 = vmatpush1.bf16.msra.mxu0 %v227
    %245 = vmatprep.subr.bf16.mxu0 0
    %246 = vmatpush1.bf16.msra.mxu0 %v228
    %247 = vmatprep.subr.bf16.mxu0 0
    %248 = vmatpush1.bf16.msra.mxu0 %v229
    %249 = vmatprep.subr.bf16.mxu0 0
    %250 = vmatpush1.bf16.msra.mxu0 %v230
    %251 = vmatprep.subr.bf16.mxu0 0
    %252 = vmatpush1.bf16.msra.mxu0 %v231
    %253 = vmatprep.subr.bf16.mxu0 0
    %254 = vmatpush1.bf16.msra.mxu0 %v232
    %255 = vmatprep.subr.bf16.mxu0 0
    %256 = vmatpush1.bf16.msra.mxu0 %v233
    %257 = vmatprep.subr.bf16.mxu0 0
    %258 = vmatpush1.bf16.msra.mxu0 %v234
    %259 = vmatprep.subr.bf16.mxu0 0
    %260 = vmatpush1.bf16.msra.mxu0 0
    %261 = vmatprep.subr.bf16.mxu0 0
    %262 = vmatpush1.bf16.msra.mxu0 0
    %263 = vmatprep.subr.bf16.mxu0 0
    %264 = vmatpush1.bf16.msra.mxu0 0
    %265 = vmatprep.subr.bf16.mxu0 0
    %266 = vmatpush1.bf16.msra.mxu0 0
    %267 = vmatprep.subr.bf16.mxu0 0
    %268 = vmatpush1.bf16.msra.mxu0 0
    %269 = vmatprep.subr.bf16.mxu0 0
    %270 = vmatpush1.bf16.msra.mxu0 0
    %271 = vmatprep.subr.bf16.mxu0 0
    %272 = vmatpush1.bf16.msra.mxu0 0
    %273 = vmatprep.subr.bf16.mxu0 0
    %274 = vmatpush1.bf16.msra.mxu0 0
    %275 = vmatprep.mubr.bf16.mxu0 0
    %276 = vmatmul.mubr.bf16.gmra.mrb[0].mxu0 %v140
    %v277 = vpop.f32.mrb[0].mxu0
    %v278 = vadd.f32 %v193, %v277
    %v279 = vpop.f32.mrb[0].mxu0
    %v280 = vpop.f32.mrb[0].mxu0
    %v281 = vadd.f32 %v193, %v280
    %v282 = vpop.f32.mrb[0].mxu0
    %283 = vmatprep.mubr.bf16.mxu0 0
    %284 = vmatmul.mubr.bf16.gmra.mrb[0].mxu0 %v141
    %v285 = vpop.f32.mrb[0].mxu0
    %v286 = vadd.f32 %v193, %v285
    %v287 = vpop.f32.mrb[0].mxu0
    %v288 = vpop.f32.mrb[0].mxu0
    %v289 = vadd.f32 %v193, %v288
    %v290 = vpop.f32.mrb[0].mxu0
    %291 = vmatprep.mubr.bf16.mxu0 0
    %292 = vmatmul.mubr.bf16.gmra.mrb[0].mxu0 %v142
    %v293 = vpop.f32.mrb[0].mxu0
    %v294 = vadd.f32 %v193, %v293
    %v295 = vpop.f32.mrb[0].mxu0
    %v296 = vpop.f32.mrb[0].mxu0
    %v297 = vadd.f32 %v193, %v296
    %v298 = vpop.f32.mrb[0].mxu0
    %299 = vmatprep.mubr.bf16.mxu0 0
    %300 = vmatmul.mubr.bf16.gmra.mrb[0].mxu0 %v143
    %v301 = vpop.f32.mrb[0].mxu0
    %v302 = vadd.f32 %v193, %v301
    %v303 = vpop.f32.mrb[0].mxu0
    %v304 = vpop.f32.mrb[0].mxu0
    %v305 = vadd.f32 %v193, %v304
    %v306 = vpop.f32.mrb[0].mxu0
    %307 = vmatprep.mubr.bf16.mxu0 0
    %308 = vmatmul.mubr.bf16.gmra.mrb[0].mxu0 %v144
    %v309 = vpop.f32.mrb[0].mxu0
    %v310 = vadd.f32 %v193, %v309
    %v311 = vpop.f32.mrb[0].mxu0
    %v312 = vpop.f32.mrb[0].mxu0
    %v313 = vadd.f32 %v193, %v312
    %v314 = vpop.f32.mrb[0].mxu0
    %315 = vmatprep.mubr.bf16.mxu0 0
    %316 = vmatmul.mubr.bf16.gmra.mrb[0].mxu0 %v145
    %v317 = vpop.f32.mrb[0].mxu0
    %v318 = vadd.f32 %v193, %v317
    %v319 = vpop.f32.mrb[0].mxu0
    %v320 = vpop.f32.mrb[0].mxu0
    %v321 = vadd.f32 %v193, %v320
    %v322 = vpop.f32.mrb[0].mxu0
    %323 = vmatprep.mubr.bf16.mxu0 0
    %324 = vmatmul.mubr.bf16.gmra.mrb[0].mxu0 %v146
    %v325 = vpop.f32.mrb[0].mxu0
    %v326 = vadd.f32 %v193, %v325
    %v327 = vpop.f32.mrb[0].mxu0
    %v328 = vpop.f32.mrb[0].mxu0
    %v329 = vadd.f32 %v193, %v328
    %v330 = vpop.f32.mrb[0].mxu0
    %331 = vmatprep.mubr.bf16.mxu0 0
    %332 = vmatmul.mubr.bf16.gmra.mrb[0].mxu0 %v147
    %v333 = vpop.f32.mrb[0].mxu0
    %v334 = vadd.f32 %v193, %v333
    %v335 = vpop.f32.mrb[0].mxu0
    %v336 = vpop.f32.mrb[0].mxu0
    %v337 = vadd.f32 %v193, %v336
    %v338 = vpop.f32.mrb[0].mxu0
    %339 = vmatprep.mubr.bf16.mxu0 0
    %340 = vmatmul.mubr.bf16.gmra.mrb[0].mxu0 %v148
    %v341 = vpop.f32.mrb[0].mxu0
    %v342 = vadd.f32 %v193, %v341
    %v343 = vpop.f32.mrb[0].mxu0
    %v344 = vpop.f32.mrb[0].mxu0
    %v345 = vadd.f32 %v193, %v344
    %v346 = vpop.f32.mrb[0].mxu0
    %347 = vmatprep.mubr.bf16.mxu0 0
    %348 = vmatmul.mubr.bf16.gmra.mrb[0].mxu0 %v149
    %v349 = vpop.f32.mrb[0].mxu0
    %v350 = vadd.f32 %v193, %v349
    %v351 = vpop.f32.mrb[0].mxu0
    %v352 = vpop.f32.mrb[0].mxu0
    %v353 = vadd.f32 %v193, %v352
    %v354 = vpop.f32.mrb[0].mxu0
    %355 = vmatprep.mubr.bf16.mxu0 0
    %356 = vmatmul.mubr.bf16.gmra.mrb[0].mxu0 %v150
    %v357 = vpop.f32.mrb[0].mxu0
    %v358 = vadd.f32 %v193, %v357
    %v359 = vpop.f32.mrb[0].mxu0
    %v360 = vpop.f32.mrb[0].mxu0
    %v361 = vadd.f32 %v193, %v360
    %v362 = vpop.f32.mrb[0].mxu0
    %363 = vmatprep.mubr.bf16.mxu0 0
    %364 = vmatmul.mubr.bf16.gmra.mrb[0].mxu0 %v151
    %v365 = vpop.f32.mrb[0].mxu0
    %v366 = vadd.f32 %v193, %v365
    %v367 = vpop.f32.mrb[0].mxu0
    %v368 = vpop.f32.mrb[0].mxu0
    %v369 = vadd.f32 %v193, %v368
    %v370 = vpop.f32.mrb[0].mxu0
    %371 = vmatprep.mubr.bf16.mxu0 0
    %372 = vmatmul.mubr.bf16.gmra.mrb[0].mxu0 %v152
    %v373 = vpop.f32.mrb[0].mxu0
    %v374 = vadd.f32 %v193, %v373
    %v375 = vpop.f32.mrb[0].mxu0
    %v376 = vpop.f32.mrb[0].mxu0
    %v377 = vadd.f32 %v193, %v376
    %v378 = vpop.f32.mrb[0].mxu0
    %379 = vmatprep.mubr.bf16.mxu0 0
    %380 = vmatmul.mubr.bf16.gmra.mrb[0].mxu0 %v153
    %v381 = vpop.f32.mrb[0].mxu0
    %v382 = vadd.f32 %v193, %v381
    %v383 = vpop.f32.mrb[0].mxu0
    %v384 = vpop.f32.mrb[0].mxu0
    %v385 = vadd.f32 %v193, %v384
    %v386 = vpop.f32.mrb[0].mxu0
    %387 = vmatprep.mubr.bf16.mxu0 0
    %388 = vmatmul.mubr.bf16.gmra.mrb[0].mxu0 %v154
    %v389 = vpop.f32.mrb[0].mxu0
    %v390 = vadd.f32 %v193, %v389
    %v391 = vpop.f32.mrb[0].mxu0
    %v392 = vpop.f32.mrb[0].mxu0
    %v393 = vadd.f32 %v193, %v392
    %v394 = vpop.f32.mrb[0].mxu0
    %395 = vmatprep.mubr.bf16.mxu0 0
    %396 = vmatmul.mubr.bf16.gmra.mrb[0].mxu0 %v155
    %v397 = vpop.f32.mrb[0].mxu0
    %v398 = vadd.f32 %v193, %v397
    %v399 = vpop.f32.mrb[0].mxu0
    %v400 = vpop.f32.mrb[0].mxu0
    %v401 = vadd.f32 %v193, %v400
    %v402 = vpop.f32.mrb[0].mxu0
    %403 = vmatprep.mubr.bf16.mxu0 0
    %404 = vmatmul.mubr.bf16.gmra.mrb[0].mxu0 %v156
    %v405 = vpop.f32.mrb[0].mxu0
    %v406 = vadd.f32 %v193, %v405
    %v407 = vpop.f32.mrb[0].mxu0
    %v408 = vpop.f32.mrb[0].mxu0
    %v409 = vadd.f32 %v193, %v408
    %v410 = vpop.f32.mrb[0].mxu0
    %411 = vmatprep.mubr.bf16.mxu0 0
    %412 = vmatmul.mubr.bf16.gmra.mrb[0].mxu0 %v157
    %v413 = vpop.f32.mrb[0].mxu0
    %v414 = vadd.f32 %v193, %v413
    %v415 = vpop.f32.mrb[0].mxu0
    %v416 = vpop.f32.mrb[0].mxu0
    %v417 = vadd.f32 %v193, %v416
    %v418 = vpop.f32.mrb[0].mxu0
    %419 = vmatprep.mubr.bf16.mxu0 0
    %420 = vmatmul.mubr.bf16.gmra.mrb[0].mxu0 %v158
    %v421 = vpop.f32.mrb[0].mxu0
    %v422 = vadd.f32 %v193, %v421
    %v423 = vpop.f32.mrb[0].mxu0
    %v424 = vpop.f32.mrb[0].mxu0
    %v425 = vadd.f32 %v193, %v424
    %v426 = vpop.f32.mrb[0].mxu0
    %427 = vmatprep.mubr.bf16.mxu0 0
    %428 = vmatmul.mubr.bf16.gmra.mrb[0].mxu0 %v159
    %v429 = vpop.f32.mrb[0].mxu0
    %v430 = vadd.f32 %v193, %v429
    %v431 = vpop.f32.mrb[0].mxu0
    %v432 = vpop.f32.mrb[0].mxu0
    %v433 = vadd.f32 %v193, %v432
    %v434 = vpop.f32.mrb[0].mxu0
    %435 = vmatprep.mubr.bf16.mxu0 0
    %436 = vmatmul.mubr.bf16.gmra.mrb[0].mxu0 %v160
    %v437 = vpop.f32.mrb[0].mxu0
    %v438 = vadd.f32 %v193, %v437
    %v439 = vpop.f32.mrb[0].mxu0
    %v440 = vpop.f32.mrb[0].mxu0
    %v441 = vadd.f32 %v193, %v440
    %v442 = vpop.f32.mrb[0].mxu0
    %443 = vmatprep.mubr.bf16.mxu0 0
    %444 = vmatmul.mubr.bf16.gmra.mrb[0].mxu0 %v161
    %v445 = vpop.f32.mrb[0].mxu0
    %v446 = vadd.f32 %v193, %v445
    %v447 = vpop.f32.mrb[0].mxu0
    %v448 = vpop.f32.mrb[0].mxu0
    %v449 = vadd.f32 %v193, %v448
    %v450 = vpop.f32.mrb[0].mxu0
    %451 = vmatprep.mubr.bf16.mxu0 0
    %452 = vmatmul.mubr.bf16.gmra.mrb[0].mxu0 %v162
    %v453 = vpop.f32.mrb[0].mxu0
    %v454 = vadd.f32 %v193, %v453
    %v455 = vpop.f32.mrb[0].mxu0
    %v456 = vpop.f32.mrb[0].mxu0
    %v457 = vadd.f32 %v193, %v456
    %v458 = vpop.f32.mrb[0].mxu0
    %459 = vmatprep.mubr.bf16.mxu0 0
    %460 = vmatmul.mubr.bf16.gmra.mrb[0].mxu0 %v163
    %v461 = vpop.f32.mrb[0].mxu0
    %v462 = vadd.f32 %v193, %v461
    %v463 = vpop.f32.mrb[0].mxu0
    %v464 = vpop.f32.mrb[0].mxu0
    %v465 = vadd.f32 %v193, %v464
    %v466 = vpop.f32.mrb[0].mxu0
    %467 = vmatprep.mubr.bf16.mxu0 0
    %468 = vmatmul.mubr.bf16.gmra.mrb[0].mxu0 %v164
    %v469 = vpop.f32.mrb[0].mxu0
    %v470 = vadd.f32 %v193, %v469
    %v471 = vpop.f32.mrb[0].mxu0
    %v472 = vpop.f32.mrb[0].mxu0
    %v473 = vadd.f32 %v193, %v472
    %v474 = vpop.f32.mrb[0].mxu0
    %475 = vmatprep.mubr.bf16.mxu0 0
    %476 = vmatmul.mubr.bf16.gmra.mrb[0].mxu0 %v165
    %v477 = vpop.f32.mrb[0].mxu0
    %v478 = vadd.f32 %v193, %v477
    %v479 = vpop.f32.mrb[0].mxu0
    %v480 = vpop.f32.mrb[0].mxu0
    %v481 = vadd.f32 %v193, %v480
    %v482 = vpop.f32.mrb[0].mxu0
    %483 = vmatprep.mubr.bf16.mxu0 0
    %484 = vmatmul.mubr.bf16.gmra.mrb[0].mxu0 %v166
    %v485 = vpop.f32.mrb[0].mxu0
    %v486 = vadd.f32 %v193, %v485
    %v487 = vpop.f32.mrb[0].mxu0
    %v488 = vpop.f32.mrb[0].mxu0
    %v489 = vadd.f32 %v193, %v488
    %v490 = vpop.f32.mrb[0].mxu0
    %491 = vmatprep.mubr.bf16.mxu0 0
    %492 = vmatmul.mubr.bf16.gmra.mrb[0].mxu0 %v167
    %v493 = vpop.f32.mrb[0].mxu0
    %v494 = vadd.f32 %v193, %v493
    %v495 = vpop.f32.mrb[0].mxu0
    %v496 = vpop.f32.mrb[0].mxu0
    %v497 = vadd.f32 %v193, %v496
    %v498 = vpop.f32.mrb[0].mxu0
    %499 = vmatprep.mubr.bf16.mxu0 0
    %500 = vmatmul.mubr.bf16.gmra.mrb[0].mxu0 %v168
    %v501 = vpop.f32.mrb[0].mxu0
    %v502 = vadd.f32 %v193, %v501
    %v503 = vpop.f32.mrb[0].mxu0
    %v504 = vpop.f32.mrb[0].mxu0
    %v505 = vadd.f32 %v193, %v504
    %v506 = vpop.f32.mrb[0].mxu0
    %507 = vmatprep.mubr.bf16.mxu0 0
    %508 = vmatmul.mubr.bf16.gmra.mrb[0].mxu0 %v169
    %v509 = vpop.f32.mrb[0].mxu0
    %v510 = vadd.f32 %v193, %v509
    %v511 = vpop.f32.mrb[0].mxu0
    %v512 = vpop.f32.mrb[0].mxu0
    %v513 = vadd.f32 %v193, %v512
    %v514 = vpop.f32.mrb[0].mxu0
    %515 = vmatprep.mubr.bf16.mxu0 0
    %516 = vmatmul.mubr.bf16.gmra.mrb[0].mxu0 %v170
    %v517 = vpop.f32.mrb[0].mxu0
    %v518 = vadd.f32 %v193, %v517
    %v519 = vpop.f32.mrb[0].mxu0
    %v520 = vpop.f32.mrb[0].mxu0
    %v521 = vadd.f32 %v193, %v520
    %v522 = vpop.f32.mrb[0].mxu0
    %523 = vmatprep.mubr.bf16.mxu0 0
    %524 = vmatmul.mubr.bf16.gmra.mrb[0].mxu0 %v171
    %v525 = vpop.f32.mrb[0].mxu0
    %v526 = vadd.f32 %v193, %v525
    %v527 = vpop.f32.mrb[0].mxu0
    %v528 = vpop.f32.mrb[0].mxu0
    %v529 = vadd.f32 %v193, %v528
    %v530 = vpop.f32.mrb[0].mxu0
    %531 = vdwg.mxu0
    %v532 = vmul.f32 %v278, %v278
    %v533 = vmul.f32 %v281, %v281
    %v534 = vmul.f32 %v286, %v286
    %v535 = vmul.f32 %v289, %v289
    %v536 = vmul.f32 %v294, %v294
    %v537 = vmul.f32 %v297, %v297
    %v538 = vmul.f32 %v302, %v302
    %v539 = vmul.f32 %v305, %v305
    %v540 = vmul.f32 %v310, %v310
    %v541 = vmul.f32 %v313, %v313
    %v542 = vmul.f32 %v318, %v318
    %v543 = vmul.f32 %v321, %v321
    %v544 = vmul.f32 %v326, %v326
    %v545 = vmul.f32 %v329, %v329
    %v546 = vmul.f32 %v334, %v334
    %v547 = vmul.f32 %v337, %v337
    %v548 = vmul.f32 %v342, %v342
    %v549 = vmul.f32 %v345, %v345
    %v550 = vmul.f32 %v350, %v350
    %v551 = vmul.f32 %v353, %v353
    %v552 = vmul.f32 %v358, %v358
    %v553 = vmul.f32 %v361, %v361
    %v554 = vmul.f32 %v366, %v366
    %v555 = vmul.f32 %v369, %v369
    %v556 = vmul.f32 %v374, %v374
    %v557 = vmul.f32 %v377, %v377
    %v558 = vmul.f32 %v382, %v382
    %v559 = vmul.f32 %v385, %v385
    %v560 = vmul.f32 %v390, %v390
    %v561 = vmul.f32 %v393, %v393
    %v562 = vmul.f32 %v398, %v398
    %v563 = vmul.f32 %v401, %v401
    %v564 = vmul.f32 %v406, %v406
    %v565 = vmul.f32 %v409, %v409
    %v566 = vmul.f32 %v414, %v414
    %v567 = vmul.f32 %v417, %v417
    %v568 = vmul.f32 %v422, %v422
    %v569 = vmul.f32 %v425, %v425
    %v570 = vmul.f32 %v430, %v430
    %v571 = vmul.f32 %v433, %v433
    %v572 = vmul.f32 %v438, %v438
    %v573 = vmul.f32 %v441, %v441
    %v574 = vmul.f32 %v446, %v446
    %v575 = vmul.f32 %v449, %v449
    %v576 = vmul.f32 %v454, %v454
    %v577 = vmul.f32 %v457, %v457
    %v578 = vmul.f32 %v462, %v462
    %v579 = vmul.f32 %v465, %v465
    %v580 = vmul.f32 %v470, %v470
    %v581 = vmul.f32 %v473, %v473
    %v582 = vmul.f32 %v478, %v478
    %v583 = vmul.f32 %v481, %v481
    %v584 = vmul.f32 %v486, %v486
    %v585 = vmul.f32 %v489, %v489
    %v586 = vmul.f32 %v494, %v494
    %v587 = vmul.f32 %v497, %v497
    %v588 = vmul.f32 %v502, %v502
    %v589 = vmul.f32 %v505, %v505
    %v590 = vmul.f32 %v510, %v510
    %v591 = vmul.f32 %v513, %v513
    %v592 = vmul.f32 %v518, %v518
    %v593 = vmul.f32 %v521, %v521
    %v594 = vmul.f32 %v526, %v526
    %v595 = vmul.f32 %v529, %v529
    %v596 = vmul.f32 %v278, %v532
    %v597 = vmul.f32 %v281, %v533
    %v598 = vmul.f32 %v286, %v534
    %v599 = vmul.f32 %v289, %v535
    %v600 = vmul.f32 %v294, %v536
    %v601 = vmul.f32 %v297, %v537
    %v602 = vmul.f32 %v302, %v538
    %v603 = vmul.f32 %v305, %v539
    %v604 = vmul.f32 %v310, %v540
    %v605 = vmul.f32 %v313, %v541
    %v606 = vmul.f32 %v318, %v542
    %v607 = vmul.f32 %v321, %v543
    %v608 = vmul.f32 %v326, %v544
    %v609 = vmul.f32 %v329, %v545
    %v610 = vmul.f32 %v334, %v546
    %v611 = vmul.f32 %v337, %v547
    %v612 = vmul.f32 %v342, %v548
    %v613 = vmul.f32 %v345, %v549
    %v614 = vmul.f32 %v350, %v550
    %v615 = vmul.f32 %v353, %v551
    %v616 = vmul.f32 %v358, %v552
    %v617 = vmul.f32 %v361, %v553
    %v618 = vmul.f32 %v366, %v554
    %v619 = vmul.f32 %v369, %v555
    %v620 = vmul.f32 %v374, %v556
    %v621 = vmul.f32 %v377, %v557
    %v622 = vmul.f32 %v382, %v558
    %v623 = vmul.f32 %v385, %v559
    %v624 = vmul.f32 %v390, %v560
    %v625 = vmul.f32 %v393, %v561
    %v626 = vmul.f32 %v398, %v562
    %v627 = vmul.f32 %v401, %v563
    %v628 = vmul.f32 %v406, %v564
    %v629 = vmul.f32 %v409, %v565
    %v630 = vmul.f32 %v414, %v566
    %v631 = vmul.f32 %v417, %v567
    %v632 = vmul.f32 %v422, %v568
    %v633 = vmul.f32 %v425, %v569
    %v634 = vmul.f32 %v430, %v570
    %v635 = vmul.f32 %v433, %v571
    %v636 = vmul.f32 %v438, %v572
    %v637 = vmul.f32 %v441, %v573
    %v638 = vmul.f32 %v446, %v574
    %v639 = vmul.f32 %v449, %v575
    %v640 = vmul.f32 %v454, %v576
    %v641 = vmul.f32 %v457, %v577
    %v642 = vmul.f32 %v462, %v578
    %v643 = vmul.f32 %v465, %v579
    %v644 = vmul.f32 %v470, %v580
    %v645 = vmul.f32 %v473, %v581
    %v646 = vmul.f32 %v478, %v582
    %v647 = vmul.f32 %v481, %v583
    %v648 = vmul.f32 %v486, %v584
    %v649 = vmul.f32 %v489, %v585
    %v650 = vmul.f32 %v494, %v586
    %v651 = vmul.f32 %v497, %v587
    %v652 = vmul.f32 %v502, %v588
    %v653 = vmul.f32 %v505, %v589
    %v654 = vmul.f32 %v510, %v590
    %v655 = vmul.f32 %v513, %v591
    %v656 = vmul.f32 %v518, %v592
    %v657 = vmul.f32 %v521, %v593
    %v658 = vmul.f32 %v526, %v594
    %v659 = vmul.f32 %v529, %v595
    %v660 = vmul.f32 %v596, 0.044715
    %v661 = vmul.f32 %v597, 0.044715
    %v662 = vmul.f32 %v598, 0.044715
    %v663 = vmul.f32 %v599, 0.044715
    %v664 = vmul.f32 %v600, 0.044715
    %v665 = vmul.f32 %v601, 0.044715
    %v666 = vmul.f32 %v602, 0.044715
    %v667 = vmul.f32 %v603, 0.044715
    %v668 = vmul.f32 %v604, 0.044715
    %v669 = vmul.f32 %v605, 0.044715
    %v670 = vmul.f32 %v606, 0.044715
    %v671 = vmul.f32 %v607, 0.044715
    %v672 = vmul.f32 %v608, 0.044715
    %v673 = vmul.f32 %v609, 0.044715
    %v674 = vmul.f32 %v610, 0.044715
    %v675 = vmul.f32 %v611, 0.044715
    %v676 = vmul.f32 %v612, 0.044715
    %v677 = vmul.f32 %v613, 0.044715
    %v678 = vmul.f32 %v614, 0.044715
    %v679 = vmul.f32 %v615, 0.044715
    %v680 = vmul.f32 %v616, 0.044715
    %v681 = vmul.f32 %v617, 0.044715
    %v682 = vmul.f32 %v618, 0.044715
    %v683 = vmul.f32 %v619, 0.044715
    %v684 = vmul.f32 %v620, 0.044715
    %v685 = vmul.f32 %v621, 0.044715
    %v686 = vmul.f32 %v622, 0.044715
    %v687 = vmul.f32 %v623, 0.044715
    %v688 = vmul.f32 %v624, 0.044715
    %v689 = vmul.f32 %v625, 0.044715
    %v690 = vmul.f32 %v626, 0.044715
    %v691 = vmul.f32 %v627, 0.044715
    %v692 = vmul.f32 %v628, 0.044715
    %v693 = vmul.f32 %v629, 0.044715
    %v694 = vmul.f32 %v630, 0.044715
    %v695 = vmul.f32 %v631, 0.044715
    %v696 = vmul.f32 %v632, 0.044715
    %v697 = vmul.f32 %v633, 0.044715
    %v698 = vmul.f32 %v634, 0.044715
    %v699 = vmul.f32 %v635, 0.044715
    %v700 = vmul.f32 %v636, 0.044715
    %v701 = vmul.f32 %v637, 0.044715
    %v702 = vmul.f32 %v638, 0.044715
    %v703 = vmul.f32 %v639, 0.044715
    %v704 = vmul.f32 %v640, 0.044715
    %v705 = vmul.f32 %v641, 0.044715
    %v706 = vmul.f32 %v642, 0.044715
    %v707 = vmul.f32 %v643, 0.044715
    %v708 = vmul.f32 %v644, 0.044715
    %v709 = vmul.f32 %v645, 0.044715
    %v710 = vmul.f32 %v646, 0.044715
    %v711 = vmul.f32 %v647, 0.044715
    %v712 = vmul.f32 %v648, 0.044715
    %v713 = vmul.f32 %v649, 0.044715
    %v714 = vmul.f32 %v650, 0.044715
    %v715 = vmul.f32 %v651, 0.044715
    %v716 = vmul.f32 %v652, 0.044715
    %v717 = vmul.f32 %v653, 0.044715
    %v718 = vmul.f32 %v654, 0.044715
    %v719 = vmul.f32 %v655, 0.044715
    %v720 = vmul.f32 %v656, 0.044715
    %v721 = vmul.f32 %v657, 0.044715
    %v722 = vmul.f32 %v658, 0.044715
    %v723 = vmul.f32 %v659, 0.044715
    %v724 = vadd.f32 %v278, %v660
    %v725 = vadd.f32 %v281, %v661
    %v726 = vadd.f32 %v286, %v662
    %v727 = vadd.f32 %v289, %v663
    %v728 = vadd.f32 %v294, %v664
    %v729 = vadd.f32 %v297, %v665
    %v730 = vadd.f32 %v302, %v666
    %v731 = vadd.f32 %v305, %v667
    %v732 = vadd.f32 %v310, %v668
    %v733 = vadd.f32 %v313, %v669
    %v734 = vadd.f32 %v318, %v670
    %v735 = vadd.f32 %v321, %v671
    %v736 = vadd.f32 %v326, %v672
    %v737 = vadd.f32 %v329, %v673
    %v738 = vadd.f32 %v334, %v674
    %v739 = vadd.f32 %v337, %v675
    %v740 = vadd.f32 %v342, %v676
    %v741 = vadd.f32 %v345, %v677
    %v742 = vadd.f32 %v350, %v678
    %v743 = vadd.f32 %v353, %v679
    %v744 = vadd.f32 %v358, %v680
    %v745 = vadd.f32 %v361, %v681
    %v746 = vadd.f32 %v366, %v682
    %v747 = vadd.f32 %v369, %v683
    %v748 = vadd.f32 %v374, %v684
    %v749 = vadd.f32 %v377, %v685
    %v750 = vadd.f32 %v382, %v686
    %v751 = vadd.f32 %v385, %v687
    %v752 = vadd.f32 %v390, %v688
    %v753 = vadd.f32 %v393, %v689
    %v754 = vadd.f32 %v398, %v690
    %v755 = vadd.f32 %v401, %v691
    %v756 = vadd.f32 %v406, %v692
    %v757 = vadd.f32 %v409, %v693
    %v758 = vadd.f32 %v414, %v694
    %v759 = vadd.f32 %v417, %v695
    %v760 = vadd.f32 %v422, %v696
    %v761 = vadd.f32 %v425, %v697
    %v762 = vadd.f32 %v430, %v698
    %v763 = vadd.f32 %v433, %v699
    %v764 = vadd.f32 %v438, %v700
    %v765 = vadd.f32 %v441, %v701
    %v766 = vadd.f32 %v446, %v702
    %v767 = vadd.f32 %v449, %v703
    %v768 = vadd.f32 %v454, %v704
    %v769 = vadd.f32 %v457, %v705
    %v770 = vadd.f32 %v462, %v706
    %v771 = vadd.f32 %v465, %v707
    %v772 = vadd.f32 %v470, %v708
    %v773 = vadd.f32 %v473, %v709
    %v774 = vadd.f32 %v478, %v710
    %v775 = vadd.f32 %v481, %v711
    %v776 = vadd.f32 %v486, %v712
    %v777 = vadd.f32 %v489, %v713
    %v778 = vadd.f32 %v494, %v714
    %v779 = vadd.f32 %v497, %v715
    %v780 = vadd.f32 %v502, %v716
    %v781 = vadd.f32 %v505, %v717
    %v782 = vadd.f32 %v510, %v718
    %v783 = vadd.f32 %v513, %v719
    %v784 = vadd.f32 %v518, %v720
    %v785 = vadd.f32 %v521, %v721
    %v786 = vadd.f32 %v526, %v722
    %v787 = vadd.f32 %v529, %v723
    %v788 = vmul.f32 %v724, 0.7978846
    %v789 = vmul.f32 %v725, 0.7978846
    %v790 = vmul.f32 %v726, 0.7978846
    %v791 = vmul.f32 %v727, 0.7978846
    %v792 = vmul.f32 %v728, 0.7978846
    %v793 = vmul.f32 %v729, 0.7978846
    %v794 = vmul.f32 %v730, 0.7978846
    %v795 = vmul.f32 %v731, 0.7978846
    %v796 = vmul.f32 %v732, 0.7978846
    %v797 = vmul.f32 %v733, 0.7978846
    %v798 = vmul.f32 %v734, 0.7978846
    %v799 = vmul.f32 %v735, 0.7978846
    %v800 = vmul.f32 %v736, 0.7978846
    %v801 = vmul.f32 %v737, 0.7978846
    %v802 = vmul.f32 %v738, 0.7978846
    %v803 = vmul.f32 %v739, 0.7978846
    %v804 = vmul.f32 %v740, 0.7978846
    %v805 = vmul.f32 %v741, 0.7978846
    %v806 = vmul.f32 %v742, 0.7978846
    %v807 = vmul.f32 %v743, 0.7978846
    %v808 = vmul.f32 %v744, 0.7978846
    %v809 = vmul.f32 %v745, 0.7978846
    %v810 = vmul.f32 %v746, 0.7978846
    %v811 = vmul.f32 %v747, 0.7978846
    %v812 = vmul.f32 %v748, 0.7978846
    %v813 = vmul.f32 %v749, 0.7978846
    %v814 = vmul.f32 %v750, 0.7978846
    %v815 = vmul.f32 %v751, 0.7978846
    %v816 = vmul.f32 %v752, 0.7978846
    %v817 = vmul.f32 %v753, 0.7978846
    %v818 = vmul.f32 %v754, 0.7978846
    %v819 = vmul.f32 %v755, 0.7978846
    %v820 = vmul.f32 %v756, 0.7978846
    %v821 = vmul.f32 %v757, 0.7978846
    %v822 = vmul.f32 %v758, 0.7978846
    %v823 = vmul.f32 %v759, 0.7978846
    %v824 = vmul.f32 %v760, 0.7978846
    %v825 = vmul.f32 %v761, 0.7978846
    %v826 = vmul.f32 %v762, 0.7978846
    %v827 = vmul.f32 %v763, 0.7978846
    %v828 = vmul.f32 %v764, 0.7978846
    %v829 = vmul.f32 %v765, 0.7978846
    %v830 = vmul.f32 %v766, 0.7978846
    %v831 = vmul.f32 %v767, 0.7978846
    %v832 = vmul.f32 %v768, 0.7978846
    %v833 = vmul.f32 %v769, 0.7978846
    %v834 = vmul.f32 %v770, 0.7978846
    %v835 = vmul.f32 %v771, 0.7978846
    %v836 = vmul.f32 %v772, 0.7978846
    %v837 = vmul.f32 %v773, 0.7978846
    %v838 = vmul.f32 %v774, 0.7978846
    %v839 = vmul.f32 %v775, 0.7978846
    %v840 = vmul.f32 %v776, 0.7978846
    %v841 = vmul.f32 %v777, 0.7978846
    %v842 = vmul.f32 %v778, 0.7978846
    %v843 = vmul.f32 %v779, 0.7978846
    %v844 = vmul.f32 %v780, 0.7978846
    %v845 = vmul.f32 %v781, 0.7978846
    %v846 = vmul.f32 %v782, 0.7978846
    %v847 = vmul.f32 %v783, 0.7978846
    %v848 = vmul.f32 %v784, 0.7978846
    %v849 = vmul.f32 %v785, 0.7978846
    %v850 = vmul.f32 %v786, 0.7978846
    %v851 = vmul.f32 %v787, 0.7978846
    %v852 = vtanh.pop %v788
    %v853 = vtanh.pop %v789
    %v854 = vtanh.pop %v790
    %v855 = vtanh.pop %v791
    %v856 = vtanh.pop %v792
    %v857 = vtanh.pop %v793
    %v858 = vtanh.pop %v794
    %v859 = vtanh.pop %v795
    %v860 = vtanh.pop %v796
    %v861 = vtanh.pop %v797
    %v862 = vtanh.pop %v798
    %v863 = vtanh.pop %v799
    %v864 = vtanh.pop %v800
    %v865 = vtanh.pop %v801
    %v866 = vtanh.pop %v802
    %v867 = vtanh.pop %v803
    %v868 = vtanh.pop %v804
    %v869 = vtanh.pop %v805
    %v870 = vtanh.pop %v806
    %v871 = vtanh.pop %v807
    %v872 = vtanh.pop %v808
    %v873 = vtanh.pop %v809
    %v874 = vtanh.pop %v810
    %v875 = vtanh.pop %v811
    %v876 = vtanh.pop %v812
    %v877 = vtanh.pop %v813
    %v878 = vtanh.pop %v814
    %v879 = vtanh.pop %v815
    %v880 = vtanh.pop %v816
    %v881 = vtanh.pop %v817
    %v882 = vtanh.pop %v818
    %v883 = vtanh.pop %v819
    %v884 = vtanh.pop %v820
    %v885 = vtanh.pop %v821
    %v886 = vtanh.pop %v822
    %v887 = vtanh.pop %v823
    %v888 = vtanh.pop %v824
    %v889 = vtanh.pop %v825
    %v890 = vtanh.pop %v826
    %v891 = vtanh.pop %v827
    %v892 = vtanh.pop %v828
    %v893 = vtanh.pop %v829
    %v894 = vtanh.pop %v830
    %v895 = vtanh.pop %v831
    %v896 = vtanh.pop %v832
    %v897 = vtanh.pop %v833
    %v898 = vtanh.pop %v834
    %v899 = vtanh.pop %v835
    %v900 = vtanh.pop %v836
    %v901 = vtanh.pop %v837
    %v902 = vtanh.pop %v838
    %v903 = vtanh.pop %v839
    %v904 = vtanh.pop %v840
    %v905 = vtanh.pop %v841
    %v906 = vtanh.pop %v842
    %v907 = vtanh.pop %v843
    %v908 = vtanh.pop %v844
    %v909 = vtanh.pop %v845
    %v910 = vtanh.pop %v846
    %v911 = vtanh.pop %v847
    %v912 = vtanh.pop %v848
    %v913 = vtanh.pop %v849
    %v914 = vtanh.pop %v850
    %v915 = vtanh.pop %v851
    %v916 = vadd.f32 %v852, 1.0
    %v917 = vadd.f32 %v853, 1.0
    %v918 = vadd.f32 %v854, 1.0
    %v919 = vadd.f32 %v855, 1.0
    %v920 = vadd.f32 %v856, 1.0
    %v921 = vadd.f32 %v857, 1.0
    %v922 = vadd.f32 %v858, 1.0
    %v923 = vadd.f32 %v859, 1.0
    %v924 = vadd.f32 %v860, 1.0
    %v925 = vadd.f32 %v861, 1.0
    %v926 = vadd.f32 %v862, 1.0
    %v927 = vadd.f32 %v863, 1.0
    %v928 = vadd.f32 %v864, 1.0
    %v929 = vadd.f32 %v865, 1.0
    %v930 = vadd.f32 %v866, 1.0
    %v931 = vadd.f32 %v867, 1.0
    %v932 = vadd.f32 %v868, 1.0
    %v933 = vadd.f32 %v869, 1.0
    %v934 = vadd.f32 %v870, 1.0
    %v935 = vadd.f32 %v871, 1.0
    %v936 = vadd.f32 %v872, 1.0
    %v937 = vadd.f32 %v873, 1.0
    %v938 = vadd.f32 %v874, 1.0
    %v939 = vadd.f32 %v875, 1.0
    %v940 = vadd.f32 %v876, 1.0
    %v941 = vadd.f32 %v877, 1.0
    %v942 = vadd.f32 %v878, 1.0
    %v943 = vadd.f32 %v879, 1.0
    %v944 = vadd.f32 %v880, 1.0
    %v945 = vadd.f32 %v881, 1.0
    %v946 = vadd.f32 %v882, 1.0
    %v947 = vadd.f32 %v883, 1.0
    %v948 = vadd.f32 %v884, 1.0
    %v949 = vadd.f32 %v885, 1.0
    %v950 = vadd.f32 %v886, 1.0
    %v951 = vadd.f32 %v887, 1.0
    %v952 = vadd.f32 %v888, 1.0
    %v953 = vadd.f32 %v889, 1.0
    %v954 = vadd.f32 %v890, 1.0
    %v955 = vadd.f32 %v891, 1.0
    %v956 = vadd.f32 %v892, 1.0
    %v957 = vadd.f32 %v893, 1.0
    %v958 = vadd.f32 %v894, 1.0
    %v959 = vadd.f32 %v895, 1.0
    %v960 = vadd.f32 %v896, 1.0
    %v961 = vadd.f32 %v897, 1.0
    %v962 = vadd.f32 %v898, 1.0
    %v963 = vadd.f32 %v899, 1.0
    %v964 = vadd.f32 %v900, 1.0
    %v965 = vadd.f32 %v901, 1.0
    %v966 = vadd.f32 %v902, 1.0
    %v967 = vadd.f32 %v903, 1.0
    %v968 = vadd.f32 %v904, 1.0
    %v969 = vadd.f32 %v905, 1.0
    %v970 = vadd.f32 %v906, 1.0
    %v971 = vadd.f32 %v907, 1.0
    %v972 = vadd.f32 %v908, 1.0
    %v973 = vadd.f32 %v909, 1.0
    %v974 = vadd.f32 %v910, 1.0
    %v975 = vadd.f32 %v911, 1.0
    %v976 = vadd.f32 %v912, 1.0
    %v977 = vadd.f32 %v913, 1.0
    %v978 = vadd.f32 %v914, 1.0
    %v979 = vadd.f32 %v915, 1.0
    %v980 = vmul.f32 %v916, 0.5
    %v981 = vmul.f32 %v917, 0.5
    %v982 = vmul.f32 %v918, 0.5
    %v983 = vmul.f32 %v919, 0.5
    %v984 = vmul.f32 %v920, 0.5
    %v985 = vmul.f32 %v921, 0.5
    %v986 = vmul.f32 %v922, 0.5
    %v987 = vmul.f32 %v923, 0.5
    %v988 = vmul.f32 %v924, 0.5
    %v989 = vmul.f32 %v925, 0.5
    %v990 = vmul.f32 %v926, 0.5
    %v991 = vmul.f32 %v927, 0.5
    %v992 = vmul.f32 %v928, 0.5
    %v993 = vmul.f32 %v929, 0.5
    %v994 = vmul.f32 %v930, 0.5
    %v995 = vmul.f32 %v931, 0.5
    %v996 = vmul.f32 %v932, 0.5
    %v997 = vmul.f32 %v933, 0.5
    %v998 = vmul.f32 %v934, 0.5
    %v999 = vmul.f32 %v935, 0.5
    %v1000 = vmul.f32 %v936, 0.5
    %v1001 = vmul.f32 %v937, 0.5
    %v1002 = vmul.f32 %v938, 0.5
    %v1003 = vmul.f32 %v939, 0.5
    %v1004 = vmul.f32 %v940, 0.5
    %v1005 = vmul.f32 %v941, 0.5
    %v1006 = vmul.f32 %v942, 0.5
    %v1007 = vmul.f32 %v943, 0.5
    %v1008 = vmul.f32 %v944, 0.5
    %v1009 = vmul.f32 %v945, 0.5
    %v1010 = vmul.f32 %v946, 0.5
    %v1011 = vmul.f32 %v947, 0.5
    %v1012 = vmul.f32 %v948, 0.5
    %v1013 = vmul.f32 %v949, 0.5
    %v1014 = vmul.f32 %v950, 0.5
    %v1015 = vmul.f32 %v951, 0.5
    %v1016 = vmul.f32 %v952, 0.5
    %v1017 = vmul.f32 %v953, 0.5
    %v1018 = vmul.f32 %v954, 0.5
    %v1019 = vmul.f32 %v955, 0.5
    %v1020 = vmul.f32 %v956, 0.5
    %v1021 = vmul.f32 %v957, 0.5
    %v1022 = vmul.f32 %v958, 0.5
    %v1023 = vmul.f32 %v959, 0.5
    %v1024 = vmul.f32 %v960, 0.5
    %v1025 = vmul.f32 %v961, 0.5
    %v1026 = vmul.f32 %v962, 0.5
    %v1027 = vmul.f32 %v963, 0.5
    %v1028 = vmul.f32 %v964, 0.5
    %v1029 = vmul.f32 %v965, 0.5
    %v1030 = vmul.f32 %v966, 0.5
    %v1031 = vmul.f32 %v967, 0.5
    %v1032 = vmul.f32 %v968, 0.5
    %v1033 = vmul.f32 %v969, 0.5
    %v1034 = vmul.f32 %v970, 0.5
    %v1035 = vmul.f32 %v971, 0.5
    %v1036 = vmul.f32 %v972, 0.5
    %v1037 = vmul.f32 %v973, 0.5
    %v1038 = vmul.f32 %v974, 0.5
    %v1039 = vmul.f32 %v975, 0.5
    %v1040 = vmul.f32 %v976, 0.5
    %v1041 = vmul.f32 %v977, 0.5
    %v1042 = vmul.f32 %v978, 0.5
    %v1043 = vmul.f32 %v979, 0.5
    %v1044 = vmul.f32 %v278, %v980
    %v1045 = vmul.f32 %v281, %v981
    %v1046 = vmul.f32 %v286, %v982
    %v1047 = vmul.f32 %v289, %v983
    %v1048 = vmul.f32 %v294, %v984
    %v1049 = vmul.f32 %v297, %v985
    %v1050 = vmul.f32 %v302, %v986
    %v1051 = vmul.f32 %v305, %v987
    %v1052 = vmul.f32 %v310, %v988
    %v1053 = vmul.f32 %v313, %v989
    %v1054 = vmul.f32 %v318, %v990
    %v1055 = vmul.f32 %v321, %v991
    %v1056 = vmul.f32 %v326, %v992
    %v1057 = vmul.f32 %v329, %v993
    %v1058 = vmul.f32 %v334, %v994
    %v1059 = vmul.f32 %v337, %v995
    %v1060 = vmul.f32 %v342, %v996
    %v1061 = vmul.f32 %v345, %v997
    %v1062 = vmul.f32 %v350, %v998
    %v1063 = vmul.f32 %v353, %v999
    %v1064 = vmul.f32 %v358, %v1000
    %v1065 = vmul.f32 %v361, %v1001
    %v1066 = vmul.f32 %v366, %v1002
    %v1067 = vmul.f32 %v369, %v1003
    %v1068 = vmul.f32 %v374, %v1004
    %v1069 = vmul.f32 %v377, %v1005
    %v1070 = vmul.f32 %v382, %v1006
    %v1071 = vmul.f32 %v385, %v1007
    %v1072 = vmul.f32 %v390, %v1008
    %v1073 = vmul.f32 %v393, %v1009
    %v1074 = vmul.f32 %v398, %v1010
    %v1075 = vmul.f32 %v401, %v1011
    %v1076 = vmul.f32 %v406, %v1012
    %v1077 = vmul.f32 %v409, %v1013
    %v1078 = vmul.f32 %v414, %v1014
    %v1079 = vmul.f32 %v417, %v1015
    %v1080 = vmul.f32 %v422, %v1016
    %v1081 = vmul.f32 %v425, %v1017
    %v1082 = vmul.f32 %v430, %v1018
    %v1083 = vmul.f32 %v433, %v1019
    %v1084 = vmul.f32 %v438, %v1020
    %v1085 = vmul.f32 %v441, %v1021
    %v1086 = vmul.f32 %v446, %v1022
    %v1087 = vmul.f32 %v449, %v1023
    %v1088 = vmul.f32 %v454, %v1024
    %v1089 = vmul.f32 %v457, %v1025
    %v1090 = vmul.f32 %v462, %v1026
    %v1091 = vmul.f32 %v465, %v1027
    %v1092 = vmul.f32 %v470, %v1028
    %v1093 = vmul.f32 %v473, %v1029
    %v1094 = vmul.f32 %v478, %v1030
    %v1095 = vmul.f32 %v481, %v1031
    %v1096 = vmul.f32 %v486, %v1032
    %v1097 = vmul.f32 %v489, %v1033
    %v1098 = vmul.f32 %v494, %v1034
    %v1099 = vmul.f32 %v497, %v1035
    %v1100 = vmul.f32 %v502, %v1036
    %v1101 = vmul.f32 %v505, %v1037
    %v1102 = vmul.f32 %v510, %v1038
    %v1103 = vmul.f32 %v513, %v1039
    %v1104 = vmul.f32 %v518, %v1040
    %v1105 = vmul.f32 %v521, %v1041
    %v1106 = vmul.f32 %v526, %v1042
    %v1107 = vmul.f32 %v529, %v1043
    %v1108 = vpack.c.bf16 %v1045, %v1044
    %v1109 = vpack.c.bf16 %v1047, %v1046
    %v1110 = vpack.c.bf16 %v1049, %v1048
    %v1111 = vpack.c.bf16 %v1051, %v1050
    %v1112 = vpack.c.bf16 %v1053, %v1052
    %v1113 = vpack.c.bf16 %v1055, %v1054
    %v1114 = vpack.c.bf16 %v1057, %v1056
    %v1115 = vpack.c.bf16 %v1059, %v1058
    %v1116 = vpack.c.bf16 %v1061, %v1060
    %v1117 = vpack.c.bf16 %v1063, %v1062
    %v1118 = vpack.c.bf16 %v1065, %v1064
    %v1119 = vpack.c.bf16 %v1067, %v1066
    %v1120 = vpack.c.bf16 %v1069, %v1068
    %v1121 = vpack.c.bf16 %v1071, %v1070
    %v1122 = vpack.c.bf16 %v1073, %v1072
    %v1123 = vpack.c.bf16 %v1075, %v1074
    %v1124 = vpack.c.bf16 %v1077, %v1076
    %v1125 = vpack.c.bf16 %v1079, %v1078
    %v1126 = vpack.c.bf16 %v1081, %v1080
    %v1127 = vpack.c.bf16 %v1083, %v1082
    %v1128 = vpack.c.bf16 %v1085, %v1084
    %v1129 = vpack.c.bf16 %v1087, %v1086
    %v1130 = vpack.c.bf16 %v1089, %v1088
    %v1131 = vpack.c.bf16 %v1091, %v1090
    %v1132 = vpack.c.bf16 %v1093, %v1092
    %v1133 = vpack.c.bf16 %v1095, %v1094
    %v1134 = vpack.c.bf16 %v1097, %v1096
    %v1135 = vpack.c.bf16 %v1099, %v1098
    %v1136 = vpack.c.bf16 %v1101, %v1100
    %v1137 = vpack.c.bf16 %v1103, %v1102
    %v1138 = vpack.c.bf16 %v1105, %v1104
    %v1139 = vpack.c.bf16 %v1107, %v1106
    %v1140 = vld [vmem:[#allocation7] sm:$0xf]
    %v1141 = vld [vmem:[#allocation7 + $0x4] sm:$0xf]
    %v1142 = vld [vmem:[#allocation7 + $0x8] sm:$0xf]
    %v1143 = vld [vmem:[#allocation7 + $0xc] sm:$0xf]
    %v1144 = vld [vmem:[#allocation7 + $0x10] sm:$0xf]
    %v1145 = vld [vmem:[#allocation7 + $0x14] sm:$0xf]
    %v1146 = vld [vmem:[#allocation7 + $0x18] sm:$0xf]
    %v1147 = vld [vmem:[#allocation7 + $0x1c] sm:$0xf]
    %v1148 = vld [vmem:[#allocation7 + $0x20] sm:$0xf]
    %v1149 = vld [vmem:[#allocation7 + $0x24] sm:$0xf]
    %v1150 = vld [vmem:[#allocation7 + $0x28] sm:$0xf]
    %v1151 = vld [vmem:[#allocation7 + $0x2c] sm:$0xf]
    %v1152 = vld [vmem:[#allocation7 + $0x30] sm:$0xf]
    %v1153 = vld [vmem:[#allocation7 + $0x34] sm:$0xf]
    %v1154 = vld [vmem:[#allocation7 + $0x38] sm:$0xf]
    %v1155 = vld [vmem:[#allocation7 + $0x3c] sm:$0xf]
    %v1156 = vld [vmem:[%s4] sm:$0x1]
    %v1158 = vlaneseq
    %v1159 = vshrl.u32 %v1158, 7
    %v1160 = vsub.s32 0, %v1159
    %v1161 = vrot.slane %v1156, %v1160
    %v1179 = vunpack.c.l.b16 %v1140
    %v1180 = vunpack.c.l.b16 %v1141
    %v1181 = vunpack.c.l.b16 %v1142
    %v1182 = vunpack.c.l.b16 %v1143
    %v1183 = vunpack.c.l.b16 %v1144
    %v1184 = vunpack.c.l.b16 %v1145
    %v1185 = vunpack.c.l.b16 %v1146
    %v1186 = vunpack.c.l.b16 %v1147
    %v1187 = vunpack.c.l.b16 %v1148
    %v1188 = vunpack.c.l.b16 %v1149
    %v1189 = vunpack.c.l.b16 %v1150
    %v1190 = vunpack.c.l.b16 %v1151
    %v1191 = vunpack.c.l.b16 %v1152
    %v1192 = vunpack.c.l.b16 %v1153
    %v1193 = vunpack.c.l.b16 %v1154
    %v1194 = vunpack.c.l.b16 %v1155
    %v1195 = vpack.c.b16 %v1180, %v1179
    %v1196 = vpack.c.b16 %v1182, %v1181
    %v1197 = vpack.c.b16 %v1184, %v1183
    %v1198 = vpack.c.b16 %v1186, %v1185
    %v1199 = vpack.c.b16 %v1188, %v1187
    %v1200 = vpack.c.b16 %v1190, %v1189
    %v1201 = vpack.c.b16 %v1192, %v1191
    %v1202 = vpack.c.b16 %v1194, %v1193
    %1211 = vmatprep.subr.bf16.mxu0 0
    %1212 = vmatpush1.bf16.msra.mxu0 %v1195
    %1213 = vmatprep.subr.bf16.mxu0 0
    %1214 = vmatpush1.bf16.msra.mxu0 %v1196
    %1215 = vmatprep.subr.bf16.mxu0 0
    %1216 = vmatpush1.bf16.msra.mxu0 %v1197
    %1217 = vmatprep.subr.bf16.mxu0 0
    %1218 = vmatpush1.bf16.msra.mxu0 %v1198
    %1219 = vmatprep.subr.bf16.mxu0 0
    %1220 = vmatpush1.bf16.msra.mxu0 %v1199
    %1221 = vmatprep.subr.bf16.mxu0 0
    %1222 = vmatpush1.bf16.msra.mxu0 %v1200
    %1223 = vmatprep.subr.bf16.mxu0 0
    %1224 = vmatpush1.bf16.msra.mxu0 %v1201
    %1225 = vmatprep.subr.bf16.mxu0 0
    %1226 = vmatpush1.bf16.msra.mxu0 %v1202
    %1227 = vmatprep.subr.bf16.mxu0 0
    %1228 = vmatpush1.bf16.msra.mxu0 0
    %1229 = vmatprep.subr.bf16.mxu0 0
    %1230 = vmatpush1.bf16.msra.mxu0 0
    %1231 = vmatprep.subr.bf16.mxu0 0
    %1232 = vmatpush1.bf16.msra.mxu0 0
    %1233 = vmatprep.subr.bf16.mxu0 0
    %1234 = vmatpush1.bf16.msra.mxu0 0
    %1235 = vmatprep.subr.bf16.mxu0 0
    %1236 = vmatpush1.bf16.msra.mxu0 0
    %1237 = vmatprep.subr.bf16.mxu0 0
    %1238 = vmatpush1.bf16.msra.mxu0 0
    %1239 = vmatprep.subr.bf16.mxu0 0
    %1240 = vmatpush1.bf16.msra.mxu0 0
    %1241 = vmatprep.subr.bf16.mxu0 0
    %1242 = vmatpush1.bf16.msra.mxu0 0
    %1243 = vmatprep.mubr.bf16.mxu0 0
    %1244 = vmatmul.mubr.bf16.gmra.mrb[0].mxu0 %v1108
    %v1245 = vpop.f32.mrb[0].mxu0
    %v1246 = vadd.f32 %v1161, %v1245
    %v1247 = vpop.f32.mrb[0].mxu0
    %v1248 = vpop.f32.mrb[0].mxu0
    %v1249 = vadd.f32 %v1161, %v1248
    %v1250 = vpop.f32.mrb[0].mxu0
    %1251 = vmatprep.mubr.bf16.mxu0 0
    %1252 = vmatmul.mubr.bf16.gmra.mrb[0].mxu0 %v1109
    %v1253 = vpop.f32.mrb[0].mxu0
    %v1254 = vadd.f32 %v1161, %v1253
    %v1255 = vpop.f32.mrb[0].mxu0
    %v1256 = vpop.f32.mrb[0].mxu0
    %v1257 = vadd.f32 %v1161, %v1256
    %v1258 = vpop.f32.mrb[0].mxu0
    %1259 = vmatprep.mubr.bf16.mxu0 0
    %1260 = vmatmul.mubr.bf16.gmra.mrb[0].mxu0 %v1110
    %v1261 = vpop.f32.mrb[0].mxu0
    %v1262 = vadd.f32 %v1161, %v1261
    %v1263 = vpop.f32.mrb[0].mxu0
    %v1264 = vpop.f32.mrb[0].mxu0
    %v1265 = vadd.f32 %v1161, %v1264
    %v1266 = vpop.f32.mrb[0].mxu0
    %1267 = vmatprep.mubr.bf16.mxu0 0
    %1268 = vmatmul.mubr.bf16.gmra.mrb[0].mxu0 %v1111
    %v1269 = vpop.f32.mrb[0].mxu0
    %v1270 = vadd.f32 %v1161, %v1269
    %v1271 = vpop.f32.mrb[0].mxu0
    %v1272 = vpop.f32.mrb[0].mxu0
    %v1273 = vadd.f32 %v1161, %v1272
    %v1274 = vpop.f32.mrb[0].mxu0
    %1275 = vmatprep.mubr.bf16.mxu0 0
    %1276 = vmatmul.mubr.bf16.gmra.mrb[0].mxu0 %v1112
    %v1277 = vpop.f32.mrb[0].mxu0
    %v1278 = vadd.f32 %v1161, %v1277
    %v1279 = vpop.f32.mrb[0].mxu0
    %v1280 = vpop.f32.mrb[0].mxu0
    %v1281 = vadd.f32 %v1161, %v1280
    %v1282 = vpop.f32.mrb[0].mxu0
    %1283 = vmatprep.mubr.bf16.mxu0 0
    %1284 = vmatmul.mubr.bf16.gmra.mrb[0].mxu0 %v1113
    %v1285 = vpop.f32.mrb[0].mxu0
    %v1286 = vadd.f32 %v1161, %v1285
    %v1287 = vpop.f32.mrb[0].mxu0
    %v1288 = vpop.f32.mrb[0].mxu0
    %v1289 = vadd.f32 %v1161, %v1288
    %v1290 = vpop.f32.mrb[0].mxu0
    %1291 = vmatprep.mubr.bf16.mxu0 0
    %1292 = vmatmul.mubr.bf16.gmra.mrb[0].mxu0 %v1114
    %v1293 = vpop.f32.mrb[0].mxu0
    %v1294 = vadd.f32 %v1161, %v1293
    %v1295 = vpop.f32.mrb[0].mxu0
    %v1296 = vpop.f32.mrb[0].mxu0
    %v1297 = vadd.f32 %v1161, %v1296
    %v1298 = vpop.f32.mrb[0].mxu0
    %1299 = vmatprep.mubr.bf16.mxu0 0
    %1300 = vmatmul.mubr.bf16.gmra.mrb[0].mxu0 %v1115
    %v1301 = vpop.f32.mrb[0].mxu0
    %v1302 = vadd.f32 %v1161, %v1301
    %v1303 = vpop.f32.mrb[0].mxu0
    %v1304 = vpop.f32.mrb[0].mxu0
    %v1305 = vadd.f32 %v1161, %v1304
    %v1306 = vpop.f32.mrb[0].mxu0
    %1307 = vmatprep.mubr.bf16.mxu0 0
    %1308 = vmatmul.mubr.bf16.gmra.mrb[0].mxu0 %v1116
    %v1309 = vpop.f32.mrb[0].mxu0
    %v1310 = vadd.f32 %v1161, %v1309
    %v1311 = vpop.f32.mrb[0].mxu0
    %v1312 = vpop.f32.mrb[0].mxu0
    %v1313 = vadd.f32 %v1161, %v1312
    %v1314 = vpop.f32.mrb[0].mxu0
    %1315 = vmatprep.mubr.bf16.mxu0 0
    %1316 = vmatmul.mubr.bf16.gmra.mrb[0].mxu0 %v1117
    %v1317 = vpop.f32.mrb[0].mxu0
    %v1318 = vadd.f32 %v1161, %v1317
    %v1319 = vpop.f32.mrb[0].mxu0
    %v1320 = vpop.f32.mrb[0].mxu0
    %v1321 = vadd.f32 %v1161, %v1320
    %v1322 = vpop.f32.mrb[0].mxu0
    %1323 = vmatprep.mubr.bf16.mxu0 0
    %1324 = vmatmul.mubr.bf16.gmra.mrb[0].mxu0 %v1118
    %v1325 = vpop.f32.mrb[0].mxu0
    %v1326 = vadd.f32 %v1161, %v1325
    %v1327 = vpop.f32.mrb[0].mxu0
    %v1328 = vpop.f32.mrb[0].mxu0
    %v1329 = vadd.f32 %v1161, %v1328
    %v1330 = vpop.f32.mrb[0].mxu0
    %1331 = vmatprep.mubr.bf16.mxu0 0
    %1332 = vmatmul.mubr.bf16.gmra.mrb[0].mxu0 %v1119
    %v1333 = vpop.f32.mrb[0].mxu0
    %v1334 = vadd.f32 %v1161, %v1333
    %v1335 = vpop.f32.mrb[0].mxu0
    %v1336 = vpop.f32.mrb[0].mxu0
    %v1337 = vadd.f32 %v1161, %v1336
    %v1338 = vpop.f32.mrb[0].mxu0
    %1339 = vmatprep.mubr.bf16.mxu0 0
    %1340 = vmatmul.mubr.bf16.gmra.mrb[0].mxu0 %v1120
    %v1341 = vpop.f32.mrb[0].mxu0
    %v1342 = vadd.f32 %v1161, %v1341
    %v1343 = vpop.f32.mrb[0].mxu0
    %v1344 = vpop.f32.mrb[0].mxu0
    %v1345 = vadd.f32 %v1161, %v1344
    %v1346 = vpop.f32.mrb[0].mxu0
    %1347 = vmatprep.mubr.bf16.mxu0 0
    %1348 = vmatmul.mubr.bf16.gmra.mrb[0].mxu0 %v1121
    %v1349 = vpop.f32.mrb[0].mxu0
    %v1350 = vadd.f32 %v1161, %v1349
    %v1351 = vpop.f32.mrb[0].mxu0
    %v1352 = vpop.f32.mrb[0].mxu0
    %v1353 = vadd.f32 %v1161, %v1352
    %v1354 = vpop.f32.mrb[0].mxu0
    %1355 = vmatprep.mubr.bf16.mxu0 0
    %1356 = vmatmul.mubr.bf16.gmra.mrb[0].mxu0 %v1122
    %v1357 = vpop.f32.mrb[0].mxu0
    %v1358 = vadd.f32 %v1161, %v1357
    %v1359 = vpop.f32.mrb[0].mxu0
    %v1360 = vpop.f32.mrb[0].mxu0
    %v1361 = vadd.f32 %v1161, %v1360
    %v1362 = vpop.f32.mrb[0].mxu0
    %1363 = vmatprep.mubr.bf16.mxu0 0
    %1364 = vmatmul.mubr.bf16.gmra.mrb[0].mxu0 %v1123
    %v1365 = vpop.f32.mrb[0].mxu0
    %v1366 = vadd.f32 %v1161, %v1365
    %v1367 = vpop.f32.mrb[0].mxu0
    %v1368 = vpop.f32.mrb[0].mxu0
    %v1369 = vadd.f32 %v1161, %v1368
    %v1370 = vpop.f32.mrb[0].mxu0
    %1371 = vmatprep.mubr.bf16.mxu0 0
    %1372 = vmatmul.mubr.bf16.gmra.mrb[0].mxu0 %v1124
    %v1373 = vpop.f32.mrb[0].mxu0
    %v1374 = vadd.f32 %v1161, %v1373
    %v1375 = vpop.f32.mrb[0].mxu0
    %v1376 = vpop.f32.mrb[0].mxu0
    %v1377 = vadd.f32 %v1161, %v1376
    %v1378 = vpop.f32.mrb[0].mxu0
    %1379 = vmatprep.mubr.bf16.mxu0 0
    %1380 = vmatmul.mubr.bf16.gmra.mrb[0].mxu0 %v1125
    %v1381 = vpop.f32.mrb[0].mxu0
    %v1382 = vadd.f32 %v1161, %v1381
    %v1383 = vpop.f32.mrb[0].mxu0
    %v1384 = vpop.f32.mrb[0].mxu0
    %v1385 = vadd.f32 %v1161, %v1384
    %v1386 = vpop.f32.mrb[0].mxu0
    %1387 = vmatprep.mubr.bf16.mxu0 0
    %1388 = vmatmul.mubr.bf16.gmra.mrb[0].mxu0 %v1126
    %v1389 = vpop.f32.mrb[0].mxu0
    %v1390 = vadd.f32 %v1161, %v1389
    %v1391 = vpop.f32.mrb[0].mxu0
    %v1392 = vpop.f32.mrb[0].mxu0
    %v1393 = vadd.f32 %v1161, %v1392
    %v1394 = vpop.f32.mrb[0].mxu0
    %1395 = vmatprep.mubr.bf16.mxu0 0
    %1396 = vmatmul.mubr.bf16.gmra.mrb[0].mxu0 %v1127
    %v1397 = vpop.f32.mrb[0].mxu0
    %v1398 = vadd.f32 %v1161, %v1397
    %v1399 = vpop.f32.mrb[0].mxu0
    %v1400 = vpop.f32.mrb[0].mxu0
    %v1401 = vadd.f32 %v1161, %v1400
    %v1402 = vpop.f32.mrb[0].mxu0
    %1403 = vmatprep.mubr.bf16.mxu0 0
    %1404 = vmatmul.mubr.bf16.gmra.mrb[0].mxu0 %v1128
    %v1405 = vpop.f32.mrb[0].mxu0
    %v1406 = vadd.f32 %v1161, %v1405
    %v1407 = vpop.f32.mrb[0].mxu0
    %v1408 = vpop.f32.mrb[0].mxu0
    %v1409 = vadd.f32 %v1161, %v1408
    %v1410 = vpop.f32.mrb[0].mxu0
    %1411 = vmatprep.mubr.bf16.mxu0 0
    %1412 = vmatmul.mubr.bf16.gmra.mrb[0].mxu0 %v1129
    %v1413 = vpop.f32.mrb[0].mxu0
    %v1414 = vadd.f32 %v1161, %v1413
    %v1415 = vpop.f32.mrb[0].mxu0
    %v1416 = vpop.f32.mrb[0].mxu0
    %v1417 = vadd.f32 %v1161, %v1416
    %v1418 = vpop.f32.mrb[0].mxu0
    %1419 = vmatprep.mubr.bf16.mxu0 0
    %1420 = vmatmul.mubr.bf16.gmra.mrb[0].mxu0 %v1130
    %v1421 = vpop.f32.mrb[0].mxu0
    %v1422 = vadd.f32 %v1161, %v1421
    %v1423 = vpop.f32.mrb[0].mxu0
    %v1424 = vpop.f32.mrb[0].mxu0
    %v1425 = vadd.f32 %v1161, %v1424
    %v1426 = vpop.f32.mrb[0].mxu0
    %1427 = vmatprep.mubr.bf16.mxu0 0
    %1428 = vmatmul.mubr.bf16.gmra.mrb[0].mxu0 %v1131
    %v1429 = vpop.f32.mrb[0].mxu0
    %v1430 = vadd.f32 %v1161, %v1429
    %v1431 = vpop.f32.mrb[0].mxu0
    %v1432 = vpop.f32.mrb[0].mxu0
    %v1433 = vadd.f32 %v1161, %v1432
    %v1434 = vpop.f32.mrb[0].mxu0
    %1435 = vmatprep.mubr.bf16.mxu0 0
    %1436 = vmatmul.mubr.bf16.gmra.mrb[0].mxu0 %v1132
    %v1437 = vpop.f32.mrb[0].mxu0
    %v1438 = vadd.f32 %v1161, %v1437
    %v1439 = vpop.f32.mrb[0].mxu0
    %v1440 = vpop.f32.mrb[0].mxu0
    %v1441 = vadd.f32 %v1161, %v1440
    %v1442 = vpop.f32.mrb[0].mxu0
    %1443 = vmatprep.mubr.bf16.mxu0 0
    %1444 = vmatmul.mubr.bf16.gmra.mrb[0].mxu0 %v1133
    %v1445 = vpop.f32.mrb[0].mxu0
    %v1446 = vadd.f32 %v1161, %v1445
    %v1447 = vpop.f32.mrb[0].mxu0
    %v1448 = vpop.f32.mrb[0].mxu0
    %v1449 = vadd.f32 %v1161, %v1448
    %v1450 = vpop.f32.mrb[0].mxu0
    %1451 = vmatprep.mubr.bf16.mxu0 0
    %1452 = vmatmul.mubr.bf16.gmra.mrb[0].mxu0 %v1134
    %v1453 = vpop.f32.mrb[0].mxu0
    %v1454 = vadd.f32 %v1161, %v1453
    %v1455 = vpop.f32.mrb[0].mxu0
    %v1456 = vpop.f32.mrb[0].mxu0
    %v1457 = vadd.f32 %v1161, %v1456
    %v1458 = vpop.f32.mrb[0].mxu0
    %1459 = vmatprep.mubr.bf16.mxu0 0
    %1460 = vmatmul.mubr.bf16.gmra.mrb[0].mxu0 %v1135
    %v1461 = vpop.f32.mrb[0].mxu0
    %v1462 = vadd.f32 %v1161, %v1461
    %v1463 = vpop.f32.mrb[0].mxu0
    %v1464 = vpop.f32.mrb[0].mxu0
    %v1465 = vadd.f32 %v1161, %v1464
    %v1466 = vpop.f32.mrb[0].mxu0
    %1467 = vmatprep.mubr.bf16.mxu0 0
    %1468 = vmatmul.mubr.bf16.gmra.mrb[0].mxu0 %v1136
    %v1469 = vpop.f32.mrb[0].mxu0
    %v1470 = vadd.f32 %v1161, %v1469
    %v1471 = vpop.f32.mrb[0].mxu0
    %v1472 = vpop.f32.mrb[0].mxu0
    %v1473 = vadd.f32 %v1161, %v1472
    %v1474 = vpop.f32.mrb[0].mxu0
    %1475 = vmatprep.mubr.bf16.mxu0 0
    %1476 = vmatmul.mubr.bf16.gmra.mrb[0].mxu0 %v1137
    %v1477 = vpop.f32.mrb[0].mxu0
    %v1478 = vadd.f32 %v1161, %v1477
    %v1479 = vpop.f32.mrb[0].mxu0
    %v1480 = vpop.f32.mrb[0].mxu0
    %v1481 = vadd.f32 %v1161, %v1480
    %v1482 = vpop.f32.mrb[0].mxu0
    %1483 = vmatprep.mubr.bf16.mxu0 0
    %1484 = vmatmul.mubr.bf16.gmra.mrb[0].mxu0 %v1138
    %v1485 = vpop.f32.mrb[0].mxu0
    %v1486 = vadd.f32 %v1161, %v1485
    %v1487 = vpop.f32.mrb[0].mxu0
    %v1488 = vpop.f32.mrb[0].mxu0
    %v1489 = vadd.f32 %v1161, %v1488
    %v1490 = vpop.f32.mrb[0].mxu0
    %1491 = vmatprep.mubr.bf16.mxu0 0
    %1492 = vmatmul.mubr.bf16.gmra.mrb[0].mxu0 %v1139
    %v1493 = vpop.f32.mrb[0].mxu0
    %v1494 = vadd.f32 %v1161, %v1493
    %v1495 = vpop.f32.mrb[0].mxu0
    %v1496 = vpop.f32.mrb[0].mxu0
    %v1497 = vadd.f32 %v1161, %v1496
    %v1498 = vpop.f32.mrb[0].mxu0
    %1499 = vdwg.mxu0
    %1500 = vadd.xlane.f32.xlu0 %v1246
    %v1501 = vpop.xlane.xlu0 %1500
    %1502 = vadd.xlane.f32.xlu0 %v1249
    %v1503 = vpop.xlane.xlu0 %1502
    %1504 = vadd.xlane.f32.xlu0 %v1254
    %v1505 = vpop.xlane.xlu0 %1504
    %1506 = vadd.xlane.f32.xlu0 %v1257
    %v1507 = vpop.xlane.xlu0 %1506
    %1508 = vadd.xlane.f32.xlu0 %v1262
    %v1509 = vpop.xlane.xlu0 %1508
    %1510 = vadd.xlane.f32.xlu0 %v1265
    %v1511 = vpop.xlane.xlu0 %1510
    %1512 = vadd.xlane.f32.xlu0 %v1270
    %v1513 = vpop.xlane.xlu0 %1512
    %1514 = vadd.xlane.f32.xlu0 %v1273
    %v1515 = vpop.xlane.xlu0 %1514
    %1516 = vadd.xlane.f32.xlu0 %v1278
    %v1517 = vpop.xlane.xlu0 %1516
    %1518 = vadd.xlane.f32.xlu0 %v1281
    %v1519 = vpop.xlane.xlu0 %1518
    %1520 = vadd.xlane.f32.xlu0 %v1286
    %v1521 = vpop.xlane.xlu0 %1520
    %1522 = vadd.xlane.f32.xlu0 %v1289
    %v1523 = vpop.xlane.xlu0 %1522
    %1524 = vadd.xlane.f32.xlu0 %v1294
    %v1525 = vpop.xlane.xlu0 %1524
    %1526 = vadd.xlane.f32.xlu0 %v1297
    %v1527 = vpop.xlane.xlu0 %1526
    %1528 = vadd.xlane.f32.xlu0 %v1302
    %v1529 = vpop.xlane.xlu0 %1528
    %1530 = vadd.xlane.f32.xlu0 %v1305
    %v1531 = vpop.xlane.xlu0 %1530
    %1532 = vadd.xlane.f32.xlu0 %v1310
    %v1533 = vpop.xlane.xlu0 %1532
    %1534 = vadd.xlane.f32.xlu0 %v1313
    %v1535 = vpop.xlane.xlu0 %1534
    %1536 = vadd.xlane.f32.xlu0 %v1318
    %v1537 = vpop.xlane.xlu0 %1536
    %1538 = vadd.xlane.f32.xlu0 %v1321
    %v1539 = vpop.xlane.xlu0 %1538
    %1540 = vadd.xlane.f32.xlu0 %v1326
    %v1541 = vpop.xlane.xlu0 %1540
    %1542 = vadd.xlane.f32.xlu0 %v1329
    %v1543 = vpop.xlane.xlu0 %1542
    %1544 = vadd.xlane.f32.xlu0 %v1334
    %v1545 = vpop.xlane.xlu0 %1544
    %1546 = vadd.xlane.f32.xlu0 %v1337
    %v1547 = vpop.xlane.xlu0 %1546
    %1548 = vadd.xlane.f32.xlu0 %v1342
    %v1549 = vpop.xlane.xlu0 %1548
    %1550 = vadd.xlane.f32.xlu0 %v1345
    %v1551 = vpop.xlane.xlu0 %1550
    %1552 = vadd.xlane.f32.xlu0 %v1350
    %v1553 = vpop.xlane.xlu0 %1552
    %1554 = vadd.xlane.f32.xlu0 %v1353
    %v1555 = vpop.xlane.xlu0 %1554
    %1556 = vadd.xlane.f32.xlu0 %v1358
    %v1557 = vpop.xlane.xlu0 %1556
    %1558 = vadd.xlane.f32.xlu0 %v1361
    %v1559 = vpop.xlane.xlu0 %1558
    %1560 = vadd.xlane.f32.xlu0 %v1366
    %v1561 = vpop.xlane.xlu0 %1560
    %1562 = vadd.xlane.f32.xlu0 %v1369
    %v1563 = vpop.xlane.xlu0 %1562
    %1564 = vadd.xlane.f32.xlu0 %v1374
    %v1565 = vpop.xlane.xlu0 %1564
    %1566 = vadd.xlane.f32.xlu0 %v1377
    %v1567 = vpop.xlane.xlu0 %1566
    %1568 = vadd.xlane.f32.xlu0 %v1382
    %v1569 = vpop.xlane.xlu0 %1568
    %1570 = vadd.xlane.f32.xlu0 %v1385
    %v1571 = vpop.xlane.xlu0 %1570
    %1572 = vadd.xlane.f32.xlu0 %v1390
    %v1573 = vpop.xlane.xlu0 %1572
    %1574 = vadd.xlane.f32.xlu0 %v1393
    %v1575 = vpop.xlane.xlu0 %1574
    %1576 = vadd.xlane.f32.xlu0 %v1398
    %v1577 = vpop.xlane.xlu0 %1576
    %1578 = vadd.xlane.f32.xlu0 %v1401
    %v1579 = vpop.xlane.xlu0 %1578
    %1580 = vadd.xlane.f32.xlu0 %v1406
    %v1581 = vpop.xlane.xlu0 %1580
    %1582 = vadd.xlane.f32.xlu0 %v1409
    %v1583 = vpop.xlane.xlu0 %1582
    %1584 = vadd.xlane.f32.xlu0 %v1414
    %v1585 = vpop.xlane.xlu0 %1584
    %1586 = vadd.xlane.f32.xlu0 %v1417
    %v1587 = vpop.xlane.xlu0 %1586
    %1588 = vadd.xlane.f32.xlu0 %v1422
    %v1589 = vpop.xlane.xlu0 %1588
    %1590 = vadd.xlane.f32.xlu0 %v1425
    %v1591 = vpop.xlane.xlu0 %1590
    %1592 = vadd.xlane.f32.xlu0 %v1430
    %v1593 = vpop.xlane.xlu0 %1592
    %1594 = vadd.xlane.f32.xlu0 %v1433
    %v1595 = vpop.xlane.xlu0 %1594
    %1596 = vadd.xlane.f32.xlu0 %v1438
    %v1597 = vpop.xlane.xlu0 %1596
    %1598 = vadd.xlane.f32.xlu0 %v1441
    %v1599 = vpop.xlane.xlu0 %1598
    %1600 = vadd.xlane.f32.xlu0 %v1446
    %v1601 = vpop.xlane.xlu0 %1600
    %1602 = vadd.xlane.f32.xlu0 %v1449
    %v1603 = vpop.xlane.xlu0 %1602
    %1604 = vadd.xlane.f32.xlu0 %v1454
    %v1605 = vpop.xlane.xlu0 %1604
    %1606 = vadd.xlane.f32.xlu0 %v1457
    %v1607 = vpop.xlane.xlu0 %1606
    %1608 = vadd.xlane.f32.xlu0 %v1462
    %v1609 = vpop.xlane.xlu0 %1608
    %1610 = vadd.xlane.f32.xlu0 %v1465
    %v1611 = vpop.xlane.xlu0 %1610
    %1612 = vadd.xlane.f32.xlu0 %v1470
    %v1613 = vpop.xlane.xlu0 %1612
    %1614 = vadd.xlane.f32.xlu0 %v1473
    %v1615 = vpop.xlane.xlu0 %1614
    %1616 = vadd.xlane.f32.xlu0 %v1478
    %v1617 = vpop.xlane.xlu0 %1616
    %1618 = vadd.xlane.f32.xlu0 %v1481
    %v1619 = vpop.xlane.xlu0 %1618
    %1620 = vadd.xlane.f32.xlu0 %v1486
    %v1621 = vpop.xlane.xlu0 %1620
    %1622 = vadd.xlane.f32.xlu0 %v1489
    %v1623 = vpop.xlane.xlu0 %1622
    %1624 = vadd.xlane.f32.xlu0 %v1494
    %v1625 = vpop.xlane.xlu0 %1624
    %1626 = vadd.xlane.f32.xlu0 %v1497
    %v1627 = vpop.xlane.xlu0 %1626
    %v1628 = vrcp.pop 128.0
    %v1629 = vmul.f32 %v1501, %v1628
    %v1630 = vmul.f32 %v1503, %v1628
    %v1631 = vmul.f32 %v1505, %v1628
    %v1632 = vmul.f32 %v1507, %v1628
    %v1633 = vmul.f32 %v1509, %v1628
    %v1634 = vmul.f32 %v1511, %v1628
    %v1635 = vmul.f32 %v1513, %v1628
    %v1636 = vmul.f32 %v1515, %v1628
    %v1637 = vmul.f32 %v1517, %v1628
    %v1638 = vmul.f32 %v1519, %v1628
    %v1639 = vmul.f32 %v1521, %v1628
    %v1640 = vmul.f32 %v1523, %v1628
    %v1641 = vmul.f32 %v1525, %v1628
    %v1642 = vmul.f32 %v1527, %v1628
    %v1643 = vmul.f32 %v1529, %v1628
    %v1644 = vmul.f32 %v1531, %v1628
    %v1645 = vmul.f32 %v1533, %v1628
    %v1646 = vmul.f32 %v1535, %v1628
    %v1647 = vmul.f32 %v1537, %v1628
    %v1648 = vmul.f32 %v1539, %v1628
    %v1649 = vmul.f32 %v1541, %v1628
    %v1650 = vmul.f32 %v1543, %v1628
    %v1651 = vmul.f32 %v1545, %v1628
    %v1652 = vmul.f32 %v1547, %v1628
    %v1653 = vmul.f32 %v1549, %v1628
    %v1654 = vmul.f32 %v1551, %v1628
    %v1655 = vmul.f32 %v1553, %v1628
    %v1656 = vmul.f32 %v1555, %v1628
    %v1657 = vmul.f32 %v1557, %v1628
    %v1658 = vmul.f32 %v1559, %v1628
    %v1659 = vmul.f32 %v1561, %v1628
    %v1660 = vmul.f32 %v1563, %v1628
    %v1661 = vmul.f32 %v1565, %v1628
    %v1662 = vmul.f32 %v1567, %v1628
    %v1663 = vmul.f32 %v1569, %v1628
    %v1664 = vmul.f32 %v1571, %v1628
    %v1665 = vmul.f32 %v1573, %v1628
    %v1666 = vmul.f32 %v1575, %v1628
    %v1667 = vmul.f32 %v1577, %v1628
    %v1668 = vmul.f32 %v1579, %v1628
    %v1669 = vmul.f32 %v1581, %v1628
    %v1670 = vmul.f32 %v1583, %v1628
    %v1671 = vmul.f32 %v1585, %v1628
    %v1672 = vmul.f32 %v1587, %v1628
    %v1673 = vmul.f32 %v1589, %v1628
    %v1674 = vmul.f32 %v1591, %v1628
    %v1675 = vmul.f32 %v1593, %v1628
    %v1676 = vmul.f32 %v1595, %v1628
    %v1677 = vmul.f32 %v1597, %v1628
    %v1678 = vmul.f32 %v1599, %v1628
    %v1679 = vmul.f32 %v1601, %v1628
    %v1680 = vmul.f32 %v1603, %v1628
    %v1681 = vmul.f32 %v1605, %v1628
    %v1682 = vmul.f32 %v1607, %v1628
    %v1683 = vmul.f32 %v1609, %v1628
    %v1684 = vmul.f32 %v1611, %v1628
    %v1685 = vmul.f32 %v1613, %v1628
    %v1686 = vmul.f32 %v1615, %v1628
    %v1687 = vmul.f32 %v1617, %v1628
    %v1688 = vmul.f32 %v1619, %v1628
    %v1689 = vmul.f32 %v1621, %v1628
    %v1690 = vmul.f32 %v1623, %v1628
    %v1691 = vmul.f32 %v1625, %v1628
    %v1692 = vmul.f32 %v1627, %v1628
    %v1693 = vsub.f32 %v1246, %v1629
    %v1694 = vsub.f32 %v1249, %v1630
    %v1695 = vsub.f32 %v1254, %v1631
    %v1696 = vsub.f32 %v1257, %v1632
    %v1697 = vsub.f32 %v1262, %v1633
    %v1698 = vsub.f32 %v1265, %v1634
    %v1699 = vsub.f32 %v1270, %v1635
    %v1700 = vsub.f32 %v1273, %v1636
    %v1701 = vsub.f32 %v1278, %v1637
    %v1702 = vsub.f32 %v1281, %v1638
    %v1703 = vsub.f32 %v1286, %v1639
    %v1704 = vsub.f32 %v1289, %v1640
    %v1705 = vsub.f32 %v1294, %v1641
    %v1706 = vsub.f32 %v1297, %v1642
    %v1707 = vsub.f32 %v1302, %v1643
    %v1708 = vsub.f32 %v1305, %v1644
    %v1709 = vsub.f32 %v1310, %v1645
    %v1710 = vsub.f32 %v1313, %v1646
    %v1711 = vsub.f32 %v1318, %v1647
    %v1712 = vsub.f32 %v1321, %v1648
    %v1713 = vsub.f32 %v1326, %v1649
    %v1714 = vsub.f32 %v1329, %v1650
    %v1715 = vsub.f32 %v1334, %v1651
    %v1716 = vsub.f32 %v1337, %v1652
    %v1717 = vsub.f32 %v1342, %v1653
    %v1718 = vsub.f32 %v1345, %v1654
    %v1719 = vsub.f32 %v1350, %v1655
    %v1720 = vsub.f32 %v1353, %v1656
    %v1721 = vsub.f32 %v1358, %v1657
    %v1722 = vsub.f32 %v1361, %v1658
    %v1723 = vsub.f32 %v1366, %v1659
    %v1724 = vsub.f32 %v1369, %v1660
    %v1725 = vsub.f32 %v1374, %v1661
    %v1726 = vsub.f32 %v1377, %v1662
    %v1727 = vsub.f32 %v1382, %v1663
    %v1728 = vsub.f32 %v1385, %v1664
    %v1729 = vsub.f32 %v1390, %v1665
    %v1730 = vsub.f32 %v1393, %v1666
    %v1731 = vsub.f32 %v1398, %v1667
    %v1732 = vsub.f32 %v1401, %v1668
    %v1733 = vsub.f32 %v1406, %v1669
    %v1734 = vsub.f32 %v1409, %v1670
    %v1735 = vsub.f32 %v1414, %v1671
    %v1736 = vsub.f32 %v1417, %v1672
    %v1737 = vsub.f32 %v1422, %v1673
    %v1738 = vsub.f32 %v1425, %v1674
    %v1739 = vsub.f32 %v1430, %v1675
    %v1740 = vsub.f32 %v1433, %v1676
    %v1741 = vsub.f32 %v1438, %v1677
    %v1742 = vsub.f32 %v1441, %v1678
    %v1743 = vsub.f32 %v1446, %v1679
    %v1744 = vsub.f32 %v1449, %v1680
    %v1745 = vsub.f32 %v1454, %v1681
    %v1746 = vsub.f32 %v1457, %v1682
    %v1747 = vsub.f32 %v1462, %v1683
    %v1748 = vsub.f32 %v1465, %v1684
    %v1749 = vsub.f32 %v1470, %v1685
    %v1750 = vsub.f32 %v1473, %v1686
    %v1751 = vsub.f32 %v1478, %v1687
    %v1752 = vsub.f32 %v1481, %v1688
    %v1753 = vsub.f32 %v1486, %v1689
    %v1754 = vsub.f32 %v1489, %v1690
    %v1755 = vsub.f32 %v1494, %v1691
    %v1756 = vsub.f32 %v1497, %v1692
    %v1757 = vmul.f32 %v1693, %v1693
    %v1758 = vmul.f32 %v1694, %v1694
    %v1759 = vmul.f32 %v1695, %v1695
    %v1760 = vmul.f32 %v1696, %v1696
    %v1761 = vmul.f32 %v1697, %v1697
    %v1762 = vmul.f32 %v1698, %v1698
    %v1763 = vmul.f32 %v1699, %v1699
    %v1764 = vmul.f32 %v1700, %v1700
    %v1765 = vmul.f32 %v1701, %v1701
    %v1766 = vmul.f32 %v1702, %v1702
    %v1767 = vmul.f32 %v1703, %v1703
    %v1768 = vmul.f32 %v1704, %v1704
    %v1769 = vmul.f32 %v1705, %v1705
    %v1770 = vmul.f32 %v1706, %v1706
    %v1771 = vmul.f32 %v1707, %v1707
    %v1772 = vmul.f32 %v1708, %v1708
    %v1773 = vmul.f32 %v1709, %v1709
    %v1774 = vmul.f32 %v1710, %v1710
    %v1775 = vmul.f32 %v1711, %v1711
    %v1776 = vmul.f32 %v1712, %v1712
    %v1777 = vmul.f32 %v1713, %v1713
    %v1778 = vmul.f32 %v1714, %v1714
    %v1779 = vmul.f32 %v1715, %v1715
    %v1780 = vmul.f32 %v1716, %v1716
    %v1781 = vmul.f32 %v1717, %v1717
    %v1782 = vmul.f32 %v1718, %v1718
    %v1783 = vmul.f32 %v1719, %v1719
    %v1784 = vmul.f32 %v1720, %v1720
    %v1785 = vmul.f32 %v1721, %v1721
    %v1786 = vmul.f32 %v1722, %v1722
    %v1787 = vmul.f32 %v1723, %v1723
    %v1788 = vmul.f32 %v1724, %v1724
    %v1789 = vmul.f32 %v1725, %v1725
    %v1790 = vmul.f32 %v1726, %v1726
    %v1791 = vmul.f32 %v1727, %v1727
    %v1792 = vmul.f32 %v1728, %v1728
    %v1793 = vmul.f32 %v1729, %v1729
    %v1794 = vmul.f32 %v1730, %v1730
    %v1795 = vmul.f32 %v1731, %v1731
    %v1796 = vmul.f32 %v1732, %v1732
    %v1797 = vmul.f32 %v1733, %v1733
    %v1798 = vmul.f32 %v1734, %v1734
    %v1799 = vmul.f32 %v1735, %v1735
    %v1800 = vmul.f32 %v1736, %v1736
    %v1801 = vmul.f32 %v1737, %v1737
    %v1802 = vmul.f32 %v1738, %v1738
    %v1803 = vmul.f32 %v1739, %v1739
    %v1804 = vmul.f32 %v1740, %v1740
    %v1805 = vmul.f32 %v1741, %v1741
    %v1806 = vmul.f32 %v1742, %v1742
    %v1807 = vmul.f32 %v1743, %v1743
    %v1808 = vmul.f32 %v1744, %v1744
    %v1809 = vmul.f32 %v1745, %v1745
    %v1810 = vmul.f32 %v1746, %v1746
    %v1811 = vmul.f32 %v1747, %v1747
    %v1812 = vmul.f32 %v1748, %v1748
    %v1813 = vmul.f32 %v1749, %v1749
    %v1814 = vmul.f32 %v1750, %v1750
    %v1815 = vmul.f32 %v1751, %v1751
    %v1816 = vmul.f32 %v1752, %v1752
    %v1817 = vmul.f32 %v1753, %v1753
    %v1818 = vmul.f32 %v1754, %v1754
    %v1819 = vmul.f32 %v1755, %v1755
    %v1820 = vmul.f32 %v1756, %v1756
    %1821 = vadd.xlane.f32.xlu0 %v1757
    %v1822 = vpop.xlane.xlu0 %1821
    %1823 = vadd.xlane.f32.xlu0 %v1758
    %v1824 = vpop.xlane.xlu0 %1823
    %1825 = vadd.xlane.f32.xlu0 %v1759
    %v1826 = vpop.xlane.xlu0 %1825
    %1827 = vadd.xlane.f32.xlu0 %v1760
    %v1828 = vpop.xlane.xlu0 %1827
    %1829 = vadd.xlane.f32.xlu0 %v1761
    %v1830 = vpop.xlane.xlu0 %1829
    %1831 = vadd.xlane.f32.xlu0 %v1762
    %v1832 = vpop.xlane.xlu0 %1831
    %1833 = vadd.xlane.f32.xlu0 %v1763
    %v1834 = vpop.xlane.xlu0 %1833
    %1835 = vadd.xlane.f32.xlu0 %v1764
    %v1836 = vpop.xlane.xlu0 %1835
    %1837 = vadd.xlane.f32.xlu0 %v1765
    %v1838 = vpop.xlane.xlu0 %1837
    %1839 = vadd.xlane.f32.xlu0 %v1766
    %v1840 = vpop.xlane.xlu0 %1839
    %1841 = vadd.xlane.f32.xlu0 %v1767
    %v1842 = vpop.xlane.xlu0 %1841
    %1843 = vadd.xlane.f32.xlu0 %v1768
    %v1844 = vpop.xlane.xlu0 %1843
    %1845 = vadd.xlane.f32.xlu0 %v1769
    %v1846 = vpop.xlane.xlu0 %1845
    %1847 = vadd.xlane.f32.xlu0 %v1770
    %v1848 = vpop.xlane.xlu0 %1847
    %1849 = vadd.xlane.f32.xlu0 %v1771
    %v1850 = vpop.xlane.xlu0 %1849
    %1851 = vadd.xlane.f32.xlu0 %v1772
    %v1852 = vpop.xlane.xlu0 %1851
    %1853 = vadd.xlane.f32.xlu0 %v1773
    %v1854 = vpop.xlane.xlu0 %1853
    %1855 = vadd.xlane.f32.xlu0 %v1774
    %v1856 = vpop.xlane.xlu0 %1855
    %1857 = vadd.xlane.f32.xlu0 %v1775
    %v1858 = vpop.xlane.xlu0 %1857
    %1859 = vadd.xlane.f32.xlu0 %v1776
    %v1860 = vpop.xlane.xlu0 %1859
    %1861 = vadd.xlane.f32.xlu0 %v1777
    %v1862 = vpop.xlane.xlu0 %1861
    %1863 = vadd.xlane.f32.xlu0 %v1778
    %v1864 = vpop.xlane.xlu0 %1863
    %1865 = vadd.xlane.f32.xlu0 %v1779
    %v1866 = vpop.xlane.xlu0 %1865
    %1867 = vadd.xlane.f32.xlu0 %v1780
    %v1868 = vpop.xlane.xlu0 %1867
    %1869 = vadd.xlane.f32.xlu0 %v1781
    %v1870 = vpop.xlane.xlu0 %1869
    %1871 = vadd.xlane.f32.xlu0 %v1782
    %v1872 = vpop.xlane.xlu0 %1871
    %1873 = vadd.xlane.f32.xlu0 %v1783
    %v1874 = vpop.xlane.xlu0 %1873
    %1875 = vadd.xlane.f32.xlu0 %v1784
    %v1876 = vpop.xlane.xlu0 %1875
    %1877 = vadd.xlane.f32.xlu0 %v1785
    %v1878 = vpop.xlane.xlu0 %1877
    %1879 = vadd.xlane.f32.xlu0 %v1786
    %v1880 = vpop.xlane.xlu0 %1879
    %1881 = vadd.xlane.f32.xlu0 %v1787
    %v1882 = vpop.xlane.xlu0 %1881
    %1883 = vadd.xlane.f32.xlu0 %v1788
    %v1884 = vpop.xlane.xlu0 %1883
    %1885 = vadd.xlane.f32.xlu0 %v1789
    %v1886 = vpop.xlane.xlu0 %1885
    %1887 = vadd.xlane.f32.xlu0 %v1790
    %v1888 = vpop.xlane.xlu0 %1887
    %1889 = vadd.xlane.f32.xlu0 %v1791
    %v1890 = vpop.xlane.xlu0 %1889
    %1891 = vadd.xlane.f32.xlu0 %v1792
    %v1892 = vpop.xlane.xlu0 %1891
    %1893 = vadd.xlane.f32.xlu0 %v1793
    %v1894 = vpop.xlane.xlu0 %1893
    %1895 = vadd.xlane.f32.xlu0 %v1794
    %v1896 = vpop.xlane.xlu0 %1895
    %1897 = vadd.xlane.f32.xlu0 %v1795
    %v1898 = vpop.xlane.xlu0 %1897
    %1899 = vadd.xlane.f32.xlu0 %v1796
    %v1900 = vpop.xlane.xlu0 %1899
    %1901 = vadd.xlane.f32.xlu0 %v1797
    %v1902 = vpop.xlane.xlu0 %1901
    %1903 = vadd.xlane.f32.xlu0 %v1798
    %v1904 = vpop.xlane.xlu0 %1903
    %1905 = vadd.xlane.f32.xlu0 %v1799
    %v1906 = vpop.xlane.xlu0 %1905
    %1907 = vadd.xlane.f32.xlu0 %v1800
    %v1908 = vpop.xlane.xlu0 %1907
    %1909 = vadd.xlane.f32.xlu0 %v1801
    %v1910 = vpop.xlane.xlu0 %1909
    %1911 = vadd.xlane.f32.xlu0 %v1802
    %v1912 = vpop.xlane.xlu0 %1911
    %1913 = vadd.xlane.f32.xlu0 %v1803
    %v1914 = vpop.xlane.xlu0 %1913
    %1915 = vadd.xlane.f32.xlu0 %v1804
    %v1916 = vpop.xlane.xlu0 %1915
    %1917 = vadd.xlane.f32.xlu0 %v1805
    %v1918 = vpop.xlane.xlu0 %1917
    %1919 = vadd.xlane.f32.xlu0 %v1806
    %v1920 = vpop.xlane.xlu0 %1919
    %1921 = vadd.xlane.f32.xlu0 %v1807
    %v1922 = vpop.xlane.xlu0 %1921
    %1923 = vadd.xlane.f32.xlu0 %v1808
    %v1924 = vpop.xlane.xlu0 %1923
    %1925 = vadd.xlane.f32.xlu0 %v1809
    %v1926 = vpop.xlane.xlu0 %1925
    %1927 = vadd.xlane.f32.xlu0 %v1810
    %v1928 = vpop.xlane.xlu0 %1927
    %1929 = vadd.xlane.f32.xlu0 %v1811
    %v1930 = vpop.xlane.xlu0 %1929
    %1931 = vadd.xlane.f32.xlu0 %v1812
    %v1932 = vpop.xlane.xlu0 %1931
    %1933 = vadd.xlane.f32.xlu0 %v1813
    %v1934 = vpop.xlane.xlu0 %1933
    %1935 = vadd.xlane.f32.xlu0 %v1814
    %v1936 = vpop.xlane.xlu0 %1935
    %1937 = vadd.xlane.f32.xlu0 %v1815
    %v1938 = vpop.xlane.xlu0 %1937
    %1939 = vadd.xlane.f32.xlu0 %v1816
    %v1940 = vpop.xlane.xlu0 %1939
    %1941 = vadd.xlane.f32.xlu0 %v1817
    %v1942 = vpop.xlane.xlu0 %1941
    %1943 = vadd.xlane.f32.xlu0 %v1818
    %v1944 = vpop.xlane.xlu0 %1943
    %1945 = vadd.xlane.f32.xlu0 %v1819
    %v1946 = vpop.xlane.xlu0 %1945
    %1947 = vadd.xlane.f32.xlu0 %v1820
    %v1948 = vpop.xlane.xlu0 %1947
    %v1949 = vmul.f32 %v1822, %v1628
    %v1950 = vmul.f32 %v1824, %v1628
    %v1951 = vmul.f32 %v1826, %v1628
    %v1952 = vmul.f32 %v1828, %v1628
    %v1953 = vmul.f32 %v1830, %v1628
    %v1954 = vmul.f32 %v1832, %v1628
    %v1955 = vmul.f32 %v1834, %v1628
    %v1956 = vmul.f32 %v1836, %v1628
    %v1957 = vmul.f32 %v1838, %v1628
    %v1958 = vmul.f32 %v1840, %v1628
    %v1959 = vmul.f32 %v1842, %v1628
    %v1960 = vmul.f32 %v1844, %v1628
    %v1961 = vmul.f32 %v1846, %v1628
    %v1962 = vmul.f32 %v1848, %v1628
    %v1963 = vmul.f32 %v1850, %v1628
    %v1964 = vmul.f32 %v1852, %v1628
    %v1965 = vmul.f32 %v1854, %v1628
    %v1966 = vmul.f32 %v1856, %v1628
    %v1967 = vmul.f32 %v1858, %v1628
    %v1968 = vmul.f32 %v1860, %v1628
    %v1969 = vmul.f32 %v1862, %v1628
    %v1970 = vmul.f32 %v1864, %v1628
    %v1971 = vmul.f32 %v1866, %v1628
    %v1972 = vmul.f32 %v1868, %v1628
    %v1973 = vmul.f32 %v1870, %v1628
    %v1974 = vmul.f32 %v1872, %v1628
    %v1975 = vmul.f32 %v1874, %v1628
    %v1976 = vmul.f32 %v1876, %v1628
    %v1977 = vmul.f32 %v1878, %v1628
    %v1978 = vmul.f32 %v1880, %v1628
    %v1979 = vmul.f32 %v1882, %v1628
    %v1980 = vmul.f32 %v1884, %v1628
    %v1981 = vmul.f32 %v1886, %v1628
    %v1982 = vmul.f32 %v1888, %v1628
    %v1983 = vmul.f32 %v1890, %v1628
    %v1984 = vmul.f32 %v1892, %v1628
    %v1985 = vmul.f32 %v1894, %v1628
    %v1986 = vmul.f32 %v1896, %v1628
    %v1987 = vmul.f32 %v1898, %v1628
    %v1988 = vmul.f32 %v1900, %v1628
    %v1989 = vmul.f32 %v1902, %v1628
    %v1990 = vmul.f32 %v1904, %v1628
    %v1991 = vmul.f32 %v1906, %v1628
    %v1992 = vmul.f32 %v1908, %v1628
    %v1993 = vmul.f32 %v1910, %v1628
    %v1994 = vmul.f32 %v1912, %v1628
    %v1995 = vmul.f32 %v1914, %v1628
    %v1996 = vmul.f32 %v1916, %v1628
    %v1997 = vmul.f32 %v1918, %v1628
    %v1998 = vmul.f32 %v1920, %v1628
    %v1999 = vmul.f32 %v1922, %v1628
    %v2000 = vmul.f32 %v1924, %v1628
    %v2001 = vmul.f32 %v1926, %v1628
    %v2002 = vmul.f32 %v1928, %v1628
    %v2003 = vmul.f32 %v1930, %v1628
    %v2004 = vmul.f32 %v1932, %v1628
    %v2005 = vmul.f32 %v1934, %v1628
    %v2006 = vmul.f32 %v1936, %v1628
    %v2007 = vmul.f32 %v1938, %v1628
    %v2008 = vmul.f32 %v1940, %v1628
    %v2009 = vmul.f32 %v1942, %v1628
    %v2010 = vmul.f32 %v1944, %v1628
    %v2011 = vmul.f32 %v1946, %v1628
    %v2012 = vmul.f32 %v1948, %v1628
    %v2013 = vadd.f32 %v1949, 1e-05
    %v2014 = vadd.f32 %v1950, 1e-05
    %v2015 = vadd.f32 %v1951, 1e-05
    %v2016 = vadd.f32 %v1952, 1e-05
    %v2017 = vadd.f32 %v1953, 1e-05
    %v2018 = vadd.f32 %v1954, 1e-05
    %v2019 = vadd.f32 %v1955, 1e-05
    %v2020 = vadd.f32 %v1956, 1e-05
    %v2021 = vadd.f32 %v1957, 1e-05
    %v2022 = vadd.f32 %v1958, 1e-05
    %v2023 = vadd.f32 %v1959, 1e-05
    %v2024 = vadd.f32 %v1960, 1e-05
    %v2025 = vadd.f32 %v1961, 1e-05
    %v2026 = vadd.f32 %v1962, 1e-05
    %v2027 = vadd.f32 %v1963, 1e-05
    %v2028 = vadd.f32 %v1964, 1e-05
    %v2029 = vadd.f32 %v1965, 1e-05
    %v2030 = vadd.f32 %v1966, 1e-05
    %v2031 = vadd.f32 %v1967, 1e-05
    %v2032 = vadd.f32 %v1968, 1e-05
    %v2033 = vadd.f32 %v1969, 1e-05
    %v2034 = vadd.f32 %v1970, 1e-05
    %v2035 = vadd.f32 %v1971, 1e-05
    %v2036 = vadd.f32 %v1972, 1e-05
    %v2037 = vadd.f32 %v1973, 1e-05
    %v2038 = vadd.f32 %v1974, 1e-05
    %v2039 = vadd.f32 %v1975, 1e-05
    %v2040 = vadd.f32 %v1976, 1e-05
    %v2041 = vadd.f32 %v1977, 1e-05
    %v2042 = vadd.f32 %v1978, 1e-05
    %v2043 = vadd.f32 %v1979, 1e-05
    %v2044 = vadd.f32 %v1980, 1e-05
    %v2045 = vadd.f32 %v1981, 1e-05
    %v2046 = vadd.f32 %v1982, 1e-05
    %v2047 = vadd.f32 %v1983, 1e-05
    %v2048 = vadd.f32 %v1984, 1e-05
    %v2049 = vadd.f32 %v1985, 1e-05
    %v2050 = vadd.f32 %v1986, 1e-05
    %v2051 = vadd.f32 %v1987, 1e-05
    %v2052 = vadd.f32 %v1988, 1e-05
    %v2053 = vadd.f32 %v1989, 1e-05
    %v2054 = vadd.f32 %v1990, 1e-05
    %v2055 = vadd.f32 %v1991, 1e-05
    %v2056 = vadd.f32 %v1992, 1e-05
    %v2057 = vadd.f32 %v1993, 1e-05
    %v2058 = vadd.f32 %v1994, 1e-05
    %v2059 = vadd.f32 %v1995, 1e-05
    %v2060 = vadd.f32 %v1996, 1e-05
    %v2061 = vadd.f32 %v1997, 1e-05
    %v2062 = vadd.f32 %v1998, 1e-05
    %v2063 = vadd.f32 %v1999, 1e-05
    %v2064 = vadd.f32 %v2000, 1e-05
    %v2065 = vadd.f32 %v2001, 1e-05
    %v2066 = vadd.f32 %v2002, 1e-05
    %v2067 = vadd.f32 %v2003, 1e-05
    %v2068 = vadd.f32 %v2004, 1e-05
    %v2069 = vadd.f32 %v2005, 1e-05
    %v2070 = vadd.f32 %v2006, 1e-05
    %v2071 = vadd.f32 %v2007, 1e-05
    %v2072 = vadd.f32 %v2008, 1e-05
    %v2073 = vadd.f32 %v2009, 1e-05
    %v2074 = vadd.f32 %v2010, 1e-05
    %v2075 = vadd.f32 %v2011, 1e-05
    %v2076 = vadd.f32 %v2012, 1e-05
    %v2077 = vrsqrt.pop %v2013
    %v2078 = vrsqrt.pop %v2014
    %v2079 = vrsqrt.pop %v2015
    %v2080 = vrsqrt.pop %v2016
    %v2081 = vrsqrt.pop %v2017
    %v2082 = vrsqrt.pop %v2018
    %v2083 = vrsqrt.pop %v2019
    %v2084 = vrsqrt.pop %v2020
    %v2085 = vrsqrt.pop %v2021
    %v2086 = vrsqrt.pop %v2022
    %v2087 = vrsqrt.pop %v2023
    %v2088 = vrsqrt.pop %v2024
    %v2089 = vrsqrt.pop %v2025
    %v2090 = vrsqrt.pop %v2026
    %v2091 = vrsqrt.pop %v2027
    %v2092 = vrsqrt.pop %v2028
    %v2093 = vrsqrt.pop %v2029
    %v2094 = vrsqrt.pop %v2030
    %v2095 = vrsqrt.pop %v2031
    %v2096 = vrsqrt.pop %v2032
    %v2097 = vrsqrt.pop %v2033
    %v2098 = vrsqrt.pop %v2034
    %v2099 = vrsqrt.pop %v2035
    %v2100 = vrsqrt.pop %v2036
    %v2101 = vrsqrt.pop %v2037
    %v2102 = vrsqrt.pop %v2038
    %v2103 = vrsqrt.pop %v2039
    %v2104 = vrsqrt.pop %v2040
    %v2105 = vrsqrt.pop %v2041
    %v2106 = vrsqrt.pop %v2042
    %v2107 = vrsqrt.pop %v2043
    %v2108 = vrsqrt.pop %v2044
    %v2109 = vrsqrt.pop %v2045
    %v2110 = vrsqrt.pop %v2046
    %v2111 = vrsqrt.pop %v2047
    %v2112 = vrsqrt.pop %v2048
    %v2113 = vrsqrt.pop %v2049
    %v2114 = vrsqrt.pop %v2050
    %v2115 = vrsqrt.pop %v2051
    %v2116 = vrsqrt.pop %v2052
    %v2117 = vrsqrt.pop %v2053
    %v2118 = vrsqrt.pop %v2054
    %v2119 = vrsqrt.pop %v2055
    %v2120 = vrsqrt.pop %v2056
    %v2121 = vrsqrt.pop %v2057
    %v2122 = vrsqrt.pop %v2058
    %v2123 = vrsqrt.pop %v2059
    %v2124 = vrsqrt.pop %v2060
    %v2125 = vrsqrt.pop %v2061
    %v2126 = vrsqrt.pop %v2062
    %v2127 = vrsqrt.pop %v2063
    %v2128 = vrsqrt.pop %v2064
    %v2129 = vrsqrt.pop %v2065
    %v2130 = vrsqrt.pop %v2066
    %v2131 = vrsqrt.pop %v2067
    %v2132 = vrsqrt.pop %v2068
    %v2133 = vrsqrt.pop %v2069
    %v2134 = vrsqrt.pop %v2070
    %v2135 = vrsqrt.pop %v2071
    %v2136 = vrsqrt.pop %v2072
    %v2137 = vrsqrt.pop %v2073
    %v2138 = vrsqrt.pop %v2074
    %v2139 = vrsqrt.pop %v2075
    %v2140 = vrsqrt.pop %v2076
    %v2141 = vmul.f32 %v1693, %v2077
    %v2142 = vmul.f32 %v1694, %v2078
    %v2143 = vmul.f32 %v1695, %v2079
    %v2144 = vmul.f32 %v1696, %v2080
    %v2145 = vmul.f32 %v1697, %v2081
    %v2146 = vmul.f32 %v1698, %v2082
    %v2147 = vmul.f32 %v1699, %v2083
    %v2148 = vmul.f32 %v1700, %v2084
    %v2149 = vmul.f32 %v1701, %v2085
    %v2150 = vmul.f32 %v1702, %v2086
    %v2151 = vmul.f32 %v1703, %v2087
    %v2152 = vmul.f32 %v1704, %v2088
    %v2153 = vmul.f32 %v1705, %v2089
    %v2154 = vmul.f32 %v1706, %v2090
    %v2155 = vmul.f32 %v1707, %v2091
    %v2156 = vmul.f32 %v1708, %v2092
    %v2157 = vmul.f32 %v1709, %v2093
    %v2158 = vmul.f32 %v1710, %v2094
    %v2159 = vmul.f32 %v1711, %v2095
    %v2160 = vmul.f32 %v1712, %v2096
    %v2161 = vmul.f32 %v1713, %v2097
    %v2162 = vmul.f32 %v1714, %v2098
    %v2163 = vmul.f32 %v1715, %v2099
    %v2164 = vmul.f32 %v1716, %v2100
    %v2165 = vmul.f32 %v1717, %v2101
    %v2166 = vmul.f32 %v1718, %v2102
    %v2167 = vmul.f32 %v1719, %v2103
    %v2168 = vmul.f32 %v1720, %v2104
    %v2169 = vmul.f32 %v1721, %v2105
    %v2170 = vmul.f32 %v1722, %v2106
    %v2171 = vmul.f32 %v1723, %v2107
    %v2172 = vmul.f32 %v1724, %v2108
    %v2173 = vmul.f32 %v1725, %v2109
    %v2174 = vmul.f32 %v1726, %v2110
    %v2175 = vmul.f32 %v1727, %v2111
    %v2176 = vmul.f32 %v1728, %v2112
    %v2177 = vmul.f32 %v1729, %v2113
    %v2178 = vmul.f32 %v1730, %v2114
    %v2179 = vmul.f32 %v1731, %v2115
    %v2180 = vmul.f32 %v1732, %v2116
    %v2181 = vmul.f32 %v1733, %v2117
    %v2182 = vmul.f32 %v1734, %v2118
    %v2183 = vmul.f32 %v1735, %v2119
    %v2184 = vmul.f32 %v1736, %v2120
    %v2185 = vmul.f32 %v1737, %v2121
    %v2186 = vmul.f32 %v1738, %v2122
    %v2187 = vmul.f32 %v1739, %v2123
    %v2188 = vmul.f32 %v1740, %v2124
    %v2189 = vmul.f32 %v1741, %v2125
    %v2190 = vmul.f32 %v1742, %v2126
    %v2191 = vmul.f32 %v1743, %v2127
    %v2192 = vmul.f32 %v1744, %v2128
    %v2193 = vmul.f32 %v1745, %v2129
    %v2194 = vmul.f32 %v1746, %v2130
    %v2195 = vmul.f32 %v1747, %v2131
    %v2196 = vmul.f32 %v1748, %v2132
    %v2197 = vmul.f32 %v1749, %v2133
    %v2198 = vmul.f32 %v1750, %v2134
    %v2199 = vmul.f32 %v1751, %v2135
    %v2200 = vmul.f32 %v1752, %v2136
    %v2201 = vmul.f32 %v1753, %v2137
    %v2202 = vmul.f32 %v1754, %v2138
    %v2203 = vmul.f32 %v1755, %v2139
    %v2204 = vmul.f32 %v1756, %v2140
    %v2205 = vld [vmem:[%s5] sm:$0x1]
    %v2207 = vlaneseq
    %v2208 = vshrl.u32 %v2207, 7
    %v2209 = vsub.s32 0, %v2208
    %v2210 = vrot.slane %v2205, %v2209
    %v2212 = vmul.f32 %v2141, %v2210
    %v2213 = vmul.f32 %v2142, %v2210
    %v2214 = vmul.f32 %v2143, %v2210
    %v2215 = vmul.f32 %v2144, %v2210
    %v2216 = vmul.f32 %v2145, %v2210
    %v2217 = vmul.f32 %v2146, %v2210
    %v2218 = vmul.f32 %v2147, %v2210
    %v2219 = vmul.f32 %v2148, %v2210
    %v2220 = vmul.f32 %v2149, %v2210
    %v2221 = vmul.f32 %v2150, %v2210
    %v2222 = vmul.f32 %v2151, %v2210
    %v2223 = vmul.f32 %v2152, %v2210
    %v2224 = vmul.f32 %v2153, %v2210
    %v2225 = vmul.f32 %v2154, %v2210
    %v2226 = vmul.f32 %v2155, %v2210
    %v2227 = vmul.f32 %v2156, %v2210
    %v2228 = vmul.f32 %v2157, %v2210
    %v2229 = vmul.f32 %v2158, %v2210
    %v2230 = vmul.f32 %v2159, %v2210
    %v2231 = vmul.f32 %v2160, %v2210
    %v2232 = vmul.f32 %v2161, %v2210
    %v2233 = vmul.f32 %v2162, %v2210
    %v2234 = vmul.f32 %v2163, %v2210
    %v2235 = vmul.f32 %v2164, %v2210
    %v2236 = vmul.f32 %v2165, %v2210
    %v2237 = vmul.f32 %v2166, %v2210
    %v2238 = vmul.f32 %v2167, %v2210
    %v2239 = vmul.f32 %v2168, %v2210
    %v2240 = vmul.f32 %v2169, %v2210
    %v2241 = vmul.f32 %v2170, %v2210
    %v2242 = vmul.f32 %v2171, %v2210
    %v2243 = vmul.f32 %v2172, %v2210
    %v2244 = vmul.f32 %v2173, %v2210
    %v2245 = vmul.f32 %v2174, %v2210
    %v2246 = vmul.f32 %v2175, %v2210
    %v2247 = vmul.f32 %v2176, %v2210
    %v2248 = vmul.f32 %v2177, %v2210
    %v2249 = vmul.f32 %v2178, %v2210
    %v2250 = vmul.f32 %v2179, %v2210
    %v2251 = vmul.f32 %v2180, %v2210
    %v2252 = vmul.f32 %v2181, %v2210
    %v2253 = vmul.f32 %v2182, %v2210
    %v2254 = vmul.f32 %v2183, %v2210
    %v2255 = vmul.f32 %v2184, %v2210
    %v2256 = vmul.f32 %v2185, %v2210
    %v2257 = vmul.f32 %v2186, %v2210
    %v2258 = vmul.f32 %v2187, %v2210
    %v2259 = vmul.f32 %v2188, %v2210
    %v2260 = vmul.f32 %v2189, %v2210
    %v2261 = vmul.f32 %v2190, %v2210
    %v2262 = vmul.f32 %v2191, %v2210
    %v2263 = vmul.f32 %v2192, %v2210
    %v2264 = vmul.f32 %v2193, %v2210
    %v2265 = vmul.f32 %v2194, %v2210
    %v2266 = vmul.f32 %v2195, %v2210
    %v2267 = vmul.f32 %v2196, %v2210
    %v2268 = vmul.f32 %v2197, %v2210
    %v2269 = vmul.f32 %v2198, %v2210
    %v2270 = vmul.f32 %v2199, %v2210
    %v2271 = vmul.f32 %v2200, %v2210
    %v2272 = vmul.f32 %v2201, %v2210
    %v2273 = vmul.f32 %v2202, %v2210
    %v2274 = vmul.f32 %v2203, %v2210
    %v2275 = vmul.f32 %v2204, %v2210
    %v2276 = vadd.f32 %v76, %v2212
    %v2277 = vadd.f32 %v77, %v2213
    %v2278 = vadd.f32 %v78, %v2214
    %v2279 = vadd.f32 %v79, %v2215
    %v2280 = vadd.f32 %v80, %v2216
    %v2281 = vadd.f32 %v81, %v2217
    %v2282 = vadd.f32 %v82, %v2218
    %v2283 = vadd.f32 %v83, %v2219
    %v2284 = vadd.f32 %v84, %v2220
    %v2285 = vadd.f32 %v85, %v2221
    %v2286 = vadd.f32 %v86, %v2222
    %v2287 = vadd.f32 %v87, %v2223
    %v2288 = vadd.f32 %v88, %v2224
    %v2289 = vadd.f32 %v89, %v2225
    %v2290 = vadd.f32 %v90, %v2226
    %v2291 = vadd.f32 %v91, %v2227
    %v2292 = vadd.f32 %v92, %v2228
    %v2293 = vadd.f32 %v93, %v2229
    %v2294 = vadd.f32 %v94, %v2230
    %v2295 = vadd.f32 %v95, %v2231
    %v2296 = vadd.f32 %v96, %v2232
    %v2297 = vadd.f32 %v97, %v2233
    %v2298 = vadd.f32 %v98, %v2234
    %v2299 = vadd.f32 %v99, %v2235
    %v2300 = vadd.f32 %v100, %v2236
    %v2301 = vadd.f32 %v101, %v2237
    %v2302 = vadd.f32 %v102, %v2238
    %v2303 = vadd.f32 %v103, %v2239
    %v2304 = vadd.f32 %v104, %v2240
    %v2305 = vadd.f32 %v105, %v2241
    %v2306 = vadd.f32 %v106, %v2242
    %v2307 = vadd.f32 %v107, %v2243
    %v2308 = vadd.f32 %v108, %v2244
    %v2309 = vadd.f32 %v109, %v2245
    %v2310 = vadd.f32 %v110, %v2246
    %v2311 = vadd.f32 %v111, %v2247
    %v2312 = vadd.f32 %v112, %v2248
    %v2313 = vadd.f32 %v113, %v2249
    %v2314 = vadd.f32 %v114, %v2250
    %v2315 = vadd.f32 %v115, %v2251
    %v2316 = vadd.f32 %v116, %v2252
    %v2317 = vadd.f32 %v117, %v2253
    %v2318 = vadd.f32 %v118, %v2254
    %v2319 = vadd.f32 %v119, %v2255
    %v2320 = vadd.f32 %v120, %v2256
    %v2321 = vadd.f32 %v121, %v2257
    %v2322 = vadd.f32 %v122, %v2258
    %v2323 = vadd.f32 %v123, %v2259
    %v2324 = vadd.f32 %v124, %v2260
    %v2325 = vadd.f32 %v125, %v2261
    %v2326 = vadd.f32 %v126, %v2262
    %v2327 = vadd.f32 %v127, %v2263
    %v2328 = vadd.f32 %v128, %v2264
    %v2329 = vadd.f32 %v129, %v2265
    %v2330 = vadd.f32 %v130, %v2266
    %v2331 = vadd.f32 %v131, %v2267
    %v2332 = vadd.f32 %v132, %v2268
    %v2333 = vadd.f32 %v133, %v2269
    %v2334 = vadd.f32 %v134, %v2270
    %v2335 = vadd.f32 %v135, %v2271
    %v2336 = vadd.f32 %v136, %v2272
    %v2337 = vadd.f32 %v137, %v2273
    %v2338 = vadd.f32 %v138, %v2274
    %v2339 = vadd.f32 %v139, %v2275
    %v2340 = vld [vmem:[%s6] sm:$0x1]
    %v2342 = vlaneseq
    %v2343 = vshrl.u32 %v2342, 7
    %v2344 = vsub.s32 0, %v2343
    %v2345 = vrot.slane %v2340, %v2344
    %v2347 = vadd.f32 %v2276, %v2345
    %v2348 = vadd.f32 %v2277, %v2345
    %v2349 = vadd.f32 %v2278, %v2345
    %v2350 = vadd.f32 %v2279, %v2345
    %v2351 = vadd.f32 %v2280, %v2345
    %v2352 = vadd.f32 %v2281, %v2345
    %v2353 = vadd.f32 %v2282, %v2345
    %v2354 = vadd.f32 %v2283, %v2345
    %v2355 = vadd.f32 %v2284, %v2345
    %v2356 = vadd.f32 %v2285, %v2345
    %v2357 = vadd.f32 %v2286, %v2345
    %v2358 = vadd.f32 %v2287, %v2345
    %v2359 = vadd.f32 %v2288, %v2345
    %v2360 = vadd.f32 %v2289, %v2345
    %v2361 = vadd.f32 %v2290, %v2345
    %v2362 = vadd.f32 %v2291, %v2345
    %v2363 = vadd.f32 %v2292, %v2345
    %v2364 = vadd.f32 %v2293, %v2345
    %v2365 = vadd.f32 %v2294, %v2345
    %v2366 = vadd.f32 %v2295, %v2345
    %v2367 = vadd.f32 %v2296, %v2345
    %v2368 = vadd.f32 %v2297, %v2345
    %v2369 = vadd.f32 %v2298, %v2345
    %v2370 = vadd.f32 %v2299, %v2345
    %v2371 = vadd.f32 %v2300, %v2345
    %v2372 = vadd.f32 %v2301, %v2345
    %v2373 = vadd.f32 %v2302, %v2345
    %v2374 = vadd.f32 %v2303, %v2345
    %v2375 = vadd.f32 %v2304, %v2345
    %v2376 = vadd.f32 %v2305, %v2345
    %v2377 = vadd.f32 %v2306, %v2345
    %v2378 = vadd.f32 %v2307, %v2345
    %v2379 = vadd.f32 %v2308, %v2345
    %v2380 = vadd.f32 %v2309, %v2345
    %v2381 = vadd.f32 %v2310, %v2345
    %v2382 = vadd.f32 %v2311, %v2345
    %v2383 = vadd.f32 %v2312, %v2345
    %v2384 = vadd.f32 %v2313, %v2345
    %v2385 = vadd.f32 %v2314, %v2345
    %v2386 = vadd.f32 %v2315, %v2345
    %v2387 = vadd.f32 %v2316, %v2345
    %v2388 = vadd.f32 %v2317, %v2345
    %v2389 = vadd.f32 %v2318, %v2345
    %v2390 = vadd.f32 %v2319, %v2345
    %v2391 = vadd.f32 %v2320, %v2345
    %v2392 = vadd.f32 %v2321, %v2345
    %v2393 = vadd.f32 %v2322, %v2345
    %v2394 = vadd.f32 %v2323, %v2345
    %v2395 = vadd.f32 %v2324, %v2345
    %v2396 = vadd.f32 %v2325, %v2345
    %v2397 = vadd.f32 %v2326, %v2345
    %v2398 = vadd.f32 %v2327, %v2345
    %v2399 = vadd.f32 %v2328, %v2345
    %v2400 = vadd.f32 %v2329, %v2345
    %v2401 = vadd.f32 %v2330, %v2345
    %v2402 = vadd.f32 %v2331, %v2345
    %v2403 = vadd.f32 %v2332, %v2345
    %v2404 = vadd.f32 %v2333, %v2345
    %v2405 = vadd.f32 %v2334, %v2345
    %v2406 = vadd.f32 %v2335, %v2345
    %v2407 = vadd.f32 %v2336, %v2345
    %v2408 = vadd.f32 %v2337, %v2345
    %v2409 = vadd.f32 %v2338, %v2345
    %v2410 = vadd.f32 %v2339, %v2345
    %v2411 = vld [vmem:[%s7] sm:$0x1]
    %v2413 = vlaneseq
    %v2414 = vshrl.u32 %v2413, 7
    %v2415 = vsub.s32 0, %v2414
    %v2416 = vrot.slane %v2411, %v2415
    %v2418 = vmul.f32 %v2347, %v2416
    %v2419 = vmul.f32 %v2348, %v2416
    %v2420 = vmul.f32 %v2349, %v2416
    %v2421 = vmul.f32 %v2350, %v2416
    %v2422 = vmul.f32 %v2351, %v2416
    %v2423 = vmul.f32 %v2352, %v2416
    %v2424 = vmul.f32 %v2353, %v2416
    %v2425 = vmul.f32 %v2354, %v2416
    %v2426 = vmul.f32 %v2355, %v2416
    %v2427 = vmul.f32 %v2356, %v2416
    %v2428 = vmul.f32 %v2357, %v2416
    %v2429 = vmul.f32 %v2358, %v2416
    %v2430 = vmul.f32 %v2359, %v2416
    %v2431 = vmul.f32 %v2360, %v2416
    %v2432 = vmul.f32 %v2361, %v2416
    %v2433 = vmul.f32 %v2362, %v2416
    %v2434 = vmul.f32 %v2363, %v2416
    %v2435 = vmul.f32 %v2364, %v2416
    %v2436 = vmul.f32 %v2365, %v2416
    %v2437 = vmul.f32 %v2366, %v2416
    %v2438 = vmul.f32 %v2367, %v2416
    %v2439 = vmul.f32 %v2368, %v2416
    %v2440 = vmul.f32 %v2369, %v2416
    %v2441 = vmul.f32 %v2370, %v2416
    %v2442 = vmul.f32 %v2371, %v2416
    %v2443 = vmul.f32 %v2372, %v2416
    %v2444 = vmul.f32 %v2373, %v2416
    %v2445 = vmul.f32 %v2374, %v2416
    %v2446 = vmul.f32 %v2375, %v2416
    %v2447 = vmul.f32 %v2376, %v2416
    %v2448 = vmul.f32 %v2377, %v2416
    %v2449 = vmul.f32 %v2378, %v2416
    %v2450 = vmul.f32 %v2379, %v2416
    %v2451 = vmul.f32 %v2380, %v2416
    %v2452 = vmul.f32 %v2381, %v2416
    %v2453 = vmul.f32 %v2382, %v2416
    %v2454 = vmul.f32 %v2383, %v2416
    %v2455 = vmul.f32 %v2384, %v2416
    %v2456 = vmul.f32 %v2385, %v2416
    %v2457 = vmul.f32 %v2386, %v2416
    %v2458 = vmul.f32 %v2387, %v2416
    %v2459 = vmul.f32 %v2388, %v2416
    %v2460 = vmul.f32 %v2389, %v2416
    %v2461 = vmul.f32 %v2390, %v2416
    %v2462 = vmul.f32 %v2391, %v2416
    %v2463 = vmul.f32 %v2392, %v2416
    %v2464 = vmul.f32 %v2393, %v2416
    %v2465 = vmul.f32 %v2394, %v2416
    %v2466 = vmul.f32 %v2395, %v2416
    %v2467 = vmul.f32 %v2396, %v2416
    %v2468 = vmul.f32 %v2397, %v2416
    %v2469 = vmul.f32 %v2398, %v2416
    %v2470 = vmul.f32 %v2399, %v2416
    %v2471 = vmul.f32 %v2400, %v2416
    %v2472 = vmul.f32 %v2401, %v2416
    %v2473 = vmul.f32 %v2402, %v2416
    %v2474 = vmul.f32 %v2403, %v2416
    %v2475 = vmul.f32 %v2404, %v2416
    %v2476 = vmul.f32 %v2405, %v2416
    %v2477 = vmul.f32 %v2406, %v2416
    %v2478 = vmul.f32 %v2407, %v2416
    %v2479 = vmul.f32 %v2408, %v2416
    %v2480 = vmul.f32 %v2409, %v2416
    %v2481 = vmul.f32 %v2410, %v2416
    %2482 = vadd.xlane.f32.xlu0 %v2418
    %v2483 = vpop.xlane.xlu0 %2482
    %2484 = vadd.xlane.f32.xlu0 %v2419
    %v2485 = vpop.xlane.xlu0 %2484
    %2486 = vadd.xlane.f32.xlu0 %v2420
    %v2487 = vpop.xlane.xlu0 %2486
    %2488 = vadd.xlane.f32.xlu0 %v2421
    %v2489 = vpop.xlane.xlu0 %2488
    %2490 = vadd.xlane.f32.xlu0 %v2422
    %v2491 = vpop.xlane.xlu0 %2490
    %2492 = vadd.xlane.f32.xlu0 %v2423
    %v2493 = vpop.xlane.xlu0 %2492
    %2494 = vadd.xlane.f32.xlu0 %v2424
    %v2495 = vpop.xlane.xlu0 %2494
    %2496 = vadd.xlane.f32.xlu0 %v2425
    %v2497 = vpop.xlane.xlu0 %2496
    %2498 = vadd.xlane.f32.xlu0 %v2426
    %v2499 = vpop.xlane.xlu0 %2498
    %2500 = vadd.xlane.f32.xlu0 %v2427
    %v2501 = vpop.xlane.xlu0 %2500
    %2502 = vadd.xlane.f32.xlu0 %v2428
    %v2503 = vpop.xlane.xlu0 %2502
    %2504 = vadd.xlane.f32.xlu0 %v2429
    %v2505 = vpop.xlane.xlu0 %2504
    %2506 = vadd.xlane.f32.xlu0 %v2430
    %v2507 = vpop.xlane.xlu0 %2506
    %2508 = vadd.xlane.f32.xlu0 %v2431
    %v2509 = vpop.xlane.xlu0 %2508
    %2510 = vadd.xlane.f32.xlu0 %v2432
    %v2511 = vpop.xlane.xlu0 %2510
    %2512 = vadd.xlane.f32.xlu0 %v2433
    %v2513 = vpop.xlane.xlu0 %2512
    %2514 = vadd.xlane.f32.xlu0 %v2434
    %v2515 = vpop.xlane.xlu0 %2514
    %2516 = vadd.xlane.f32.xlu0 %v2435
    %v2517 = vpop.xlane.xlu0 %2516
    %2518 = vadd.xlane.f32.xlu0 %v2436
    %v2519 = vpop.xlane.xlu0 %2518
    %2520 = vadd.xlane.f32.xlu0 %v2437
    %v2521 = vpop.xlane.xlu0 %2520
    %2522 = vadd.xlane.f32.xlu0 %v2438
    %v2523 = vpop.xlane.xlu0 %2522
    %2524 = vadd.xlane.f32.xlu0 %v2439
    %v2525 = vpop.xlane.xlu0 %2524
    %2526 = vadd.xlane.f32.xlu0 %v2440
    %v2527 = vpop.xlane.xlu0 %2526
    %2528 = vadd.xlane.f32.xlu0 %v2441
    %v2529 = vpop.xlane.xlu0 %2528
    %2530 = vadd.xlane.f32.xlu0 %v2442
    %v2531 = vpop.xlane.xlu0 %2530
    %2532 = vadd.xlane.f32.xlu0 %v2443
    %v2533 = vpop.xlane.xlu0 %2532
    %2534 = vadd.xlane.f32.xlu0 %v2444
    %v2535 = vpop.xlane.xlu0 %2534
    %2536 = vadd.xlane.f32.xlu0 %v2445
    %v2537 = vpop.xlane.xlu0 %2536
    %2538 = vadd.xlane.f32.xlu0 %v2446
    %v2539 = vpop.xlane.xlu0 %2538
    %2540 = vadd.xlane.f32.xlu0 %v2447
    %v2541 = vpop.xlane.xlu0 %2540
    %2542 = vadd.xlane.f32.xlu0 %v2448
    %v2543 = vpop.xlane.xlu0 %2542
    %2544 = vadd.xlane.f32.xlu0 %v2449
    %v2545 = vpop.xlane.xlu0 %2544
    %2546 = vadd.xlane.f32.xlu0 %v2450
    %v2547 = vpop.xlane.xlu0 %2546
    %2548 = vadd.xlane.f32.xlu0 %v2451
    %v2549 = vpop.xlane.xlu0 %2548
    %2550 = vadd.xlane.f32.xlu0 %v2452
    %v2551 = vpop.xlane.xlu0 %2550
    %2552 = vadd.xlane.f32.xlu0 %v2453
    %v2553 = vpop.xlane.xlu0 %2552
    %2554 = vadd.xlane.f32.xlu0 %v2454
    %v2555 = vpop.xlane.xlu0 %2554
    %2556 = vadd.xlane.f32.xlu0 %v2455
    %v2557 = vpop.xlane.xlu0 %2556
    %2558 = vadd.xlane.f32.xlu0 %v2456
    %v2559 = vpop.xlane.xlu0 %2558
    %2560 = vadd.xlane.f32.xlu0 %v2457
    %v2561 = vpop.xlane.xlu0 %2560
    %2562 = vadd.xlane.f32.xlu0 %v2458
    %v2563 = vpop.xlane.xlu0 %2562
    %2564 = vadd.xlane.f32.xlu0 %v2459
    %v2565 = vpop.xlane.xlu0 %2564
    %2566 = vadd.xlane.f32.xlu0 %v2460
    %v2567 = vpop.xlane.xlu0 %2566
    %2568 = vadd.xlane.f32.xlu0 %v2461
    %v2569 = vpop.xlane.xlu0 %2568
    %2570 = vadd.xlane.f32.xlu0 %v2462
    %v2571 = vpop.xlane.xlu0 %2570
    %2572 = vadd.xlane.f32.xlu0 %v2463
    %v2573 = vpop.xlane.xlu0 %2572
    %2574 = vadd.xlane.f32.xlu0 %v2464
    %v2575 = vpop.xlane.xlu0 %2574
    %2576 = vadd.xlane.f32.xlu0 %v2465
    %v2577 = vpop.xlane.xlu0 %2576
    %2578 = vadd.xlane.f32.xlu0 %v2466
    %v2579 = vpop.xlane.xlu0 %2578
    %2580 = vadd.xlane.f32.xlu0 %v2467
    %v2581 = vpop.xlane.xlu0 %2580
    %2582 = vadd.xlane.f32.xlu0 %v2468
    %v2583 = vpop.xlane.xlu0 %2582
    %2584 = vadd.xlane.f32.xlu0 %v2469
    %v2585 = vpop.xlane.xlu0 %2584
    %2586 = vadd.xlane.f32.xlu0 %v2470
    %v2587 = vpop.xlane.xlu0 %2586
    %2588 = vadd.xlane.f32.xlu0 %v2471
    %v2589 = vpop.xlane.xlu0 %2588
    %2590 = vadd.xlane.f32.xlu0 %v2472
    %v2591 = vpop.xlane.xlu0 %2590
    %2592 = vadd.xlane.f32.xlu0 %v2473
    %v2593 = vpop.xlane.xlu0 %2592
    %2594 = vadd.xlane.f32.xlu0 %v2474
    %v2595 = vpop.xlane.xlu0 %2594
    %2596 = vadd.xlane.f32.xlu0 %v2475
    %v2597 = vpop.xlane.xlu0 %2596
    %2598 = vadd.xlane.f32.xlu0 %v2476
    %v2599 = vpop.xlane.xlu0 %2598
    %2600 = vadd.xlane.f32.xlu0 %v2477
    %v2601 = vpop.xlane.xlu0 %2600
    %2602 = vadd.xlane.f32.xlu0 %v2478
    %v2603 = vpop.xlane.xlu0 %2602
    %2604 = vadd.xlane.f32.xlu0 %v2479
    %v2605 = vpop.xlane.xlu0 %2604
    %2606 = vadd.xlane.f32.xlu0 %v2480
    %v2607 = vpop.xlane.xlu0 %2606
    %2608 = vadd.xlane.f32.xlu0 %v2481
    %v2609 = vpop.xlane.xlu0 %2608
    %v2610 = vld [vmem:[#allocation2] sm:$0x1]
    %v2612 = vlaneseq
    %v2613 = vshrl.u32 %v2612, 7
    %v2614 = vsub.s32 0, %v2613
    %v2615 = vrot.slane %v2610, %v2614
    %v2617 = vadd.f32 %v2483, %v2615
    %v2618 = vadd.f32 %v2485, %v2615
    %v2619 = vadd.f32 %v2487, %v2615
    %v2620 = vadd.f32 %v2489, %v2615
    %v2621 = vadd.f32 %v2491, %v2615
    %v2622 = vadd.f32 %v2493, %v2615
    %v2623 = vadd.f32 %v2495, %v2615
    %v2624 = vadd.f32 %v2497, %v2615
    %v2625 = vadd.f32 %v2499, %v2615
    %v2626 = vadd.f32 %v2501, %v2615
    %v2627 = vadd.f32 %v2503, %v2615
    %v2628 = vadd.f32 %v2505, %v2615
    %v2629 = vadd.f32 %v2507, %v2615
    %v2630 = vadd.f32 %v2509, %v2615
    %v2631 = vadd.f32 %v2511, %v2615
    %v2632 = vadd.f32 %v2513, %v2615
    %v2633 = vadd.f32 %v2515, %v2615
    %v2634 = vadd.f32 %v2517, %v2615
    %v2635 = vadd.f32 %v2519, %v2615
    %v2636 = vadd.f32 %v2521, %v2615
    %v2637 = vadd.f32 %v2523, %v2615
    %v2638 = vadd.f32 %v2525, %v2615
    %v2639 = vadd.f32 %v2527, %v2615
    %v2640 = vadd.f32 %v2529, %v2615
    %v2641 = vadd.f32 %v2531, %v2615
    %v2642 = vadd.f32 %v2533, %v2615
    %v2643 = vadd.f32 %v2535, %v2615
    %v2644 = vadd.f32 %v2537, %v2615
    %v2645 = vadd.f32 %v2539, %v2615
    %v2646 = vadd.f32 %v2541, %v2615
    %v2647 = vadd.f32 %v2543, %v2615
    %v2648 = vadd.f32 %v2545, %v2615
    %v2649 = vadd.f32 %v2547, %v2615
    %v2650 = vadd.f32 %v2549, %v2615
    %v2651 = vadd.f32 %v2551, %v2615
    %v2652 = vadd.f32 %v2553, %v2615
    %v2653 = vadd.f32 %v2555, %v2615
    %v2654 = vadd.f32 %v2557, %v2615
    %v2655 = vadd.f32 %v2559, %v2615
    %v2656 = vadd.f32 %v2561, %v2615
    %v2657 = vadd.f32 %v2563, %v2615
    %v2658 = vadd.f32 %v2565, %v2615
    %v2659 = vadd.f32 %v2567, %v2615
    %v2660 = vadd.f32 %v2569, %v2615
    %v2661 = vadd.f32 %v2571, %v2615
    %v2662 = vadd.f32 %v2573, %v2615
    %v2663 = vadd.f32 %v2575, %v2615
    %v2664 = vadd.f32 %v2577, %v2615
    %v2665 = vadd.f32 %v2579, %v2615
    %v2666 = vadd.f32 %v2581, %v2615
    %v2667 = vadd.f32 %v2583, %v2615
    %v2668 = vadd.f32 %v2585, %v2615
    %v2669 = vadd.f32 %v2587, %v2615
    %v2670 = vadd.f32 %v2589, %v2615
    %v2671 = vadd.f32 %v2591, %v2615
    %v2672 = vadd.f32 %v2593, %v2615
    %v2673 = vadd.f32 %v2595, %v2615
    %v2674 = vadd.f32 %v2597, %v2615
    %v2675 = vadd.f32 %v2599, %v2615
    %v2676 = vadd.f32 %v2601, %v2615
    %v2677 = vadd.f32 %v2603, %v2615
    %v2678 = vadd.f32 %v2605, %v2615
    %v2679 = vadd.f32 %v2607, %v2615
    %v2680 = vadd.f32 %v2609, %v2615
    %v2681 = vxor.u32 %v2617, 2147483648
    %v2682 = vxor.u32 %v2618, 2147483648
    %v2683 = vxor.u32 %v2619, 2147483648
    %v2684 = vxor.u32 %v2620, 2147483648
    %v2685 = vxor.u32 %v2621, 2147483648
    %v2686 = vxor.u32 %v2622, 2147483648
    %v2687 = vxor.u32 %v2623, 2147483648
    %v2688 = vxor.u32 %v2624, 2147483648
    %v2689 = vxor.u32 %v2625, 2147483648
    %v2690 = vxor.u32 %v2626, 2147483648
    %v2691 = vxor.u32 %v2627, 2147483648
    %v2692 = vxor.u32 %v2628, 2147483648
    %v2693 = vxor.u32 %v2629, 2147483648
    %v2694 = vxor.u32 %v2630, 2147483648
    %v2695 = vxor.u32 %v2631, 2147483648
    %v2696 = vxor.u32 %v2632, 2147483648
    %v2697 = vxor.u32 %v2633, 2147483648
    %v2698 = vxor.u32 %v2634, 2147483648
    %v2699 = vxor.u32 %v2635, 2147483648
    %v2700 = vxor.u32 %v2636, 2147483648
    %v2701 = vxor.u32 %v2637, 2147483648
    %v2702 = vxor.u32 %v2638, 2147483648
    %v2703 = vxor.u32 %v2639, 2147483648
    %v2704 = vxor.u32 %v2640, 2147483648
    %v2705 = vxor.u32 %v2641, 2147483648
    %v2706 = vxor.u32 %v2642, 2147483648
    %v2707 = vxor.u32 %v2643, 2147483648
    %v2708 = vxor.u32 %v2644, 2147483648
    %v2709 = vxor.u32 %v2645, 2147483648
    %v2710 = vxor.u32 %v2646, 2147483648
    %v2711 = vxor.u32 %v2647, 2147483648
    %v2712 = vxor.u32 %v2648, 2147483648
    %v2713 = vxor.u32 %v2649, 2147483648
    %v2714 = vxor.u32 %v2650, 2147483648
    %v2715 = vxor.u32 %v2651, 2147483648
    %v2716 = vxor.u32 %v2652, 2147483648
    %v2717 = vxor.u32 %v2653, 2147483648
    %v2718 = vxor.u32 %v2654, 2147483648
    %v2719 = vxor.u32 %v2655, 2147483648
    %v2720 = vxor.u32 %v2656, 2147483648
    %v2721 = vxor.u32 %v2657, 2147483648
    %v2722 = vxor.u32 %v2658, 2147483648
    %v2723 = vxor.u32 %v2659, 2147483648
    %v2724 = vxor.u32 %v2660, 2147483648
    %v2725 = vxor.u32 %v2661, 2147483648
    %v2726 = vxor.u32 %v2662, 2147483648
    %v2727 = vxor.u32 %v2663, 2147483648
    %v2728 = vxor.u32 %v2664, 2147483648
    %v2729 = vxor.u32 %v2665, 2147483648
    %v2730 = vxor.u32 %v2666, 2147483648
    %v2731 = vxor.u32 %v2667, 2147483648
    %v2732 = vxor.u32 %v2668, 2147483648
    %v2733 = vxor.u32 %v2669, 2147483648
    %v2734 = vxor.u32 %v2670, 2147483648
    %v2735 = vxor.u32 %v2671, 2147483648
    %v2736 = vxor.u32 %v2672, 2147483648
    %v2737 = vxor.u32 %v2673, 2147483648
    %v2738 = vxor.u32 %v2674, 2147483648
    %v2739 = vxor.u32 %v2675, 2147483648
    %v2740 = vxor.u32 %v2676, 2147483648
    %v2741 = vxor.u32 %v2677, 2147483648
    %v2742 = vxor.u32 %v2678, 2147483648
    %v2743 = vxor.u32 %v2679, 2147483648
    %v2744 = vxor.u32 %v2680, 2147483648
    %v2745 = vmul.f32 %v2681, 1.442695
    %v2746 = vpow.pop %v2745
    %v2747 = vmul.f32 %v2682, 1.442695
    %v2748 = vpow.pop %v2747
    %v2749 = vmul.f32 %v2683, 1.442695
    %v2750 = vpow.pop %v2749
    %v2751 = vmul.f32 %v2684, 1.442695
    %v2752 = vpow.pop %v2751
    %v2753 = vmul.f32 %v2685, 1.442695
    %v2754 = vpow.pop %v2753
    %v2755 = vmul.f32 %v2686, 1.442695
    %v2756 = vpow.pop %v2755
    %v2757 = vmul.f32 %v2687, 1.442695
    %v2758 = vpow.pop %v2757
    %v2759 = vmul.f32 %v2688, 1.442695
    %v2760 = vpow.pop %v2759
    %v2761 = vmul.f32 %v2689, 1.442695
    %v2762 = vpow.pop %v2761
    %v2763 = vmul.f32 %v2690, 1.442695
    %v2764 = vpow.pop %v2763
    %v2765 = vmul.f32 %v2691, 1.442695
    %v2766 = vpow.pop %v2765
    %v2767 = vmul.f32 %v2692, 1.442695
    %v2768 = vpow.pop %v2767
    %v2769 = vmul.f32 %v2693, 1.442695
    %v2770 = vpow.pop %v2769
    %v2771 = vmul.f32 %v2694, 1.442695
    %v2772 = vpow.pop %v2771
    %v2773 = vmul.f32 %v2695, 1.442695
    %v2774 = vpow.pop %v2773
    %v2775 = vmul.f32 %v2696, 1.442695
    %v2776 = vpow.pop %v2775
    %v2777 = vmul.f32 %v2697, 1.442695
    %v2778 = vpow.pop %v2777
    %v2779 = vmul.f32 %v2698, 1.442695
    %v2780 = vpow.pop %v2779
    %v2781 = vmul.f32 %v2699, 1.442695
    %v2782 = vpow.pop %v2781
    %v2783 = vmul.f32 %v2700, 1.442695
    %v2784 = vpow.pop %v2783
    %v2785 = vmul.f32 %v2701, 1.442695
    %v2786 = vpow.pop %v2785
    %v2787 = vmul.f32 %v2702, 1.442695
    %v2788 = vpow.pop %v2787
    %v2789 = vmul.f32 %v2703, 1.442695
    %v2790 = vpow.pop %v2789
    %v2791 = vmul.f32 %v2704, 1.442695
    %v2792 = vpow.pop %v2791
    %v2793 = vmul.f32 %v2705, 1.442695
    %v2794 = vpow.pop %v2793
    %v2795 = vmul.f32 %v2706, 1.442695
    %v2796 = vpow.pop %v2795
    %v2797 = vmul.f32 %v2707, 1.442695
    %v2798 = vpow.pop %v2797
    %v2799 = vmul.f32 %v2708, 1.442695
    %v2800 = vpow.pop %v2799
    %v2801 = vmul.f32 %v2709, 1.442695
    %v2802 = vpow.pop %v2801
    %v2803 = vmul.f32 %v2710, 1.442695
    %v2804 = vpow.pop %v2803
    %v2805 = vmul.f32 %v2711, 1.442695
    %v2806 = vpow.pop %v2805
    %v2807 = vmul.f32 %v2712, 1.442695
    %v2808 = vpow.pop %v2807
    %v2809 = vmul.f32 %v2713, 1.442695
    %v2810 = vpow.pop %v2809
    %v2811 = vmul.f32 %v2714, 1.442695
    %v2812 = vpow.pop %v2811
    %v2813 = vmul.f32 %v2715, 1.442695
    %v2814 = vpow.pop %v2813
    %v2815 = vmul.f32 %v2716, 1.442695
    %v2816 = vpow.pop %v2815
    %v2817 = vmul.f32 %v2717, 1.442695
    %v2818 = vpow.pop %v2817
    %v2819 = vmul.f32 %v2718, 1.442695
    %v2820 = vpow.pop %v2819
    %v2821 = vmul.f32 %v2719, 1.442695
    %v2822 = vpow.pop %v2821
    %v2823 = vmul.f32 %v2720, 1.442695
    %v2824 = vpow.pop %v2823
    %v2825 = vmul.f32 %v2721, 1.442695
    %v2826 = vpow.pop %v2825
    %v2827 = vmul.f32 %v2722, 1.442695
    %v2828 = vpow.pop %v2827
    %v2829 = vmul.f32 %v2723, 1.442695
    %v2830 = vpow.pop %v2829
    %v2831 = vmul.f32 %v2724, 1.442695
    %v2832 = vpow.pop %v2831
    %v2833 = vmul.f32 %v2725, 1.442695
    %v2834 = vpow.pop %v2833
    %v2835 = vmul.f32 %v2726, 1.442695
    %v2836 = vpow.pop %v2835
    %v2837 = vmul.f32 %v2727, 1.442695
    %v2838 = vpow.pop %v2837
    %v2839 = vmul.f32 %v2728, 1.442695
    %v2840 = vpow.pop %v2839
    %v2841 = vmul.f32 %v2729, 1.442695
    %v2842 = vpow.pop %v2841
    %v2843 = vmul.f32 %v2730, 1.442695
    %v2844 = vpow.pop %v2843
    %v2845 = vmul.f32 %v2731, 1.442695
    %v2846 = vpow.pop %v2845
    %v2847 = vmul.f32 %v2732, 1.442695
    %v2848 = vpow.pop %v2847
    %v2849 = vmul.f32 %v2733, 1.442695
    %v2850 = vpow.pop %v2849
    %v2851 = vmul.f32 %v2734, 1.442695
    %v2852 = vpow.pop %v2851
    %v2853 = vmul.f32 %v2735, 1.442695
    %v2854 = vpow.pop %v2853
    %v2855 = vmul.f32 %v2736, 1.442695
    %v2856 = vpow.pop %v2855
    %v2857 = vmul.f32 %v2737, 1.442695
    %v2858 = vpow.pop %v2857
    %v2859 = vmul.f32 %v2738, 1.442695
    %v2860 = vpow.pop %v2859
    %v2861 = vmul.f32 %v2739, 1.442695
    %v2862 = vpow.pop %v2861
    %v2863 = vmul.f32 %v2740, 1.442695
    %v2864 = vpow.pop %v2863
    %v2865 = vmul.f32 %v2741, 1.442695
    %v2866 = vpow.pop %v2865
    %v2867 = vmul.f32 %v2742, 1.442695
    %v2868 = vpow.pop %v2867
    %v2869 = vmul.f32 %v2743, 1.442695
    %v2870 = vpow.pop %v2869
    %v2871 = vmul.f32 %v2744, 1.442695
    %v2872 = vpow.pop %v2871
    %v2873 = vadd.f32 %v2746, 1.0
    %v2874 = vadd.f32 %v2748, 1.0
    %v2875 = vadd.f32 %v2750, 1.0
    %v2876 = vadd.f32 %v2752, 1.0
    %v2877 = vadd.f32 %v2754, 1.0
    %v2878 = vadd.f32 %v2756, 1.0
    %v2879 = vadd.f32 %v2758, 1.0
    %v2880 = vadd.f32 %v2760, 1.0
    %v2881 = vadd.f32 %v2762, 1.0
    %v2882 = vadd.f32 %v2764, 1.0
    %v2883 = vadd.f32 %v2766, 1.0
    %v2884 = vadd.f32 %v2768, 1.0
    %v2885 = vadd.f32 %v2770, 1.0
    %v2886 = vadd.f32 %v2772, 1.0
    %v2887 = vadd.f32 %v2774, 1.0
    %v2888 = vadd.f32 %v2776, 1.0
    %v2889 = vadd.f32 %v2778, 1.0
    %v2890 = vadd.f32 %v2780, 1.0
    %v2891 = vadd.f32 %v2782, 1.0
    %v2892 = vadd.f32 %v2784, 1.0
    %v2893 = vadd.f32 %v2786, 1.0
    %v2894 = vadd.f32 %v2788, 1.0
    %v2895 = vadd.f32 %v2790, 1.0
    %v2896 = vadd.f32 %v2792, 1.0
    %v2897 = vadd.f32 %v2794, 1.0
    %v2898 = vadd.f32 %v2796, 1.0
    %v2899 = vadd.f32 %v2798, 1.0
    %v2900 = vadd.f32 %v2800, 1.0
    %v2901 = vadd.f32 %v2802, 1.0
    %v2902 = vadd.f32 %v2804, 1.0
    %v2903 = vadd.f32 %v2806, 1.0
    %v2904 = vadd.f32 %v2808, 1.0
    %v2905 = vadd.f32 %v2810, 1.0
    %v2906 = vadd.f32 %v2812, 1.0
    %v2907 = vadd.f32 %v2814, 1.0
    %v2908 = vadd.f32 %v2816, 1.0
    %v2909 = vadd.f32 %v2818, 1.0
    %v2910 = vadd.f32 %v2820, 1.0
    %v2911 = vadd.f32 %v2822, 1.0
    %v2912 = vadd.f32 %v2824, 1.0
    %v2913 = vadd.f32 %v2826, 1.0
    %v2914 = vadd.f32 %v2828, 1.0
    %v2915 = vadd.f32 %v2830, 1.0
    %v2916 = vadd.f32 %v2832, 1.0
    %v2917 = vadd.f32 %v2834, 1.0
    %v2918 = vadd.f32 %v2836, 1.0
    %v2919 = vadd.f32 %v2838, 1.0
    %v2920 = vadd.f32 %v2840, 1.0
    %v2921 = vadd.f32 %v2842, 1.0
    %v2922 = vadd.f32 %v2844, 1.0
    %v2923 = vadd.f32 %v2846, 1.0
    %v2924 = vadd.f32 %v2848, 1.0
    %v2925 = vadd.f32 %v2850, 1.0
    %v2926 = vadd.f32 %v2852, 1.0
    %v2927 = vadd.f32 %v2854, 1.0
    %v2928 = vadd.f32 %v2856, 1.0
    %v2929 = vadd.f32 %v2858, 1.0
    %v2930 = vadd.f32 %v2860, 1.0
    %v2931 = vadd.f32 %v2862, 1.0
    %v2932 = vadd.f32 %v2864, 1.0
    %v2933 = vadd.f32 %v2866, 1.0
    %v2934 = vadd.f32 %v2868, 1.0
    %v2935 = vadd.f32 %v2870, 1.0
    %v2936 = vadd.f32 %v2872, 1.0
    %v2937 = vrcp.pop %v2873
    %v2938 = vmul.f32 1.0, %v2937
    %v2939 = vrcp.pop %v2874
    %v2940 = vmul.f32 1.0, %v2939
    %v2941 = vrcp.pop %v2875
    %v2942 = vmul.f32 1.0, %v2941
    %v2943 = vrcp.pop %v2876
    %v2944 = vmul.f32 1.0, %v2943
    %v2945 = vrcp.pop %v2877
    %v2946 = vmul.f32 1.0, %v2945
    %v2947 = vrcp.pop %v2878
    %v2948 = vmul.f32 1.0, %v2947
    %v2949 = vrcp.pop %v2879
    %v2950 = vmul.f32 1.0, %v2949
    %v2951 = vrcp.pop %v2880
    %v2952 = vmul.f32 1.0, %v2951
    %v2953 = vrcp.pop %v2881
    %v2954 = vmul.f32 1.0, %v2953
    %v2955 = vrcp.pop %v2882
    %v2956 = vmul.f32 1.0, %v2955
    %v2957 = vrcp.pop %v2883
    %v2958 = vmul.f32 1.0, %v2957
    %v2959 = vrcp.pop %v2884
    %v2960 = vmul.f32 1.0, %v2959
    %v2961 = vrcp.pop %v2885
    %v2962 = vmul.f32 1.0, %v2961
    %v2963 = vrcp.pop %v2886
    %v2964 = vmul.f32 1.0, %v2963
    %v2965 = vrcp.pop %v2887
    %v2966 = vmul.f32 1.0, %v2965
    %v2967 = vrcp.pop %v2888
    %v2968 = vmul.f32 1.0, %v2967
    %v2969 = vrcp.pop %v2889
    %v2970 = vmul.f32 1.0, %v2969
    %v2971 = vrcp.pop %v2890
    %v2972 = vmul.f32 1.0, %v2971
    %v2973 = vrcp.pop %v2891
    %v2974 = vmul.f32 1.0, %v2973
    %v2975 = vrcp.pop %v2892
    %v2976 = vmul.f32 1.0, %v2975
    %v2977 = vrcp.pop %v2893
    %v2978 = vmul.f32 1.0, %v2977
    %v2979 = vrcp.pop %v2894
    %v2980 = vmul.f32 1.0, %v2979
    %v2981 = vrcp.pop %v2895
    %v2982 = vmul.f32 1.0, %v2981
    %v2983 = vrcp.pop %v2896
    %v2984 = vmul.f32 1.0, %v2983
    %v2985 = vrcp.pop %v2897
    %v2986 = vmul.f32 1.0, %v2985
    %v2987 = vrcp.pop %v2898
    %v2988 = vmul.f32 1.0, %v2987
    %v2989 = vrcp.pop %v2899
    %v2990 = vmul.f32 1.0, %v2989
    %v2991 = vrcp.pop %v2900
    %v2992 = vmul.f32 1.0, %v2991
    %v2993 = vrcp.pop %v2901
    %v2994 = vmul.f32 1.0, %v2993
    %v2995 = vrcp.pop %v2902
    %v2996 = vmul.f32 1.0, %v2995
    %v2997 = vrcp.pop %v2903
    %v2998 = vmul.f32 1.0, %v2997
    %v2999 = vrcp.pop %v2904
    %v3000 = vmul.f32 1.0, %v2999
    %v3001 = vrcp.pop %v2905
    %v3002 = vmul.f32 1.0, %v3001
    %v3003 = vrcp.pop %v2906
    %v3004 = vmul.f32 1.0, %v3003
    %v3005 = vrcp.pop %v2907
    %v3006 = vmul.f32 1.0, %v3005
    %v3007 = vrcp.pop %v2908
    %v3008 = vmul.f32 1.0, %v3007
    %v3009 = vrcp.pop %v2909
    %v3010 = vmul.f32 1.0, %v3009
    %v3011 = vrcp.pop %v2910
    %v3012 = vmul.f32 1.0, %v3011
    %v3013 = vrcp.pop %v2911
    %v3014 = vmul.f32 1.0, %v3013
    %v3015 = vrcp.pop %v2912
    %v3016 = vmul.f32 1.0, %v3015
    %v3017 = vrcp.pop %v2913
    %v3018 = vmul.f32 1.0, %v3017
    %v3019 = vrcp.pop %v2914
    %v3020 = vmul.f32 1.0, %v3019
    %v3021 = vrcp.pop %v2915
    %v3022 = vmul.f32 1.0, %v3021
    %v3023 = vrcp.pop %v2916
    %v3024 = vmul.f32 1.0, %v3023
    %v3025 = vrcp.pop %v2917
    %v3026 = vmul.f32 1.0, %v3025
    %v3027 = vrcp.pop %v2918
    %v3028 = vmul.f32 1.0, %v3027
    %v3029 = vrcp.pop %v2919
    %v3030 = vmul.f32 1.0, %v3029
    %v3031 = vrcp.pop %v2920
    %v3032 = vmul.f32 1.0, %v3031
    %v3033 = vrcp.pop %v2921
    %v3034 = vmul.f32 1.0, %v3033
    %v3035 = vrcp.pop %v2922
    %v3036 = vmul.f32 1.0, %v3035
    %v3037 = vrcp.pop %v2923
    %v3038 = vmul.f32 1.0, %v3037
    %v3039 = vrcp.pop %v2924
    %v3040 = vmul.f32 1.0, %v3039
    %v3041 = vrcp.pop %v2925
    %v3042 = vmul.f32 1.0, %v3041
    %v3043 = vrcp.pop %v2926
    %v3044 = vmul.f32 1.0, %v3043
    %v3045 = vrcp.pop %v2927
    %v3046 = vmul.f32 1.0, %v3045
    %v3047 = vrcp.pop %v2928
    %v3048 = vmul.f32 1.0, %v3047
    %v3049 = vrcp.pop %v2929
    %v3050 = vmul.f32 1.0, %v3049
    %v3051 = vrcp.pop %v2930
    %v3052 = vmul.f32 1.0, %v3051
    %v3053 = vrcp.pop %v2931
    %v3054 = vmul.f32 1.0, %v3053
    %v3055 = vrcp.pop %v2932
    %v3056 = vmul.f32 1.0, %v3055
    %v3057 = vrcp.pop %v2933
    %v3058 = vmul.f32 1.0, %v3057
    %v3059 = vrcp.pop %v2934
    %v3060 = vmul.f32 1.0, %v3059
    %v3061 = vrcp.pop %v2935
    %v3062 = vmul.f32 1.0, %v3061
    %v3063 = vrcp.pop %v2936
    %v3064 = vmul.f32 1.0, %v3063
    %vm3065 = vcmask 7168
    %3066 = vst.msk [vmem:[%s9] sm:$0xff] %vm3065, %v2938
    %3067 = vst.msk [vmem:[%s9 + $0x8] sm:$0xff] %vm3065, %v2940
    %3068 = vst.msk [vmem:[%s9 + $0x10] sm:$0xff] %vm3065, %v2942
    %3069 = vst.msk [vmem:[%s9 + $0x18] sm:$0xff] %vm3065, %v2944
    %3070 = vst.msk [vmem:[%s9 + $0x20] sm:$0xff] %vm3065, %v2946
    %3071 = vst.msk [vmem:[%s9 + $0x28] sm:$0xff] %vm3065, %v2948
    %3072 = vst.msk [vmem:[%s9 + $0x30] sm:$0xff] %vm3065, %v2950
    %3073 = vst.msk [vmem:[%s9 + $0x38] sm:$0xff] %vm3065, %v2952
    %3074 = vst.msk [vmem:[%s9 + $0x40] sm:$0xff] %vm3065, %v2954
    %3075 = vst.msk [vmem:[%s9 + $0x48] sm:$0xff] %vm3065, %v2956
    %3076 = vst.msk [vmem:[%s9 + $0x50] sm:$0xff] %vm3065, %v2958
    %3077 = vst.msk [vmem:[%s9 + $0x58] sm:$0xff] %vm3065, %v2960
    %3078 = vst.msk [vmem:[%s9 + $0x60] sm:$0xff] %vm3065, %v2962
    %3079 = vst.msk [vmem:[%s9 + $0x68] sm:$0xff] %vm3065, %v2964
    %3080 = vst.msk [vmem:[%s9 + $0x70] sm:$0xff] %vm3065, %v2966
    %3081 = vst.msk [vmem:[%s9 + $0x78] sm:$0xff] %vm3065, %v2968
    %3082 = vst.msk [vmem:[%s9 + $0x80] sm:$0xff] %vm3065, %v2970
    %3083 = vst.msk [vmem:[%s9 + $0x88] sm:$0xff] %vm3065, %v2972
    %3084 = vst.msk [vmem:[%s9 + $0x90] sm:$0xff] %vm3065, %v2974
    %3085 = vst.msk [vmem:[%s9 + $0x98] sm:$0xff] %vm3065, %v2976
    %3086 = vst.msk [vmem:[%s9 + $0xa0] sm:$0xff] %vm3065, %v2978
    %3087 = vst.msk [vmem:[%s9 + $0xa8] sm:$0xff] %vm3065, %v2980
    %3088 = vst.msk [vmem:[%s9 + $0xb0] sm:$0xff] %vm3065, %v2982
    %3089 = vst.msk [vmem:[%s9 + $0xb8] sm:$0xff] %vm3065, %v2984
    %3090 = vst.msk [vmem:[%s9 + $0xc0] sm:$0xff] %vm3065, %v2986
    %3091 = vst.msk [vmem:[%s9 + $0xc8] sm:$0xff] %vm3065, %v2988
    %3092 = vst.msk [vmem:[%s9 + $0xd0] sm:$0xff] %vm3065, %v2990
    %3093 = vst.msk [vmem:[%s9 + $0xd8] sm:$0xff] %vm3065, %v2992
    %3094 = vst.msk [vmem:[%s9 + $0xe0] sm:$0xff] %vm3065, %v2994
    %3095 = vst.msk [vmem:[%s9 + $0xe8] sm:$0xff] %vm3065, %v2996
    %3096 = vst.msk [vmem:[%s9 + $0xf0] sm:$0xff] %vm3065, %v2998
    %3097 = vst.msk [vmem:[%s9 + $0xf8] sm:$0xff] %vm3065, %v3000
    %3098 = vst.msk [vmem:[%s9 + $0x100] sm:$0xff] %vm3065, %v3002
    %3099 = vst.msk [vmem:[%s9 + $0x108] sm:$0xff] %vm3065, %v3004
    %3100 = vst.msk [vmem:[%s9 + $0x110] sm:$0xff] %vm3065, %v3006
    %3101 = vst.msk [vmem:[%s9 + $0x118] sm:$0xff] %vm3065, %v3008
    %3102 = vst.msk [vmem:[%s9 + $0x120] sm:$0xff] %vm3065, %v3010
    %3103 = vst.msk [vmem:[%s9 + $0x128] sm:$0xff] %vm3065, %v3012
    %3104 = vst.msk [vmem:[%s9 + $0x130] sm:$0xff] %vm3065, %v3014
    %3105 = vst.msk [vmem:[%s9 + $0x138] sm:$0xff] %vm3065, %v3016
    %3106 = vst.msk [vmem:[%s9 + $0x140] sm:$0xff] %vm3065, %v3018
    %3107 = vst.msk [vmem:[%s9 + $0x148] sm:$0xff] %vm3065, %v3020
    %3108 = vst.msk [vmem:[%s9 + $0x150] sm:$0xff] %vm3065, %v3022
    %3109 = vst.msk [vmem:[%s9 + $0x158] sm:$0xff] %vm3065, %v3024
    %3110 = vst.msk [vmem:[%s9 + $0x160] sm:$0xff] %vm3065, %v3026
    %3111 = vst.msk [vmem:[%s9 + $0x168] sm:$0xff] %vm3065, %v3028
    %3112 = vst.msk [vmem:[%s9 + $0x170] sm:$0xff] %vm3065, %v3030
    %3113 = vst.msk [vmem:[%s9 + $0x178] sm:$0xff] %vm3065, %v3032
    %3114 = vst.msk [vmem:[%s9 + $0x180] sm:$0xff] %vm3065, %v3034
    %3115 = vst.msk [vmem:[%s9 + $0x188] sm:$0xff] %vm3065, %v3036
    %3116 = vst.msk [vmem:[%s9 + $0x190] sm:$0xff] %vm3065, %v3038
    %3117 = vst.msk [vmem:[%s9 + $0x198] sm:$0xff] %vm3065, %v3040
    %3118 = vst.msk [vmem:[%s9 + $0x1a0] sm:$0xff] %vm3065, %v3042
    %3119 = vst.msk [vmem:[%s9 + $0x1a8] sm:$0xff] %vm3065, %v3044
    %3120 = vst.msk [vmem:[%s9 + $0x1b0] sm:$0xff] %vm3065, %v3046
    %3121 = vst.msk [vmem:[%s9 + $0x1b8] sm:$0xff] %vm3065, %v3048
    %3122 = vst.msk [vmem:[%s9 + $0x1c0] sm:$0xff] %vm3065, %v3050
    %3123 = vst.msk [vmem:[%s9 + $0x1c8] sm:$0xff] %vm3065, %v3052
    %3124 = vst.msk [vmem:[%s9 + $0x1d0] sm:$0xff] %vm3065, %v3054
    %3125 = vst.msk [vmem:[%s9 + $0x1d8] sm:$0xff] %vm3065, %v3056
    %3126 = vst.msk [vmem:[%s9 + $0x1e0] sm:$0xff] %vm3065, %v3058
    %3127 = vst.msk [vmem:[%s9 + $0x1e8] sm:$0xff] %vm3065, %v3060
    %3128 = vst.msk [vmem:[%s9 + $0x1f0] sm:$0xff] %vm3065, %v3062
    %3129 = vst.msk [vmem:[%s9 + $0x1f8] sm:$0xff] %vm3065, %v3064
    // Predicated region
    $region50: #{tpu_custom_call.1} parent=1 // pred_check
      _
    $region51: #{tpu_custom_call.1} parent=1 // pred_check_branch
      %3131 = sbr.rel (0) target = $region53
    $region52: #{tpu_custom_call.1} parent=1 // pred_region
      _
    $region53: #{tpu_custom_call.1} parent=1 // pred_fallthru
      _
    // Predicated region
    $region54: #{tpu_custom_call.1} parent=1 // pred_check
      _
    $region55: #{tpu_custom_call.1} parent=1 // pred_check_branch
      %3133 = sbr.rel (0) target = $region57
    $region56: #{tpu_custom_call.1} parent=1 // pred_region
      _
    $region57: #{tpu_custom_call.1} parent=1 // pred_fallthru
      _
    %3134 = vsyncpa [#allocation4], 1
    %3135 = vsyncpa [#allocation6], 1

</llo_original>
